<compile_context>
chip_gen: v7x
topology: tpu7x:2x2x1
jax: 0.10.0
libtpu: 0.0.40
codegen_flags: <defaults>
</compile_context>

<pallas_src>
import functools

import jax
import jax.numpy as jnp
from jax import lax
from jax.experimental import pallas as pl
from jax.experimental.pallas import tpu as pltpu

# TODO(synk): the `neuron` callable is injected in __init__ and not defined in the module;
# we use a deterministic single-step IF / Heaviside neuron: spike = (v >= 1.0).
V_TH = 1.0
SPIKE_SCALE = 2.74   # folded into the standardized conv weights (conv is linear in its input)


# ----------------------------- fused Pallas kernel -----------------------------------

def _bottleneck_kernel(x_ref, w1_ref, b1_ref, w2_ref, b2_ref, w3_ref, b3_ref,
                       ml_ref, mr_ref, o_ref,
                       c_pad, l_pad, r_pad, *,
                       H, W, width, thr1, gain_alpha, pad_rows):
    HW = H * W

    # sn1(x / beta) * 2.74 : beta folded into the threshold, 2.74 folded into w1.
    s1 = (x_ref[0] >= thr1).astype(jnp.bfloat16)              # (HW, Cin) exact {0, 1}

    # conv1 (1x1)  +  sn2   (exact {0,1} bf16, ready for the conv2 MXU taps)
    h1 = jnp.dot(s1, w1_ref[...], preferred_element_type=jnp.float32) + b1_ref[...]
    s2 = (h1 >= V_TH).astype(jnp.bfloat16)                    # (HW, width)

    # Zero only the pad regions (cheap, done every step so each core's scratch is valid).
    zpad = jnp.zeros((pad_rows, width), jnp.bfloat16)
    top, bot = slice(0, pad_rows), slice(pad_rows + HW, 2 * pad_rows + HW)
    c_pad[top, :] = zpad
    c_pad[bot, :] = zpad
    l_pad[top, :] = zpad
    l_pad[bot, :] = zpad
    r_pad[top, :] = zpad
    r_pad[bot, :] = zpad

    # Center copy, then the dx = -1 / +1 shifted copies (column-wrap rows zeroed by the
    # precomputed {0,1} masks).  Only these two reads are sublane-unaligned; every one of the
    # nine conv2 tap slices below is aligned.
    c_pad[pad_rows:pad_rows + HW, :] = s2
    l_pad[pad_rows:pad_rows + HW, :] = c_pad[pad_rows - 1:pad_rows - 1 + HW, :] * ml_ref[...]
    r_pad[pad_rows:pad_rows + HW, :] = c_pad[pad_rows + 1:pad_rows + 1 + HW, :] * mr_ref[...]

    # conv2 (3x3, pad=1, stride=1) as 9 aligned, unmasked accumulating MXU dots.
    acc = jnp.broadcast_to(b2_ref[...], (HW, width)).astype(jnp.float32)   # bias folded in
    bufs = (l_pad, c_pad, r_pad)                               # dx = -1, 0, +1
    k = 0
    for dy in (-1, 0, 1):
        start = pad_rows + dy * W                              # 16-aligned when W % 16 == 0
        for dxi in range(3):
            patch = bufs[dxi][start:start + HW, :]             # (HW, width) bf16 {0, 1}
            acc = acc + jnp.dot(patch, w2_ref[k], preferred_element_type=jnp.float32)
            k += 1

    # sn3 + conv3 (1x1) + skip-init residual (identity re-read from the resident input block).
    s3 = (acc >= V_TH).astype(jnp.bfloat16)
    h3 = jnp.dot(s3, w3_ref[...], preferred_element_type=jnp.float32) + b3_ref[...]
    o_ref[0] = (h3 * gain_alpha + x_ref[0]).astype(o_ref.dtype)


# ----------------------------- parameter prep (plain JAX) ----------------------------

def standardize_weight(w, gain, eps=1e-4):
    """ScaledWSConv2d.get_weight(): w is (C_out, C_in, kh, kw), gain is (C_out,1,1,1)."""
    fan_in = w.shape[1] * w.shape[2] * w.shape[3]
    mean = jnp.mean(w, axis=(1, 2, 3), keepdims=True)
    var = jnp.var(w, axis=(1, 2, 3), keepdims=True, ddof=1)    # torch.var is unbiased
    w = (w - mean) / jnp.sqrt(var * fan_in + eps)
    return w * gain


def prepare_block_params(params):
    """Standardize weights, fold the 2.74 spike scale in, cast matmul operands to bf16."""
    width = params["w1"].shape[0]
    cout = params["w3"].shape[0]
    w1 = standardize_weight(params["w1"], params["g1"]) * SPIKE_SCALE    # (width, cin, 1, 1)
    w2 = standardize_weight(params["w2"], params["g2"]) * SPIKE_SCALE    # (width, width, 3, 3)
    w3 = standardize_weight(params["w3"], params["g3"]) * SPIKE_SCALE    # (cout, width, 1, 1)
    w1m = w1[:, :, 0, 0].T.astype(jnp.bfloat16)                          # (cin, width)
    w2m = jnp.transpose(w2, (2, 3, 1, 0)).reshape(9, width, width).astype(jnp.bfloat16)
    w3m = w3[:, :, 0, 0].T.astype(jnp.bfloat16)                          # (width, cout)
    b1 = params["b1"].reshape(1, width).astype(jnp.float32)
    b2 = params["b2"].reshape(1, width).astype(jnp.float32)
    b3 = params["b3"].reshape(1, cout).astype(jnp.float32)
    return w1m, b1, w2m, b2, w3m, b3


# ----------------------------- public forward ----------------------------------------

def bottleneck_forward(x_nchw, params, *, beta, alpha, skipinit_gain):
    """Forward of Bottleneck (default config: stride=1, downsample=None, groups=1, dilation=1)."""
    if beta <= 0:
        raise NotImplementedError("threshold folding assumes beta > 0")

    # TODO(synk): keep activations NHWC end-to-end in a full model; these boundary transposes
    # only exist to present the PyTorch NCHW interface.
    x = jnp.transpose(x_nchw, (0, 2, 3, 1)).astype(jnp.float32)   # NCHW -> NHWC
    N_, H, W, cin = x.shape
    HW = H * W
    assert HW % 16 == 0, "demo wrapper assumes H*W is a multiple of 16 (bf16 sublane packing)"
    x3 = x.reshape(N_, HW, cin)

    w1m, b1, w2m, b2, w3m, b3 = prepare_block_params(params)
    width = w1m.shape[1]
    cout = w3m.shape[1]
    assert cout == cin, "downsample=None requires inplanes == planes * expansion"

    # Column-wrap masks for the dx = -1 / +1 shifted spike maps, precomputed once host-side.
    col = jnp.arange(HW, dtype=jnp.int32) % W
    ml = jnp.broadcast_to((col != 0)[:, None], (HW, width)).astype(jnp.bfloat16)
    mr = jnp.broadcast_to((col != W - 1)[:, None], (HW, width)).astype(jnp.bfloat16)

    # >= W zero rows above/below the interior, 16-aligned for bf16 sublane packing.
    pad_rows = ((max(W, 16) + 15) // 16) * 16
    tot_rows = 2 * pad_rows + HW

    kern = functools.partial(
        _bottleneck_kernel, H=H, W=W, width=width,
        thr1=float(V_TH) * float(beta),
        gain_alpha=float(skipinit_gain) * float(alpha),
        pad_rows=pad_rows)

    out3 = pl.pallas_call(
        kern,
        out_shape=jax.ShapeDtypeStruct((N_, HW, cout), jnp.float32),
        grid=(N_,),
        in_specs=[
            pl.BlockSpec((1, HW, cin), lambda n: (n, 0, 0)),        # x (also the identity)
            pl.BlockSpec((cin, width), lambda n: (0, 0)),           # w1 (bf16)
            pl.BlockSpec((1, width), lambda n: (0, 0)),             # b1
            pl.BlockSpec((9, width, width), lambda n: (0, 0, 0)),   # w2 taps (bf16)
            pl.BlockSpec((1, width), lambda n: (0, 0)),             # b2
            pl.BlockSpec((width, cout), lambda n: (0, 0)),          # w3 (bf16)
            pl.BlockSpec((1, cout), lambda n: (0, 0)),              # b3
            pl.BlockSpec((HW, width), lambda n: (0, 0)),            # mask dx=-1 (bf16 {0,1})
            pl.BlockSpec((HW, width), lambda n: (0, 0)),            # mask dx=+1 (bf16 {0,1})
        ],
        out_specs=pl.BlockSpec((1, HW, cout), lambda n: (n, 0, 0)),
        scratch_shapes=[
            pltpu.VMEM((tot_rows, width), jnp.bfloat16),            # center-padded spikes
            pltpu.VMEM((tot_rows, width), jnp.bfloat16),            # dx=-1 shifted spikes
            pltpu.VMEM((tot_rows, width), jnp.bfloat16),            # dx=+1 shifted spikes
        ],
        compiler_params=pltpu.CompilerParams(
            dimension_semantics=("parallel",),          # v7x: two TensorCores split the batch
            vmem_limit_bytes=32 * 1024 * 1024,
        ),
    )(x3, w1m, b1, w2m, b2, w3m, b3, ml, mr)

    out = out3.reshape(N_, H, W, cout)
    return jnp.transpose(out, (0, 3, 1, 2))                          # NHWC -> NCHW


# ----------------------------- pure-JAX reference ------------------------------------
# Uses the SAME bf16-rounded standardized weights (upcast to f32) so that the comparison
# isolates the kernel structure: spike values are exact {0, 1}, so the Pallas bf16 matmuls
# differ from this f32 reference only by f32 accumulation order.

def reference_forward(x_nchw, params, *, beta, alpha, skipinit_gain):
    w1m, b1, w2m, b2, w3m, b3 = prepare_block_params(params)
    cin, width = w1m.shape
    cout = w3m.shape[1]

    x = jnp.transpose(x_nchw, (0, 2, 3, 1)).astype(jnp.float32)
    dn = ("NHWC", "HWIO", "NHWC")
    hi = lax.Precision.HIGHEST

    def spike(v):                                  # *2.74 already folded into the weights
        return jnp.where(v >= V_TH, 1.0, 0.0)

    w1h = w1m.astype(jnp.float32).reshape(1, 1, cin, width)
    w2h = w2m.astype(jnp.float32).reshape(3, 3, width, width)
    w3h = w3m.astype(jnp.float32).reshape(1, 1, width, cout)

    s1 = spike(x / beta)
    h1 = lax.conv_general_dilated(s1, w1h, (1, 1), [(0, 0), (0, 0)],
                                  dimension_numbers=dn, precision=hi) + b1.reshape(1, 1, 1, width)
    s2 = spike(h1)
    h2 = lax.conv_general_dilated(s2, w2h, (1, 1), [(1, 1), (1, 1)],
                                  dimension_numbers=dn, precision=hi) + b2.reshape(1, 1, 1, width)
    s3 = spike(h2)
    h3 = lax.conv_general_dilated(s3, w3h, (1, 1), [(0, 0), (0, 0)],
                                  dimension_numbers=dn, precision=hi) + b3.reshape(1, 1, 1, cout)
    out = h3 * (float(skipinit_gain) * float(alpha)) + x
    return jnp.transpose(out, (0, 3, 1, 2))


# ----------------------------- main ---------------------------------------------------

if __name__ == "__main__":
    key = jax.random.PRNGKey(0)
    ks = jax.random.split(key, 12)

    N, planes, H, W = 2, 32, 16, 16
    expansion = 4
    inplanes = planes * expansion          # residual (downsample=None) requires this (=128)
    width = planes                         # base_width=64, groups=1  -> width=32
    beta, alpha = 2.0, 1.0
    # Module __init__ sets skipinit_gain=0, which zeros the conv branch entirely;
    # use a deterministic nonzero value so the kernel path is exercised.
    skipinit_gain = 0.5

    x = jax.random.normal(ks[0], (N, inplanes, H, W), jnp.float32)   # PyTorch NCHW input

    params = {
        "w1": 0.3 * jax.random.normal(ks[1], (width, inplanes, 1, 1), jnp.float32),
        "b1": 0.1 * jax.random.normal(ks[2], (width,), jnp.float32),
        "g1": 1.0 + 0.1 * jax.random.normal(ks[3], (width, 1, 1, 1), jnp.float32),
        "w2": 0.3 * jax.random.normal(ks[4], (width, width, 3, 3), jnp.float32),
        "b2": 0.1 * jax.random.normal(ks[5], (width,), jnp.float32),
        "g2": 1.0 + 0.1 * jax.random.normal(ks[6], (width, 1, 1, 1), jnp.float32),
        "w3": 0.3 * jax.random.normal(ks[7], (planes * expansion, width, 1, 1), jnp.float32),
        "b3": 0.1 * jax.random.normal(ks[8], (planes * expansion,), jnp.float32),
        "g3": 1.0 + 0.1 * jax.random.normal(ks[9], (planes * expansion, 1, 1, 1), jnp.float32),
    }

    out = bottleneck_forward(x, params, beta=beta, alpha=alpha, skipinit_gain=skipinit_gain)
    out = jax.block_until_ready(out)
    assert out.shape == (N, planes * expansion, H, W)

    ref = reference_forward(x, params, beta=beta, alpha=alpha, skipinit_gain=skipinit_gain)

    # Margin-aware check: spikes threshold f32 sums, so an activation numerically at V_TH can
    # legally flip between the MXU and the f32-HIGHEST reference; require that (at most) a
    # vanishing fraction of outputs differ beyond tolerance instead of a brittle strict allclose.
    err = jnp.abs(out - ref)
    tol = 1e-3 + 1e-3 * jnp.abs(ref)
    frac_bad = float(jnp.mean((err > tol).astype(jnp.float32)))
    assert frac_bad <= 2e-3, f"Pallas output mismatch vs reference (bad fraction={frac_bad})"

    print("KERNEL_OK")
</pallas_src>

<mosaic_0001>
module attributes {stable_mosaic.version = 11 : i64} {
  func.func @_bottleneck_kernel(%arg0: i32, %arg1: memref<1x256x128xf32, #tpu.memory_space<vmem>>, %arg2: memref<128x32xbf16, #tpu.memory_space<vmem>>, %arg3: memref<1x32xf32, #tpu.memory_space<vmem>>, %arg4: memref<9x32x32xbf16, #tpu.memory_space<vmem>>, %arg5: memref<1x32xf32, #tpu.memory_space<vmem>>, %arg6: memref<32x128xbf16, #tpu.memory_space<vmem>>, %arg7: memref<1x128xf32, #tpu.memory_space<vmem>>, %arg8: memref<256x32xbf16, #tpu.memory_space<vmem>>, %arg9: memref<256x32xbf16, #tpu.memory_space<vmem>>, %arg10: memref<1x256x128xf32, #tpu.memory_space<vmem>>, %arg11: memref<288x32xbf16, #tpu.memory_space<vmem>>, %arg12: memref<288x32xbf16, #tpu.memory_space<vmem>>, %arg13: memref<288x32xbf16, #tpu.memory_space<vmem>>) attributes {dimension_semantics = [#tpu.dimension_semantics<parallel>], iteration_bounds = array<i64: 2>, scalar_prefetch = 0 : i64, scratch_operands = 3 : i64, tpu.core_type = #tpu.core_type<tc>, window_params = [{transform_indices = @transform_0, window_bounds = array<i64: 1, 256, 128>}, {pipeline_mode = #tpu.pipeline_mode<synchronous>, transform_indices = @transform_1, window_bounds = array<i64: 128, 32>}, {pipeline_mode = #tpu.pipeline_mode<synchronous>, transform_indices = @transform_2, window_bounds = array<i64: 1, 32>}, {pipeline_mode = #tpu.pipeline_mode<synchronous>, transform_indices = @transform_3, window_bounds = array<i64: 9, 32, 32>}, {pipeline_mode = #tpu.pipeline_mode<synchronous>, transform_indices = @transform_4, window_bounds = array<i64: 1, 32>}, {pipeline_mode = #tpu.pipeline_mode<synchronous>, transform_indices = @transform_5, window_bounds = array<i64: 32, 128>}, {pipeline_mode = #tpu.pipeline_mode<synchronous>, transform_indices = @transform_6, window_bounds = array<i64: 1, 128>}, {pipeline_mode = #tpu.pipeline_mode<synchronous>, transform_indices = @transform_7, window_bounds = array<i64: 256, 32>}, {pipeline_mode = #tpu.pipeline_mode<synchronous>, transform_indices = @transform_8, window_bounds = array<i64: 256, 32>}, {transform_indices = @transform_9, window_bounds = array<i64: 1, 256, 128>}]} {
    %c0 = arith.constant 0 : index
    %c0_0 = arith.constant 0 : index
    %c0_1 = arith.constant 0 : index
    %0 = vector.load %arg1[%c0, %c0_0, %c0_1] : memref<1x256x128xf32, #tpu.memory_space<vmem>>, vector<1x256x128xf32>
    %1 = vector.shape_cast %0 : vector<1x256x128xf32> to vector<256x128xf32>
    %cst = arith.constant 2.000000e+00 : f32
    %2 = vector.broadcast %cst : f32 to vector<256x128xf32>
    %3 = arith.cmpf oge, %1, %2 : vector<256x128xf32>
    %4 = arith.extui %3 : vector<256x128xi1> to vector<256x128xi32>
    %5 = arith.sitofp %4 : vector<256x128xi32> to vector<256x128xf32>
    %6 = arith.truncf %5 : vector<256x128xf32> to vector<256x128xbf16>
    %c0_2 = arith.constant 0 : index
    %c0_3 = arith.constant 0 : index
    %7 = vector.load %arg2[%c0_2, %c0_3] : memref<128x32xbf16, #tpu.memory_space<vmem>>, vector<128x32xbf16>
    %cst_4 = arith.constant dense<0.000000e+00> : vector<256x32xf32>
    %8 = tpu.matmul %6, %7, %cst_4 {dimension_numbers = #tpu.dot_dimension_numbers<[1], [0], [0], [1], [0, 0, 1, 1], [], []>} : vector<256x128xbf16>, vector<128x32xbf16>, vector<256x32xf32> -> vector<256x32xf32>
    %c0_5 = arith.constant 0 : index
    %c0_6 = arith.constant 0 : index
    %9 = vector.load %arg3[%c0_5, %c0_6] : memref<1x32xf32, #tpu.memory_space<vmem>>, vector<1x32xf32>
    %10 = vector.broadcast %9 : vector<1x32xf32> to vector<256x32xf32>
    %11 = arith.addf %8, %10 : vector<256x32xf32>
    %cst_7 = arith.constant 1.000000e+00 : f32
    %12 = vector.broadcast %cst_7 : f32 to vector<256x32xf32>
    %13 = arith.cmpf oge, %11, %12 : vector<256x32xf32>
    %14 = arith.extui %13 : vector<256x32xi1> to vector<256x32xi32>
    %15 = arith.sitofp %14 : vector<256x32xi32> to vector<256x32xf32>
    %16 = arith.truncf %15 : vector<256x32xf32> to vector<256x32xbf16>
    %cst_8 = arith.constant 0.000000e+00 : bf16
    %17 = vector.broadcast %cst_8 : bf16 to vector<16x32xbf16>
    %c0_9 = arith.constant 0 : index
    %c0_10 = arith.constant 0 : index
    %18 = vector.load %arg11[%c0_9, %c0_10] : memref<288x32xbf16, #tpu.memory_space<vmem>>, vector<16x32xbf16>
    tpu.vector_store %arg11[%c0_9, %c0_10], %17 {strides = array<i32>} : memref<288x32xbf16, #tpu.memory_space<vmem>>, vector<16x32xbf16>,
    %c272 = arith.constant 272 : index
    %c0_11 = arith.constant 0 : index
    %19 = vector.load %arg11[%c272, %c0_11] : memref<288x32xbf16, #tpu.memory_space<vmem>>, vector<16x32xbf16>
    tpu.vector_store %arg11[%c272, %c0_11], %17 {strides = array<i32>} : memref<288x32xbf16, #tpu.memory_space<vmem>>, vector<16x32xbf16>,
    %c0_12 = arith.constant 0 : index
    %c0_13 = arith.constant 0 : index
    %20 = vector.load %arg12[%c0_12, %c0_13] : memref<288x32xbf16, #tpu.memory_space<vmem>>, vector<16x32xbf16>
    tpu.vector_store %arg12[%c0_12, %c0_13], %17 {strides = array<i32>} : memref<288x32xbf16, #tpu.memory_space<vmem>>, vector<16x32xbf16>,
    %c272_14 = arith.constant 272 : index
    %c0_15 = arith.constant 0 : index
    %21 = vector.load %arg12[%c272_14, %c0_15] : memref<288x32xbf16, #tpu.memory_space<vmem>>, vector<16x32xbf16>
    tpu.vector_store %arg12[%c272_14, %c0_15], %17 {strides = array<i32>} : memref<288x32xbf16, #tpu.memory_space<vmem>>, vector<16x32xbf16>,
    %c0_16 = arith.constant 0 : index
    %c0_17 = arith.constant 0 : index
    %22 = vector.load %arg13[%c0_16, %c0_17] : memref<288x32xbf16, #tpu.memory_space<vmem>>, vector<16x32xbf16>
    tpu.vector_store %arg13[%c0_16, %c0_17], %17 {strides = array<i32>} : memref<288x32xbf16, #tpu.memory_space<vmem>>, vector<16x32xbf16>,
    %c272_18 = arith.constant 272 : index
    %c0_19 = arith.constant 0 : index
    %23 = vector.load %arg13[%c272_18, %c0_19] : memref<288x32xbf16, #tpu.memory_space<vmem>>, vector<16x32xbf16>
    tpu.vector_store %arg13[%c272_18, %c0_19], %17 {strides = array<i32>} : memref<288x32xbf16, #tpu.memory_space<vmem>>, vector<16x32xbf16>,
    %c16 = arith.constant 16 : index
    %c0_20 = arith.constant 0 : index
    %24 = vector.load %arg11[%c16, %c0_20] : memref<288x32xbf16, #tpu.memory_space<vmem>>, vector<256x32xbf16>
    tpu.vector_store %arg11[%c16, %c0_20], %16 {strides = array<i32>} : memref<288x32xbf16, #tpu.memory_space<vmem>>, vector<256x32xbf16>,
    %c15 = arith.constant 15 : index
    %c0_21 = arith.constant 0 : index
    %25 = vector.load %arg11[%c15, %c0_21] : memref<288x32xbf16, #tpu.memory_space<vmem>>, vector<256x32xbf16>
    %c0_22 = arith.constant 0 : index
    %c0_23 = arith.constant 0 : index
    %26 = vector.load %arg8[%c0_22, %c0_23] : memref<256x32xbf16, #tpu.memory_space<vmem>>, vector<256x32xbf16>
    %27 = arith.mulf %25, %26 : vector<256x32xbf16>
    %c16_24 = arith.constant 16 : index
    %c0_25 = arith.constant 0 : index
    %28 = vector.load %arg12[%c16_24, %c0_25] : memref<288x32xbf16, #tpu.memory_space<vmem>>, vector<256x32xbf16>
    tpu.vector_store %arg12[%c16_24, %c0_25], %27 {strides = array<i32>} : memref<288x32xbf16, #tpu.memory_space<vmem>>, vector<256x32xbf16>,
    %c17 = arith.constant 17 : index
    %c0_26 = arith.constant 0 : index
    %29 = vector.load %arg11[%c17, %c0_26] : memref<288x32xbf16, #tpu.memory_space<vmem>>, vector<256x32xbf16>
    %c0_27 = arith.constant 0 : index
    %c0_28 = arith.constant 0 : index
    %30 = vector.load %arg9[%c0_27, %c0_28] : memref<256x32xbf16, #tpu.memory_space<vmem>>, vector<256x32xbf16>
    %31 = arith.mulf %29, %30 : vector<256x32xbf16>
    %c16_29 = arith.constant 16 : index
    %c0_30 = arith.constant 0 : index
    %32 = vector.load %arg13[%c16_29, %c0_30] : memref<288x32xbf16, #tpu.memory_space<vmem>>, vector<256x32xbf16>
    tpu.vector_store %arg13[%c16_29, %c0_30], %31 {strides = array<i32>} : memref<288x32xbf16, #tpu.memory_space<vmem>>, vector<256x32xbf16>,
    %c0_31 = arith.constant 0 : index
    %c0_32 = arith.constant 0 : index
    %33 = vector.load %arg5[%c0_31, %c0_32] : memref<1x32xf32, #tpu.memory_space<vmem>>, vector<1x32xf32>
    %34 = vector.shape_cast %33 : vector<1x32xf32> to vector<1x32xf32>
    %35 = vector.broadcast %34 : vector<1x32xf32> to vector<256x32xf32>
    %c0_33 = arith.constant 0 : index
    %c0_34 = arith.constant 0 : index
    %36 = vector.load %arg12[%c0_33, %c0_34] : memref<288x32xbf16, #tpu.memory_space<vmem>>, vector<256x32xbf16>
    %c0_35 = arith.constant 0 : index
    %c0_36 = arith.constant 0 : index
    %c0_37 = arith.constant 0 : index
    %37 = vector.load %arg4[%c0_35, %c0_36, %c0_37] : memref<9x32x32xbf16, #tpu.memory_space<vmem>>, vector<1x32x32xbf16>
    %38 = vector.shape_cast %37 : vector<1x32x32xbf16> to vector<32x32xbf16>
    %cst_38 = arith.constant dense<0.000000e+00> : vector<256x32xf32>
    %39 = tpu.matmul %36, %38, %cst_38 {dimension_numbers = #tpu.dot_dimension_numbers<[1], [0], [0], [1], [0, 0, 1, 1], [], []>} : vector<256x32xbf16>, vector<32x32xbf16>, vector<256x32xf32> -> vector<256x32xf32>
    %40 = arith.addf %35, %39 : vector<256x32xf32>
    %c0_39 = arith.constant 0 : index
    %c0_40 = arith.constant 0 : index
    %41 = vector.load %arg11[%c0_39, %c0_40] : memref<288x32xbf16, #tpu.memory_space<vmem>>, vector<256x32xbf16>
    %c1 = arith.constant 1 : index
    %c0_41 = arith.constant 0 : index
    %c0_42 = arith.constant 0 : index
    %42 = vector.load %arg4[%c1, %c0_41, %c0_42] : memref<9x32x32xbf16, #tpu.memory_space<vmem>>, vector<1x32x32xbf16>
    %43 = vector.shape_cast %42 : vector<1x32x32xbf16> to vector<32x32xbf16>
    %cst_43 = arith.constant dense<0.000000e+00> : vector<256x32xf32>
    %44 = tpu.matmul %41, %43, %cst_43 {dimension_numbers = #tpu.dot_dimension_numbers<[1], [0], [0], [1], [0, 0, 1, 1], [], []>} : vector<256x32xbf16>, vector<32x32xbf16>, vector<256x32xf32> -> vector<256x32xf32>
    %45 = arith.addf %40, %44 : vector<256x32xf32>
    %c0_44 = arith.constant 0 : index
    %c0_45 = arith.constant 0 : index
    %46 = vector.load %arg13[%c0_44, %c0_45] : memref<288x32xbf16, #tpu.memory_space<vmem>>, vector<256x32xbf16>
    %c2 = arith.constant 2 : index
    %c0_46 = arith.constant 0 : index
    %c0_47 = arith.constant 0 : index
    %47 = vector.load %arg4[%c2, %c0_46, %c0_47] : memref<9x32x32xbf16, #tpu.memory_space<vmem>>, vector<1x32x32xbf16>
    %48 = vector.shape_cast %47 : vector<1x32x32xbf16> to vector<32x32xbf16>
    %cst_48 = arith.constant dense<0.000000e+00> : vector<256x32xf32>
    %49 = tpu.matmul %46, %48, %cst_48 {dimension_numbers = #tpu.dot_dimension_numbers<[1], [0], [0], [1], [0, 0, 1, 1], [], []>} : vector<256x32xbf16>, vector<32x32xbf16>, vector<256x32xf32> -> vector<256x32xf32>
    %50 = arith.addf %45, %49 : vector<256x32xf32>
    %c16_49 = arith.constant 16 : index
    %c0_50 = arith.constant 0 : index
    %51 = vector.load %arg12[%c16_49, %c0_50] : memref<288x32xbf16, #tpu.memory_space<vmem>>, vector<256x32xbf16>
    %c3 = arith.constant 3 : index
    %c0_51 = arith.constant 0 : index
    %c0_52 = arith.constant 0 : index
    %52 = vector.load %arg4[%c3, %c0_51, %c0_52] : memref<9x32x32xbf16, #tpu.memory_space<vmem>>, vector<1x32x32xbf16>
    %53 = vector.shape_cast %52 : vector<1x32x32xbf16> to vector<32x32xbf16>
    %cst_53 = arith.constant dense<0.000000e+00> : vector<256x32xf32>
    %54 = tpu.matmul %51, %53, %cst_53 {dimension_numbers = #tpu.dot_dimension_numbers<[1], [0], [0], [1], [0, 0, 1, 1], [], []>} : vector<256x32xbf16>, vector<32x32xbf16>, vector<256x32xf32> -> vector<256x32xf32>
    %55 = arith.addf %50, %54 : vector<256x32xf32>
    %c16_54 = arith.constant 16 : index
    %c0_55 = arith.constant 0 : index
    %56 = vector.load %arg11[%c16_54, %c0_55] : memref<288x32xbf16, #tpu.memory_space<vmem>>, vector<256x32xbf16>
    %c4 = arith.constant 4 : index
    %c0_56 = arith.constant 0 : index
    %c0_57 = arith.constant 0 : index
    %57 = vector.load %arg4[%c4, %c0_56, %c0_57] : memref<9x32x32xbf16, #tpu.memory_space<vmem>>, vector<1x32x32xbf16>
    %58 = vector.shape_cast %57 : vector<1x32x32xbf16> to vector<32x32xbf16>
    %cst_58 = arith.constant dense<0.000000e+00> : vector<256x32xf32>
    %59 = tpu.matmul %56, %58, %cst_58 {dimension_numbers = #tpu.dot_dimension_numbers<[1], [0], [0], [1], [0, 0, 1, 1], [], []>} : vector<256x32xbf16>, vector<32x32xbf16>, vector<256x32xf32> -> vector<256x32xf32>
    %60 = arith.addf %55, %59 : vector<256x32xf32>
    %c16_59 = arith.constant 16 : index
    %c0_60 = arith.constant 0 : index
    %61 = vector.load %arg13[%c16_59, %c0_60] : memref<288x32xbf16, #tpu.memory_space<vmem>>, vector<256x32xbf16>
    %c5 = arith.constant 5 : index
    %c0_61 = arith.constant 0 : index
    %c0_62 = arith.constant 0 : index
    %62 = vector.load %arg4[%c5, %c0_61, %c0_62] : memref<9x32x32xbf16, #tpu.memory_space<vmem>>, vector<1x32x32xbf16>
    %63 = vector.shape_cast %62 : vector<1x32x32xbf16> to vector<32x32xbf16>
    %cst_63 = arith.constant dense<0.000000e+00> : vector<256x32xf32>
    %64 = tpu.matmul %61, %63, %cst_63 {dimension_numbers = #tpu.dot_dimension_numbers<[1], [0], [0], [1], [0, 0, 1, 1], [], []>} : vector<256x32xbf16>, vector<32x32xbf16>, vector<256x32xf32> -> vector<256x32xf32>
    %65 = arith.addf %60, %64 : vector<256x32xf32>
    %c32 = arith.constant 32 : index
    %c0_64 = arith.constant 0 : index
    %66 = vector.load %arg12[%c32, %c0_64] : memref<288x32xbf16, #tpu.memory_space<vmem>>, vector<256x32xbf16>
    %c6 = arith.constant 6 : index
    %c0_65 = arith.constant 0 : index
    %c0_66 = arith.constant 0 : index
    %67 = vector.load %arg4[%c6, %c0_65, %c0_66] : memref<9x32x32xbf16, #tpu.memory_space<vmem>>, vector<1x32x32xbf16>
    %68 = vector.shape_cast %67 : vector<1x32x32xbf16> to vector<32x32xbf16>
    %cst_67 = arith.constant dense<0.000000e+00> : vector<256x32xf32>
    %69 = tpu.matmul %66, %68, %cst_67 {dimension_numbers = #tpu.dot_dimension_numbers<[1], [0], [0], [1], [0, 0, 1, 1], [], []>} : vector<256x32xbf16>, vector<32x32xbf16>, vector<256x32xf32> -> vector<256x32xf32>
    %70 = arith.addf %65, %69 : vector<256x32xf32>
    %c32_68 = arith.constant 32 : index
    %c0_69 = arith.constant 0 : index
    %71 = vector.load %arg11[%c32_68, %c0_69] : memref<288x32xbf16, #tpu.memory_space<vmem>>, vector<256x32xbf16>
    %c7 = arith.constant 7 : index
    %c0_70 = arith.constant 0 : index
    %c0_71 = arith.constant 0 : index
    %72 = vector.load %arg4[%c7, %c0_70, %c0_71] : memref<9x32x32xbf16, #tpu.memory_space<vmem>>, vector<1x32x32xbf16>
    %73 = vector.shape_cast %72 : vector<1x32x32xbf16> to vector<32x32xbf16>
    %cst_72 = arith.constant dense<0.000000e+00> : vector<256x32xf32>
    %74 = tpu.matmul %71, %73, %cst_72 {dimension_numbers = #tpu.dot_dimension_numbers<[1], [0], [0], [1], [0, 0, 1, 1], [], []>} : vector<256x32xbf16>, vector<32x32xbf16>, vector<256x32xf32> -> vector<256x32xf32>
    %75 = arith.addf %70, %74 : vector<256x32xf32>
    %c32_73 = arith.constant 32 : index
    %c0_74 = arith.constant 0 : index
    %76 = vector.load %arg13[%c32_73, %c0_74] : memref<288x32xbf16, #tpu.memory_space<vmem>>, vector<256x32xbf16>
    %c8 = arith.constant 8 : index
    %c0_75 = arith.constant 0 : index
    %c0_76 = arith.constant 0 : index
    %77 = vector.load %arg4[%c8, %c0_75, %c0_76] : memref<9x32x32xbf16, #tpu.memory_space<vmem>>, vector<1x32x32xbf16>
    %78 = vector.shape_cast %77 : vector<1x32x32xbf16> to vector<32x32xbf16>
    %cst_77 = arith.constant dense<0.000000e+00> : vector<256x32xf32>
    %79 = tpu.matmul %76, %78, %cst_77 {dimension_numbers = #tpu.dot_dimension_numbers<[1], [0], [0], [1], [0, 0, 1, 1], [], []>} : vector<256x32xbf16>, vector<32x32xbf16>, vector<256x32xf32> -> vector<256x32xf32>
    %80 = arith.addf %75, %79 : vector<256x32xf32>
    %cst_78 = arith.constant 1.000000e+00 : f32
    %81 = vector.broadcast %cst_78 : f32 to vector<256x32xf32>
    %82 = arith.cmpf oge, %80, %81 : vector<256x32xf32>
    %83 = arith.extui %82 : vector<256x32xi1> to vector<256x32xi32>
    %84 = arith.sitofp %83 : vector<256x32xi32> to vector<256x32xf32>
    %85 = arith.truncf %84 : vector<256x32xf32> to vector<256x32xbf16>
    %c0_79 = arith.constant 0 : index
    %c0_80 = arith.constant 0 : index
    %86 = vector.load %arg6[%c0_79, %c0_80] : memref<32x128xbf16, #tpu.memory_space<vmem>>, vector<32x128xbf16>
    %cst_81 = arith.constant dense<0.000000e+00> : vector<256x128xf32>
    %87 = tpu.matmul %85, %86, %cst_81 {dimension_numbers = #tpu.dot_dimension_numbers<[1], [0], [0], [1], [0, 0, 1, 1], [], []>} : vector<256x32xbf16>, vector<32x128xbf16>, vector<256x128xf32> -> vector<256x128xf32>
    %c0_82 = arith.constant 0 : index
    %c0_83 = arith.constant 0 : index
    %88 = vector.load %arg7[%c0_82, %c0_83] : memref<1x128xf32, #tpu.memory_space<vmem>>, vector<1x128xf32>
    %89 = vector.broadcast %88 : vector<1x128xf32> to vector<256x128xf32>
    %90 = arith.addf %87, %89 : vector<256x128xf32>
    %cst_84 = arith.constant 5.000000e-01 : f32
    %91 = vector.broadcast %cst_84 : f32 to vector<256x128xf32>
    %92 = arith.mulf %90, %91 : vector<256x128xf32>
    %c0_85 = arith.constant 0 : index
    %c0_86 = arith.constant 0 : index
    %c0_87 = arith.constant 0 : index
    %93 = vector.load %arg1[%c0_85, %c0_86, %c0_87] : memref<1x256x128xf32, #tpu.memory_space<vmem>>, vector<1x256x128xf32>
    %94 = vector.shape_cast %93 : vector<1x256x128xf32> to vector<256x128xf32>
    %95 = arith.addf %92, %94 : vector<256x128xf32>
    %c0_88 = arith.constant 0 : index
    %c0_89 = arith.constant 0 : index
    %c0_90 = arith.constant 0 : index
    %96 = vector.load %arg10[%c0_88, %c0_89, %c0_90] : memref<1x256x128xf32, #tpu.memory_space<vmem>>, vector<1x256x128xf32>
    %97 = vector.shape_cast %96 : vector<1x256x128xf32> to vector<256x128xf32>
    %98 = vector.shape_cast %95 : vector<256x128xf32> to vector<1x256x128xf32>
    tpu.vector_store %arg10[%c0_88, %c0_89, %c0_90], %98 {strides = array<i32>} : memref<1x256x128xf32, #tpu.memory_space<vmem>>, vector<1x256x128xf32>,
    return
  }
  func.func @transform_0(%arg0: i32) -> (i32, i32, i32) {
    %c0_i32 = arith.constant 0 : i32
    %c0_i32_0 = arith.constant 0 : i32
    %c0_i32_1 = arith.constant 0 : i32
    return %arg0, %c0_i32, %c0_i32_0 : i32, i32, i32
  }
  func.func @transform_1(%arg0: i32) -> (i32, i32) {
    %c0_i32 = arith.constant 0 : i32
    %c0_i32_0 = arith.constant 0 : i32
    %c0_i32_1 = arith.constant 0 : i32
    return %c0_i32, %c0_i32_0 : i32, i32
  }
  func.func @transform_2(%arg0: i32) -> (i32, i32) {
    %c0_i32 = arith.constant 0 : i32
    %c0_i32_0 = arith.constant 0 : i32
    %c0_i32_1 = arith.constant 0 : i32
    return %c0_i32, %c0_i32_0 : i32, i32
  }
  func.func @transform_3(%arg0: i32) -> (i32, i32, i32) {
    %c0_i32 = arith.constant 0 : i32
    %c0_i32_0 = arith.constant 0 : i32
    %c0_i32_1 = arith.constant 0 : i32
    %c0_i32_2 = arith.constant 0 : i32
    return %c0_i32, %c0_i32_0, %c0_i32_1 : i32, i32, i32
  }
  func.func @transform_4(%arg0: i32) -> (i32, i32) {
    %c0_i32 = arith.constant 0 : i32
    %c0_i32_0 = arith.constant 0 : i32
    %c0_i32_1 = arith.constant 0 : i32
    return %c0_i32, %c0_i32_0 : i32, i32
  }
  func.func @transform_5(%arg0: i32) -> (i32, i32) {
    %c0_i32 = arith.constant 0 : i32
    %c0_i32_0 = arith.constant 0 : i32
    %c0_i32_1 = arith.constant 0 : i32
    return %c0_i32, %c0_i32_0 : i32, i32
  }
  func.func @transform_6(%arg0: i32) -> (i32, i32) {
    %c0_i32 = arith.constant 0 : i32
    %c0_i32_0 = arith.constant 0 : i32
    %c0_i32_1 = arith.constant 0 : i32
    return %c0_i32, %c0_i32_0 : i32, i32
  }
  func.func @transform_7(%arg0: i32) -> (i32, i32) {
    %c0_i32 = arith.constant 0 : i32
    %c0_i32_0 = arith.constant 0 : i32
    %c0_i32_1 = arith.constant 0 : i32
    return %c0_i32, %c0_i32_0 : i32, i32
  }
  func.func @transform_8(%arg0: i32) -> (i32, i32) {
    %c0_i32 = arith.constant 0 : i32
    %c0_i32_0 = arith.constant 0 : i32
    %c0_i32_1 = arith.constant 0 : i32
    return %c0_i32, %c0_i32_0 : i32, i32
  }
  func.func @transform_9(%arg0: i32) -> (i32, i32, i32) {
    %c0_i32 = arith.constant 0 : i32
    %c0_i32_0 = arith.constant 0 : i32
    %c0_i32_1 = arith.constant 0 : i32
    return %arg0, %c0_i32, %c0_i32_0 : i32, i32, i32
  }
}

</mosaic_0001>

<llo_original>
// kernel: tpu_custom_call.1
$region0: #{tpu_custom_call.1}
  #allocation0 [shape = 'u32[]', space=smem, size = 0x4, offset = 0x4, fixed_abs, tag = 'smem constant byte address 0x4 - core index']
  #allocation1 [shape = 'u32[144,128]{1,0:T(1,128)}', space=vmem, size = 0x12000, scoped, tag = 'internal scratch']
  #allocation2 [shape = 'bf16[288,32]{1,0:T(16,128)(2,1)}', space=vmem, size = 0x12000, scoped, tag = 'scratch operand']
  #allocation3 [shape = 'bf16[288,32]{1,0:T(16,128)(2,1)}', space=vmem, size = 0x12000, scoped, tag = 'scratch operand']
  #allocation4 [shape = 'bf16[288,32]{1,0:T(16,128)(2,1)}', space=vmem, size = 0x12000, scoped, tag = 'scratch operand']
  %s0 = inlined_call_operand.hbm [shape: f32[2,256,128], index: 0, kind: input, shape index: {}]
  %s1 = inlined_call_operand.vmem [shape: bf16[128,32], index: 1, kind: input, shape index: {}]
  %s2 = inlined_call_operand.vmem [shape: f32[1,32], index: 2, kind: input, shape index: {}]
  %s3 = inlined_call_operand.vmem [shape: bf16[9,32,32], index: 3, kind: input, shape index: {}]
  %s4 = inlined_call_operand.vmem [shape: f32[1,32], index: 4, kind: input, shape index: {}]
  %s5 = inlined_call_operand.vmem [shape: bf16[32,128], index: 5, kind: input, shape index: {}]
  %s6 = inlined_call_operand.vmem [shape: f32[1,128], index: 6, kind: input, shape index: {}]
  %s7 = inlined_call_operand.vmem [shape: bf16[256,32], index: 7, kind: input, shape index: {}]
  %s8 = inlined_call_operand.vmem [shape: bf16[256,32], index: 8, kind: input, shape index: {}]
  %s9 = inlined_call_operand.hbm [shape: f32[2,256,128], index: 9, kind: output, shape index: {}]
  %s10 = sld [smem:[#allocation0]]
  $region73: #{tpu_custom_call.1} parent=0
    _
  %s12 = ssub.s32 1, %s10
  %s13 = scalar_select 0, %s12, %s10
  $region1: #{tpu_custom_call.1} parent=0
    #allocation5 [shape = 'u8[262144]{0}', space=vmem, size = 0x40000, scoped, tag = 'input window, operand 0']
    #allocation6 [shape = 's32[2]{0}', space=sflag, size = 0x8, scoped, tag = 'scoped memory for tpu_custom_call.1']
    #allocation7 [shape = 's32[2]{0}', space=sflag, size = 0x8, scoped, tag = 'scoped memory for tpu_custom_call.1']
    #allocation8 [shape = 'u8[262144]{0}', space=vmem, size = 0x40000, scoped, tag = 'output window, operand 0']
    %14 = vsyncpa [#allocation6], 0
    %s15 = scalar_lea.sflag [#allocation6], 1
    %16 = vsyncpa %s15, 0
    %17 = vsyncpa [#allocation7], 0
    %s18 = scalar_lea.sflag [#allocation7], 1
    %19 = vsyncpa %s18, 0
    loop: start=0, step=1, limit=4
    $region2: #{tpu_custom_call.1} parent=1 // loop_pre_header
      _
    $region3: #{tpu_custom_call.1} parent=1 // loop_header
      %s21 = sphi 0, %s25
      %p22 = scmp.ge.s32.totalorder %s21, 4
      %s31 = sphi 0, %s33
      %s34 = sphi 0, %s31
      %s35 = sphi 0, %s34
      %s51 = sphi 0, %s35
      %s55 = sphi 0, %s55
      %s57 = sphi 0, %s55
      %s58 = sphi 0, %s57
      %s72 = sphi 0, %s58
      %s76 = sphi 0, %s76
      %s78 = sphi 0, %s76
      %s79 = sphi 0, %s78
      %s93 = sphi 0, %s79
      %s97 = sphi 0, %s97
      %s99 = sphi 0, %s97
      %s100 = sphi 0, %s99
      %s114 = sphi 0, %s100
      %s118 = sphi 0, %s118
      %s120 = sphi 0, %s118
      %s121 = sphi 0, %s120
      %s135 = sphi 0, %s121
      %s139 = sphi 0, %s139
      %s141 = sphi 0, %s139
      %s142 = sphi 0, %s141
      %s156 = sphi 0, %s142
      %s160 = sphi 0, %s160
      %s162 = sphi 0, %s160
      %s163 = sphi 0, %s162
      %s177 = sphi 0, %s163
      %s181 = sphi 0, %s181
      %s183 = sphi 0, %s181
      %s184 = sphi 0, %s183
      %s198 = sphi 0, %s184
      %s202 = sphi 0, %s202
      %s204 = sphi 0, %s202
      %s205 = sphi 0, %s204
      %s219 = sphi 0, %s205
      %s225 = sphi 0, %s227
      %s228 = sphi 0, %s225
      %s229 = sphi 0, %s228
      %s245 = sphi 0, %s229
    $region4: #{tpu_custom_call.1} parent=1 // loop_header_branch
      %24 = sbr.rel (%p22) target = $region8
    $region5: #{tpu_custom_call.1} parent=1 // loop_body
      %s26 = ssub.s32 %s21, 1
      %s27 = ssub.s32 %s21, 2
      %s28 = sadd.s32 %s21, 1
      %s29 = ssub.s32 %s21, %s28
      %p30 = scmp.eq.s32.totalorder %s29, 0
      %s32 = sadd.s32 %s31, 1
      %s33 = scalar_select %p30, %s31, %s32
      %p36 = pneg %p30
      %p37 = scmp.eq.s32.totalorder %s21, 1
      %p38 = por %p36, %p37
      %p39 = scmp.ne.s32.totalorder %s31, %s34
      %p40 = scmp.eq.s32.totalorder %s21, 0
      %p41 = por %p39, %p40
      %p42 = scmp.ne.s32.totalorder %s31, %s34
      %p43 = scmp.eq.s32.totalorder %s26, 1
      %p44 = por %p42, %p43
      %p45 = scmp.ne.s32.totalorder %s34, %s35
      %p46 = scmp.eq.s32.totalorder %s26, 0
      %p47 = por %p45, %p46
      %p48 = scmp.ne.s32.totalorder %s34, %s35
      %p49 = scmp.eq.s32.totalorder %s27, 1
      %p50 = por %p48, %p49
      %p52 = scmp.ne.s32.totalorder %s35, %s51
      %p53 = scmp.eq.s32.totalorder %s27, 0
      %p54 = por %p52, %p53
      %s56 = sadd.s32 %s55, 1
      %p59 = scmp.eq.s32.totalorder %s21, 1
      %p60 = scmp.ne.s32.totalorder %s55, %s57
      %p61 = scmp.eq.s32.totalorder %s21, 0
      %p62 = por %p60, %p61
      %p63 = scmp.ne.s32.totalorder %s55, %s57
      %p64 = scmp.eq.s32.totalorder %s26, 1
      %p65 = por %p63, %p64
      %p66 = scmp.ne.s32.totalorder %s57, %s58
      %p67 = scmp.eq.s32.totalorder %s26, 0
      %p68 = por %p66, %p67
      %p69 = scmp.ne.s32.totalorder %s57, %s58
      %p70 = scmp.eq.s32.totalorder %s27, 1
      %p71 = por %p69, %p70
      %p73 = scmp.ne.s32.totalorder %s58, %s72
      %p74 = scmp.eq.s32.totalorder %s27, 0
      %p75 = por %p73, %p74
      %s77 = sadd.s32 %s76, 1
      %p80 = scmp.eq.s32.totalorder %s21, 1
      %p81 = scmp.ne.s32.totalorder %s76, %s78
      %p82 = scmp.eq.s32.totalorder %s21, 0
      %p83 = por %p81, %p82
      %p84 = scmp.ne.s32.totalorder %s76, %s78
      %p85 = scmp.eq.s32.totalorder %s26, 1
      %p86 = por %p84, %p85
      %p87 = scmp.ne.s32.totalorder %s78, %s79
      %p88 = scmp.eq.s32.totalorder %s26, 0
      %p89 = por %p87, %p88
      %p90 = scmp.ne.s32.totalorder %s78, %s79
      %p91 = scmp.eq.s32.totalorder %s27, 1
      %p92 = por %p90, %p91
      %p94 = scmp.ne.s32.totalorder %s79, %s93
      %p95 = scmp.eq.s32.totalorder %s27, 0
      %p96 = por %p94, %p95
      %s98 = sadd.s32 %s97, 1
      %p101 = scmp.eq.s32.totalorder %s21, 1
      %p102 = scmp.ne.s32.totalorder %s97, %s99
      %p103 = scmp.eq.s32.totalorder %s21, 0
      %p104 = por %p102, %p103
      %p105 = scmp.ne.s32.totalorder %s97, %s99
      %p106 = scmp.eq.s32.totalorder %s26, 1
      %p107 = por %p105, %p106
      %p108 = scmp.ne.s32.totalorder %s99, %s100
      %p109 = scmp.eq.s32.totalorder %s26, 0
      %p110 = por %p108, %p109
      %p111 = scmp.ne.s32.totalorder %s99, %s100
      %p112 = scmp.eq.s32.totalorder %s27, 1
      %p113 = por %p111, %p112
      %p115 = scmp.ne.s32.totalorder %s100, %s114
      %p116 = scmp.eq.s32.totalorder %s27, 0
      %p117 = por %p115, %p116
      %s119 = sadd.s32 %s118, 1
      %p122 = scmp.eq.s32.totalorder %s21, 1
      %p123 = scmp.ne.s32.totalorder %s118, %s120
      %p124 = scmp.eq.s32.totalorder %s21, 0
      %p125 = por %p123, %p124
      %p126 = scmp.ne.s32.totalorder %s118, %s120
      %p127 = scmp.eq.s32.totalorder %s26, 1
      %p128 = por %p126, %p127
      %p129 = scmp.ne.s32.totalorder %s120, %s121
      %p130 = scmp.eq.s32.totalorder %s26, 0
      %p131 = por %p129, %p130
      %p132 = scmp.ne.s32.totalorder %s120, %s121
      %p133 = scmp.eq.s32.totalorder %s27, 1
      %p134 = por %p132, %p133
      %p136 = scmp.ne.s32.totalorder %s121, %s135
      %p137 = scmp.eq.s32.totalorder %s27, 0
      %p138 = por %p136, %p137
      %s140 = sadd.s32 %s139, 1
      %p143 = scmp.eq.s32.totalorder %s21, 1
      %p144 = scmp.ne.s32.totalorder %s139, %s141
      %p145 = scmp.eq.s32.totalorder %s21, 0
      %p146 = por %p144, %p145
      %p147 = scmp.ne.s32.totalorder %s139, %s141
      %p148 = scmp.eq.s32.totalorder %s26, 1
      %p149 = por %p147, %p148
      %p150 = scmp.ne.s32.totalorder %s141, %s142
      %p151 = scmp.eq.s32.totalorder %s26, 0
      %p152 = por %p150, %p151
      %p153 = scmp.ne.s32.totalorder %s141, %s142
      %p154 = scmp.eq.s32.totalorder %s27, 1
      %p155 = por %p153, %p154
      %p157 = scmp.ne.s32.totalorder %s142, %s156
      %p158 = scmp.eq.s32.totalorder %s27, 0
      %p159 = por %p157, %p158
      %s161 = sadd.s32 %s160, 1
      %p164 = scmp.eq.s32.totalorder %s21, 1
      %p165 = scmp.ne.s32.totalorder %s160, %s162
      %p166 = scmp.eq.s32.totalorder %s21, 0
      %p167 = por %p165, %p166
      %p168 = scmp.ne.s32.totalorder %s160, %s162
      %p169 = scmp.eq.s32.totalorder %s26, 1
      %p170 = por %p168, %p169
      %p171 = scmp.ne.s32.totalorder %s162, %s163
      %p172 = scmp.eq.s32.totalorder %s26, 0
      %p173 = por %p171, %p172
      %p174 = scmp.ne.s32.totalorder %s162, %s163
      %p175 = scmp.eq.s32.totalorder %s27, 1
      %p176 = por %p174, %p175
      %p178 = scmp.ne.s32.totalorder %s163, %s177
      %p179 = scmp.eq.s32.totalorder %s27, 0
      %p180 = por %p178, %p179
      %s182 = sadd.s32 %s181, 1
      %p185 = scmp.eq.s32.totalorder %s21, 1
      %p186 = scmp.ne.s32.totalorder %s181, %s183
      %p187 = scmp.eq.s32.totalorder %s21, 0
      %p188 = por %p186, %p187
      %p189 = scmp.ne.s32.totalorder %s181, %s183
      %p190 = scmp.eq.s32.totalorder %s26, 1
      %p191 = por %p189, %p190
      %p192 = scmp.ne.s32.totalorder %s183, %s184
      %p193 = scmp.eq.s32.totalorder %s26, 0
      %p194 = por %p192, %p193
      %p195 = scmp.ne.s32.totalorder %s183, %s184
      %p196 = scmp.eq.s32.totalorder %s27, 1
      %p197 = por %p195, %p196
      %p199 = scmp.ne.s32.totalorder %s184, %s198
      %p200 = scmp.eq.s32.totalorder %s27, 0
      %p201 = por %p199, %p200
      %s203 = sadd.s32 %s202, 1
      %p206 = scmp.eq.s32.totalorder %s21, 1
      %p207 = scmp.ne.s32.totalorder %s202, %s204
      %p208 = scmp.eq.s32.totalorder %s21, 0
      %p209 = por %p207, %p208
      %p210 = scmp.ne.s32.totalorder %s202, %s204
      %p211 = scmp.eq.s32.totalorder %s26, 1
      %p212 = por %p210, %p211
      %p213 = scmp.ne.s32.totalorder %s204, %s205
      %p214 = scmp.eq.s32.totalorder %s26, 0
      %p215 = por %p213, %p214
      %p216 = scmp.ne.s32.totalorder %s204, %s205
      %p217 = scmp.eq.s32.totalorder %s27, 1
      %p218 = por %p216, %p217
      %p220 = scmp.ne.s32.totalorder %s205, %s219
      %p221 = scmp.eq.s32.totalorder %s27, 0
      %p222 = por %p220, %p221
      %s223 = ssub.s32 %s21, %s28
      %p224 = scmp.eq.s32.totalorder %s223, 0
      %s226 = sadd.s32 %s225, 1
      %s227 = scalar_select %p224, %s225, %s226
      %p230 = pneg %p224
      %p231 = scmp.eq.s32.totalorder %s21, 1
      %p232 = por %p230, %p231
      %p233 = scmp.ne.s32.totalorder %s225, %s228
      %p234 = scmp.eq.s32.totalorder %s21, 0
      %p235 = por %p233, %p234
      %p236 = scmp.ne.s32.totalorder %s225, %s228
      %p237 = scmp.eq.s32.totalorder %s26, 1
      %p238 = por %p236, %p237
      %p239 = scmp.ne.s32.totalorder %s228, %s229
      %p240 = scmp.eq.s32.totalorder %s26, 0
      %p241 = por %p239, %p240
      %p242 = scmp.ne.s32.totalorder %s228, %s229
      %p243 = scmp.eq.s32.totalorder %s27, 1
      %p244 = por %p242, %p243
      %p246 = scmp.ne.s32.totalorder %s229, %s245
      %p247 = scmp.eq.s32.totalorder %s27, 0
      %p248 = por %p246, %p247
      %p249 = scmp.le.s32.totalorder 1, %s21
      %p250 = scmp.lt.s32.totalorder %s21, 3
      %p251 = pnand %p249, %p250
      %p252 = pneg %p251
      // Predicated region
      $region9: #{tpu_custom_call.1} parent=5 // pred_check
        _
      $region10: #{tpu_custom_call.1} parent=5 // pred_check_branch
        %254 = sbr.rel (%p251) target = $region12
      $region11: #{tpu_custom_call.1} parent=5 // pred_region
        %s255 = ssub.s32 %s21, 1
        // Predicated region
        $region13: #{tpu_custom_call.1} parent=11 // pred_check
          %p256 = pneg %p68
        $region14: #{tpu_custom_call.1} parent=11 // pred_check_branch
          %258 = sbr.rel (%p256) target = $region16
        $region15: #{tpu_custom_call.1} parent=11 // pred_region
          _
        $region16: #{tpu_custom_call.1} parent=11 // pred_fallthru
          _
        // Predicated region
        $region17: #{tpu_custom_call.1} parent=11 // pred_check
          %p259 = pneg %p89
        $region18: #{tpu_custom_call.1} parent=11 // pred_check_branch
          %261 = sbr.rel (%p259) target = $region20
        $region19: #{tpu_custom_call.1} parent=11 // pred_region
          _
        $region20: #{tpu_custom_call.1} parent=11 // pred_fallthru
          _
        // Predicated region
        $region21: #{tpu_custom_call.1} parent=11 // pred_check
          %p262 = pneg %p110
        $region22: #{tpu_custom_call.1} parent=11 // pred_check_branch
          %264 = sbr.rel (%p262) target = $region24
        $region23: #{tpu_custom_call.1} parent=11 // pred_region
          _
        $region24: #{tpu_custom_call.1} parent=11 // pred_fallthru
          _
        // Predicated region
        $region25: #{tpu_custom_call.1} parent=11 // pred_check
          %p265 = pneg %p131
        $region26: #{tpu_custom_call.1} parent=11 // pred_check_branch
          %267 = sbr.rel (%p265) target = $region28
        $region27: #{tpu_custom_call.1} parent=11 // pred_region
          _
        $region28: #{tpu_custom_call.1} parent=11 // pred_fallthru
          _
        // Predicated region
        $region29: #{tpu_custom_call.1} parent=11 // pred_check
          %p268 = pneg %p152
        $region30: #{tpu_custom_call.1} parent=11 // pred_check_branch
          %270 = sbr.rel (%p268) target = $region32
        $region31: #{tpu_custom_call.1} parent=11 // pred_region
          _
        $region32: #{tpu_custom_call.1} parent=11 // pred_fallthru
          _
        // Predicated region
        $region33: #{tpu_custom_call.1} parent=11 // pred_check
          %p271 = pneg %p173
        $region34: #{tpu_custom_call.1} parent=11 // pred_check_branch
          %273 = sbr.rel (%p271) target = $region36
        $region35: #{tpu_custom_call.1} parent=11 // pred_region
          _
        $region36: #{tpu_custom_call.1} parent=11 // pred_fallthru
          _
        // Predicated region
        $region37: #{tpu_custom_call.1} parent=11 // pred_check
          %p274 = pneg %p194
        $region38: #{tpu_custom_call.1} parent=11 // pred_check_branch
          %276 = sbr.rel (%p274) target = $region40
        $region39: #{tpu_custom_call.1} parent=11 // pred_region
          _
        $region40: #{tpu_custom_call.1} parent=11 // pred_fallthru
          _
        // Predicated region
        $region41: #{tpu_custom_call.1} parent=11 // pred_check
          %p277 = pneg %p215
        $region42: #{tpu_custom_call.1} parent=11 // pred_check_branch
          %279 = sbr.rel (%p277) target = $region44
        $region43: #{tpu_custom_call.1} parent=11 // pred_region
          _
        $region44: #{tpu_custom_call.1} parent=11 // pred_fallthru
          _
      $region12: #{tpu_custom_call.1} parent=5 // pred_fallthru
        _
      %p280 = scmp.lt.s32.totalorder %s21, 2
      // Predicated region
      $region45: #{tpu_custom_call.1} parent=5 // pred_check
        %p281 = pneg %p280
      $region46: #{tpu_custom_call.1} parent=5 // pred_check_branch
        %283 = sbr.rel (%p281) target = $region48
      $region47: #{tpu_custom_call.1} parent=5 // pred_region
        // Predicated region
        $region49: #{tpu_custom_call.1} parent=47 // pred_check
          %p284 = pneg %p41
        $region50: #{tpu_custom_call.1} parent=47 // pred_check_branch
          %286 = sbr.rel (%p284) target = $region52
        $region51: #{tpu_custom_call.1} parent=47 // pred_region
          %s287 = sand.u32 %s31, 1
          %s288 = scalar_lea.sflag [#allocation6], %s287
          %s289 = sand.u32 %s31, 1
          %s290 = smul.addr %s289, 256
          %s291 = scalar_lea.vmem [#allocation5], %s290
          %s293 = ssub.s32 4096, 4096
          %294 = vsyncadd %s288, %s293
          %s295 = smul.addr %s21, 32
          %s296 = smul.addr %s295, 128
          %s297 = scalar_lea.hbm %s0, %s296
          %s298 = sshll.u32 %s291, 4
          %s299 = int_to_ptr.vmem [resolvable:$true] %s298
          %304 = dma.hbm_to_vmem [thread:$0]  %s297, 4096, %s299, %s288, 128, 128, 8
        $region52: #{tpu_custom_call.1} parent=47 // pred_fallthru
          _
      $region48: #{tpu_custom_call.1} parent=5 // pred_fallthru
        _
      %p305 = scmp.le.s32.totalorder 1, %s21
      %p306 = scmp.lt.s32.totalorder %s21, 3
      %p307 = pnand %p305, %p306
      %p308 = pneg %p307
      // Predicated region
      $region53: #{tpu_custom_call.1} parent=5 // pred_check
        _
      $region54: #{tpu_custom_call.1} parent=5 // pred_check_branch
        %310 = sbr.rel (%p307) target = $region56
      $region55: #{tpu_custom_call.1} parent=5 // pred_region
        %s311 = ssub.s32 %s21, 1
        %s312 = sand.u32 %s34, 1
        %s313 = scalar_lea.sflag [#allocation6], %s312
        %s314 = sand.u32 %s34, 1
        %s315 = smul.addr %s314, 256
        %s316 = scalar_lea.vmem [#allocation5], %s315
        // Predicated region
        $region57: #{tpu_custom_call.1} parent=55 // pred_check
          %p317 = pneg %p47
        $region58: #{tpu_custom_call.1} parent=55 // pred_check_branch
          %319 = sbr.rel (%p317) target = $region60
        $region59: #{tpu_custom_call.1} parent=55 // pred_region
          %320 = dma.done %s313, 4096
        $region60: #{tpu_custom_call.1} parent=55 // pred_fallthru
          _
        %s321 = sand.u32 %s34, 1
        %s322 = scalar_lea.sflag [#allocation6], %s321
        %s323 = sand.u32 %s34, 1
        %s324 = smul.addr %s323, 256
        %s325 = scalar_lea.vmem [#allocation5], %s324
        %p326 = pneg %p47
        %p327 = pneg %p44
        %p328 = pneg %p68
        %p329 = pneg %p65
        %p330 = pneg %p89
        %p331 = pneg %p86
        %p332 = pneg %p110
        %p333 = pneg %p107
        %p334 = pneg %p131
        %p335 = pneg %p128
        %p336 = pneg %p152
        %p337 = pneg %p149
        %p338 = pneg %p173
        %p339 = pneg %p170
        %p340 = pneg %p194
        %p341 = pneg %p191
        %p342 = pneg %p215
        %p343 = pneg %p212
        %p344 = pneg %p241
        %p345 = pneg %p238
        %s346 = sand.u32 %s228, 1
        %s347 = scalar_lea.sflag [#allocation7], %s346
        %s348 = sand.u32 %s228, 1
        %s349 = smul.addr %s348, 256
        %s350 = scalar_lea.vmem [#allocation8], %s349
        %v352 = vld [vmem:[%s316] sm:$0xff]
        %v353 = vld [vmem:[%s316 + $0x8] sm:$0xff]
        %v354 = vld [vmem:[%s316 + $0x10] sm:$0xff]
        %v355 = vld [vmem:[%s316 + $0x18] sm:$0xff]
        %v356 = vld [vmem:[%s316 + $0x20] sm:$0xff]
        %v357 = vld [vmem:[%s316 + $0x28] sm:$0xff]
        %v358 = vld [vmem:[%s316 + $0x30] sm:$0xff]
        %v359 = vld [vmem:[%s316 + $0x38] sm:$0xff]
        %v360 = vld [vmem:[%s316 + $0x40] sm:$0xff]
        %v361 = vld [vmem:[%s316 + $0x48] sm:$0xff]
        %v362 = vld [vmem:[%s316 + $0x50] sm:$0xff]
        %v363 = vld [vmem:[%s316 + $0x58] sm:$0xff]
        %v364 = vld [vmem:[%s316 + $0x60] sm:$0xff]
        %v365 = vld [vmem:[%s316 + $0x68] sm:$0xff]
        %v366 = vld [vmem:[%s316 + $0x70] sm:$0xff]
        %v367 = vld [vmem:[%s316 + $0x78] sm:$0xff]
        %v368 = vld [vmem:[%s316 + $0x80] sm:$0xff]
        %v369 = vld [vmem:[%s316 + $0x88] sm:$0xff]
        %v370 = vld [vmem:[%s316 + $0x90] sm:$0xff]
        %v371 = vld [vmem:[%s316 + $0x98] sm:$0xff]
        %v372 = vld [vmem:[%s316 + $0xa0] sm:$0xff]
        %v373 = vld [vmem:[%s316 + $0xa8] sm:$0xff]
        %v374 = vld [vmem:[%s316 + $0xb0] sm:$0xff]
        %v375 = vld [vmem:[%s316 + $0xb8] sm:$0xff]
        %v376 = vld [vmem:[%s316 + $0xc0] sm:$0xff]
        %v377 = vld [vmem:[%s316 + $0xc8] sm:$0xff]
        %v378 = vld [vmem:[%s316 + $0xd0] sm:$0xff]
        %v379 = vld [vmem:[%s316 + $0xd8] sm:$0xff]
        %v380 = vld [vmem:[%s316 + $0xe0] sm:$0xff]
        %v381 = vld [vmem:[%s316 + $0xe8] sm:$0xff]
        %v382 = vld [vmem:[%s316 + $0xf0] sm:$0xff]
        %v383 = vld [vmem:[%s316 + $0xf8] sm:$0xff]
        %vm384 = vcmp.ge.f32.partialorder %v352, 2.0
        %vm385 = vcmp.ge.f32.partialorder %v353, 2.0
        %vm386 = vcmp.ge.f32.partialorder %v354, 2.0
        %vm387 = vcmp.ge.f32.partialorder %v355, 2.0
        %vm388 = vcmp.ge.f32.partialorder %v356, 2.0
        %vm389 = vcmp.ge.f32.partialorder %v357, 2.0
        %vm390 = vcmp.ge.f32.partialorder %v358, 2.0
        %vm391 = vcmp.ge.f32.partialorder %v359, 2.0
        %vm392 = vcmp.ge.f32.partialorder %v360, 2.0
        %vm393 = vcmp.ge.f32.partialorder %v361, 2.0
        %vm394 = vcmp.ge.f32.partialorder %v362, 2.0
        %vm395 = vcmp.ge.f32.partialorder %v363, 2.0
        %vm396 = vcmp.ge.f32.partialorder %v364, 2.0
        %vm397 = vcmp.ge.f32.partialorder %v365, 2.0
        %vm398 = vcmp.ge.f32.partialorder %v366, 2.0
        %vm399 = vcmp.ge.f32.partialorder %v367, 2.0
        %vm400 = vcmp.ge.f32.partialorder %v368, 2.0
        %vm401 = vcmp.ge.f32.partialorder %v369, 2.0
        %vm402 = vcmp.ge.f32.partialorder %v370, 2.0
        %vm403 = vcmp.ge.f32.partialorder %v371, 2.0
        %vm404 = vcmp.ge.f32.partialorder %v372, 2.0
        %vm405 = vcmp.ge.f32.partialorder %v373, 2.0
        %vm406 = vcmp.ge.f32.partialorder %v374, 2.0
        %vm407 = vcmp.ge.f32.partialorder %v375, 2.0
        %vm408 = vcmp.ge.f32.partialorder %v376, 2.0
        %vm409 = vcmp.ge.f32.partialorder %v377, 2.0
        %vm410 = vcmp.ge.f32.partialorder %v378, 2.0
        %vm411 = vcmp.ge.f32.partialorder %v379, 2.0
        %vm412 = vcmp.ge.f32.partialorder %v380, 2.0
        %vm413 = vcmp.ge.f32.partialorder %v381, 2.0
        %vm414 = vcmp.ge.f32.partialorder %v382, 2.0
        %vm415 = vcmp.ge.f32.partialorder %v383, 2.0
        %v416 = vsel %vm384, 1, 0
        %v417 = vsel %vm385, 1, 0
        %v418 = vsel %vm386, 1, 0
        %v419 = vsel %vm387, 1, 0
        %v420 = vsel %vm388, 1, 0
        %v421 = vsel %vm389, 1, 0
        %v422 = vsel %vm390, 1, 0
        %v423 = vsel %vm391, 1, 0
        %v424 = vsel %vm392, 1, 0
        %v425 = vsel %vm393, 1, 0
        %v426 = vsel %vm394, 1, 0
        %v427 = vsel %vm395, 1, 0
        %v428 = vsel %vm396, 1, 0
        %v429 = vsel %vm397, 1, 0
        %v430 = vsel %vm398, 1, 0
        %v431 = vsel %vm399, 1, 0
        %v432 = vsel %vm400, 1, 0
        %v433 = vsel %vm401, 1, 0
        %v434 = vsel %vm402, 1, 0
        %v435 = vsel %vm403, 1, 0
        %v436 = vsel %vm404, 1, 0
        %v437 = vsel %vm405, 1, 0
        %v438 = vsel %vm406, 1, 0
        %v439 = vsel %vm407, 1, 0
        %v440 = vsel %vm408, 1, 0
        %v441 = vsel %vm409, 1, 0
        %v442 = vsel %vm410, 1, 0
        %v443 = vsel %vm411, 1, 0
        %v444 = vsel %vm412, 1, 0
        %v445 = vsel %vm413, 1, 0
        %v446 = vsel %vm414, 1, 0
        %v447 = vsel %vm415, 1, 0
        %v448 = vcvt.s32.f32 %v416
        %v449 = vcvt.s32.f32 %v417
        %v450 = vcvt.s32.f32 %v418
        %v451 = vcvt.s32.f32 %v419
        %v452 = vcvt.s32.f32 %v420
        %v453 = vcvt.s32.f32 %v421
        %v454 = vcvt.s32.f32 %v422
        %v455 = vcvt.s32.f32 %v423
        %v456 = vcvt.s32.f32 %v424
        %v457 = vcvt.s32.f32 %v425
        %v458 = vcvt.s32.f32 %v426
        %v459 = vcvt.s32.f32 %v427
        %v460 = vcvt.s32.f32 %v428
        %v461 = vcvt.s32.f32 %v429
        %v462 = vcvt.s32.f32 %v430
        %v463 = vcvt.s32.f32 %v431
        %v464 = vcvt.s32.f32 %v432
        %v465 = vcvt.s32.f32 %v433
        %v466 = vcvt.s32.f32 %v434
        %v467 = vcvt.s32.f32 %v435
        %v468 = vcvt.s32.f32 %v436
        %v469 = vcvt.s32.f32 %v437
        %v470 = vcvt.s32.f32 %v438
        %v471 = vcvt.s32.f32 %v439
        %v472 = vcvt.s32.f32 %v440
        %v473 = vcvt.s32.f32 %v441
        %v474 = vcvt.s32.f32 %v442
        %v475 = vcvt.s32.f32 %v443
        %v476 = vcvt.s32.f32 %v444
        %v477 = vcvt.s32.f32 %v445
        %v478 = vcvt.s32.f32 %v446
        %v479 = vcvt.s32.f32 %v447
        %v480 = vpack.c.bf16 %v449, %v448
        %v481 = vpack.c.bf16 %v451, %v450
        %v482 = vpack.c.bf16 %v453, %v452
        %v483 = vpack.c.bf16 %v455, %v454
        %v484 = vpack.c.bf16 %v457, %v456
        %v485 = vpack.c.bf16 %v459, %v458
        %v486 = vpack.c.bf16 %v461, %v460
        %v487 = vpack.c.bf16 %v463, %v462
        %v488 = vpack.c.bf16 %v465, %v464
        %v489 = vpack.c.bf16 %v467, %v466
        %v490 = vpack.c.bf16 %v469, %v468
        %v491 = vpack.c.bf16 %v471, %v470
        %v492 = vpack.c.bf16 %v473, %v472
        %v493 = vpack.c.bf16 %v475, %v474
        %v494 = vpack.c.bf16 %v477, %v476
        %v495 = vpack.c.bf16 %v479, %v478
        %v496 = vld [vmem:[%s1] sm:$0xf]
        %v497 = vld [vmem:[%s1 + $0x4] sm:$0xf]
        %v498 = vld [vmem:[%s1 + $0x8] sm:$0xf]
        %v499 = vld [vmem:[%s1 + $0xc] sm:$0xf]
        %v500 = vld [vmem:[%s1 + $0x10] sm:$0xf]
        %v501 = vld [vmem:[%s1 + $0x14] sm:$0xf]
        %v502 = vld [vmem:[%s1 + $0x18] sm:$0xf]
        %v503 = vld [vmem:[%s1 + $0x1c] sm:$0xf]
        %v504 = vld [vmem:[%s1 + $0x20] sm:$0xf]
        %v505 = vld [vmem:[%s1 + $0x24] sm:$0xf]
        %v506 = vld [vmem:[%s1 + $0x28] sm:$0xf]
        %v507 = vld [vmem:[%s1 + $0x2c] sm:$0xf]
        %v508 = vld [vmem:[%s1 + $0x30] sm:$0xf]
        %v509 = vld [vmem:[%s1 + $0x34] sm:$0xf]
        %v510 = vld [vmem:[%s1 + $0x38] sm:$0xf]
        %v511 = vld [vmem:[%s1 + $0x3c] sm:$0xf]
        %v512 = vld [vmem:[%s2] sm:$0x1]
        %v514 = vlaneseq
        %v515 = vshrl.u32 %v514, 7
        %v516 = vsub.s32 0, %v515
        %v517 = vrot.slane %v512, %v516
        %v535 = vunpack.c.l.b16 %v496
        %v536 = vunpack.c.l.b16 %v497
        %v537 = vunpack.c.l.b16 %v498
        %v538 = vunpack.c.l.b16 %v499
        %v539 = vunpack.c.l.b16 %v500
        %v540 = vunpack.c.l.b16 %v501
        %v541 = vunpack.c.l.b16 %v502
        %v542 = vunpack.c.l.b16 %v503
        %v543 = vunpack.c.l.b16 %v504
        %v544 = vunpack.c.l.b16 %v505
        %v545 = vunpack.c.l.b16 %v506
        %v546 = vunpack.c.l.b16 %v507
        %v547 = vunpack.c.l.b16 %v508
        %v548 = vunpack.c.l.b16 %v509
        %v549 = vunpack.c.l.b16 %v510
        %v550 = vunpack.c.l.b16 %v511
        %v551 = vpack.c.b16 %v536, %v535
        %v552 = vpack.c.b16 %v538, %v537
        %v553 = vpack.c.b16 %v540, %v539
        %v554 = vpack.c.b16 %v542, %v541
        %v555 = vpack.c.b16 %v544, %v543
        %v556 = vpack.c.b16 %v546, %v545
        %v557 = vpack.c.b16 %v548, %v547
        %v558 = vpack.c.b16 %v550, %v549
        %567 = vmatprep.subr.bf16.mxu0 0
        %568 = vmatpush1.bf16.msra.mxu0 %v551
        %569 = vmatprep.subr.bf16.mxu0 0
        %570 = vmatpush1.bf16.msra.mxu0 %v552
        %571 = vmatprep.subr.bf16.mxu0 0
        %572 = vmatpush1.bf16.msra.mxu0 %v553
        %573 = vmatprep.subr.bf16.mxu0 0
        %574 = vmatpush1.bf16.msra.mxu0 %v554
        %575 = vmatprep.subr.bf16.mxu0 0
        %576 = vmatpush1.bf16.msra.mxu0 %v555
        %577 = vmatprep.subr.bf16.mxu0 0
        %578 = vmatpush1.bf16.msra.mxu0 %v556
        %579 = vmatprep.subr.bf16.mxu0 0
        %580 = vmatpush1.bf16.msra.mxu0 %v557
        %581 = vmatprep.subr.bf16.mxu0 0
        %582 = vmatpush1.bf16.msra.mxu0 %v558
        %583 = vmatprep.subr.bf16.mxu0 0
        %584 = vmatpush1.bf16.msra.mxu0 0
        %585 = vmatprep.subr.bf16.mxu0 0
        %586 = vmatpush1.bf16.msra.mxu0 0
        %587 = vmatprep.subr.bf16.mxu0 0
        %588 = vmatpush1.bf16.msra.mxu0 0
        %589 = vmatprep.subr.bf16.mxu0 0
        %590 = vmatpush1.bf16.msra.mxu0 0
        %591 = vmatprep.subr.bf16.mxu0 0
        %592 = vmatpush1.bf16.msra.mxu0 0
        %593 = vmatprep.subr.bf16.mxu0 0
        %594 = vmatpush1.bf16.msra.mxu0 0
        %595 = vmatprep.subr.bf16.mxu0 0
        %596 = vmatpush1.bf16.msra.mxu0 0
        %597 = vmatprep.subr.bf16.mxu0 0
        %598 = vmatpush1.bf16.msra.mxu0 0
        %599 = vmatprep.mubr.bf16.mxu0 0
        %600 = vmatmul.mubr.bf16.gmra.mrb[0].mxu0 %v480
        %v601 = vpop.f32.mrb[0].mxu0
        %v602 = vadd.f32 %v517, %v601
        %v603 = vpop.f32.mrb[0].mxu0
        %v604 = vpop.f32.mrb[0].mxu0
        %v605 = vadd.f32 %v517, %v604
        %v606 = vpop.f32.mrb[0].mxu0
        %607 = vmatprep.mubr.bf16.mxu0 0
        %608 = vmatmul.mubr.bf16.gmra.mrb[0].mxu0 %v481
        %v609 = vpop.f32.mrb[0].mxu0
        %v610 = vadd.f32 %v517, %v609
        %v611 = vpop.f32.mrb[0].mxu0
        %v612 = vpop.f32.mrb[0].mxu0
        %v613 = vadd.f32 %v517, %v612
        %v614 = vpop.f32.mrb[0].mxu0
        %615 = vmatprep.mubr.bf16.mxu0 0
        %616 = vmatmul.mubr.bf16.gmra.mrb[0].mxu0 %v482
        %v617 = vpop.f32.mrb[0].mxu0
        %v618 = vadd.f32 %v517, %v617
        %v619 = vpop.f32.mrb[0].mxu0
        %v620 = vpop.f32.mrb[0].mxu0
        %v621 = vadd.f32 %v517, %v620
        %v622 = vpop.f32.mrb[0].mxu0
        %623 = vmatprep.mubr.bf16.mxu0 0
        %624 = vmatmul.mubr.bf16.gmra.mrb[0].mxu0 %v483
        %v625 = vpop.f32.mrb[0].mxu0
        %v626 = vadd.f32 %v517, %v625
        %v627 = vpop.f32.mrb[0].mxu0
        %v628 = vpop.f32.mrb[0].mxu0
        %v629 = vadd.f32 %v517, %v628
        %v630 = vpop.f32.mrb[0].mxu0
        %631 = vmatprep.mubr.bf16.mxu0 0
        %632 = vmatmul.mubr.bf16.gmra.mrb[0].mxu0 %v484
        %v633 = vpop.f32.mrb[0].mxu0
        %v634 = vadd.f32 %v517, %v633
        %v635 = vpop.f32.mrb[0].mxu0
        %v636 = vpop.f32.mrb[0].mxu0
        %v637 = vadd.f32 %v517, %v636
        %v638 = vpop.f32.mrb[0].mxu0
        %639 = vmatprep.mubr.bf16.mxu0 0
        %640 = vmatmul.mubr.bf16.gmra.mrb[0].mxu0 %v485
        %v641 = vpop.f32.mrb[0].mxu0
        %v642 = vadd.f32 %v517, %v641
        %v643 = vpop.f32.mrb[0].mxu0
        %v644 = vpop.f32.mrb[0].mxu0
        %v645 = vadd.f32 %v517, %v644
        %v646 = vpop.f32.mrb[0].mxu0
        %647 = vmatprep.mubr.bf16.mxu0 0
        %648 = vmatmul.mubr.bf16.gmra.mrb[0].mxu0 %v486
        %v649 = vpop.f32.mrb[0].mxu0
        %v650 = vadd.f32 %v517, %v649
        %v651 = vpop.f32.mrb[0].mxu0
        %v652 = vpop.f32.mrb[0].mxu0
        %v653 = vadd.f32 %v517, %v652
        %v654 = vpop.f32.mrb[0].mxu0
        %655 = vmatprep.mubr.bf16.mxu0 0
        %656 = vmatmul.mubr.bf16.gmra.mrb[0].mxu0 %v487
        %v657 = vpop.f32.mrb[0].mxu0
        %v658 = vadd.f32 %v517, %v657
        %v659 = vpop.f32.mrb[0].mxu0
        %v660 = vpop.f32.mrb[0].mxu0
        %v661 = vadd.f32 %v517, %v660
        %v662 = vpop.f32.mrb[0].mxu0
        %663 = vmatprep.mubr.bf16.mxu0 0
        %664 = vmatmul.mubr.bf16.gmra.mrb[0].mxu0 %v488
        %v665 = vpop.f32.mrb[0].mxu0
        %v666 = vadd.f32 %v517, %v665
        %v667 = vpop.f32.mrb[0].mxu0
        %v668 = vpop.f32.mrb[0].mxu0
        %v669 = vadd.f32 %v517, %v668
        %v670 = vpop.f32.mrb[0].mxu0
        %671 = vmatprep.mubr.bf16.mxu0 0
        %672 = vmatmul.mubr.bf16.gmra.mrb[0].mxu0 %v489
        %v673 = vpop.f32.mrb[0].mxu0
        %v674 = vadd.f32 %v517, %v673
        %v675 = vpop.f32.mrb[0].mxu0
        %v676 = vpop.f32.mrb[0].mxu0
        %v677 = vadd.f32 %v517, %v676
        %v678 = vpop.f32.mrb[0].mxu0
        %679 = vmatprep.mubr.bf16.mxu0 0
        %680 = vmatmul.mubr.bf16.gmra.mrb[0].mxu0 %v490
        %v681 = vpop.f32.mrb[0].mxu0
        %v682 = vadd.f32 %v517, %v681
        %v683 = vpop.f32.mrb[0].mxu0
        %v684 = vpop.f32.mrb[0].mxu0
        %v685 = vadd.f32 %v517, %v684
        %v686 = vpop.f32.mrb[0].mxu0
        %687 = vmatprep.mubr.bf16.mxu0 0
        %688 = vmatmul.mubr.bf16.gmra.mrb[0].mxu0 %v491
        %v689 = vpop.f32.mrb[0].mxu0
        %v690 = vadd.f32 %v517, %v689
        %v691 = vpop.f32.mrb[0].mxu0
        %v692 = vpop.f32.mrb[0].mxu0
        %v693 = vadd.f32 %v517, %v692
        %v694 = vpop.f32.mrb[0].mxu0
        %695 = vmatprep.mubr.bf16.mxu0 0
        %696 = vmatmul.mubr.bf16.gmra.mrb[0].mxu0 %v492
        %v697 = vpop.f32.mrb[0].mxu0
        %v698 = vadd.f32 %v517, %v697
        %v699 = vpop.f32.mrb[0].mxu0
        %v700 = vpop.f32.mrb[0].mxu0
        %v701 = vadd.f32 %v517, %v700
        %v702 = vpop.f32.mrb[0].mxu0
        %703 = vmatprep.mubr.bf16.mxu0 0
        %704 = vmatmul.mubr.bf16.gmra.mrb[0].mxu0 %v493
        %v705 = vpop.f32.mrb[0].mxu0
        %v706 = vadd.f32 %v517, %v705
        %v707 = vpop.f32.mrb[0].mxu0
        %v708 = vpop.f32.mrb[0].mxu0
        %v709 = vadd.f32 %v517, %v708
        %v710 = vpop.f32.mrb[0].mxu0
        %711 = vmatprep.mubr.bf16.mxu0 0
        %712 = vmatmul.mubr.bf16.gmra.mrb[0].mxu0 %v494
        %v713 = vpop.f32.mrb[0].mxu0
        %v714 = vadd.f32 %v517, %v713
        %v715 = vpop.f32.mrb[0].mxu0
        %v716 = vpop.f32.mrb[0].mxu0
        %v717 = vadd.f32 %v517, %v716
        %v718 = vpop.f32.mrb[0].mxu0
        %719 = vmatprep.mubr.bf16.mxu0 0
        %720 = vmatmul.mubr.bf16.gmra.mrb[0].mxu0 %v495
        %v721 = vpop.f32.mrb[0].mxu0
        %v722 = vadd.f32 %v517, %v721
        %v723 = vpop.f32.mrb[0].mxu0
        %v724 = vpop.f32.mrb[0].mxu0
        %v725 = vadd.f32 %v517, %v724
        %v726 = vpop.f32.mrb[0].mxu0
        %727 = vdwg.mxu0
        %vm728 = vcmp.ge.f32.partialorder %v602, 1.0
        %vm729 = vcmp.ge.f32.partialorder %v605, 1.0
        %vm730 = vcmp.ge.f32.partialorder %v610, 1.0
        %vm731 = vcmp.ge.f32.partialorder %v613, 1.0
        %vm732 = vcmp.ge.f32.partialorder %v618, 1.0
        %vm733 = vcmp.ge.f32.partialorder %v621, 1.0
        %vm734 = vcmp.ge.f32.partialorder %v626, 1.0
        %vm735 = vcmp.ge.f32.partialorder %v629, 1.0
        %vm736 = vcmp.ge.f32.partialorder %v634, 1.0
        %vm737 = vcmp.ge.f32.partialorder %v637, 1.0
        %vm738 = vcmp.ge.f32.partialorder %v642, 1.0
        %vm739 = vcmp.ge.f32.partialorder %v645, 1.0
        %vm740 = vcmp.ge.f32.partialorder %v650, 1.0
        %vm741 = vcmp.ge.f32.partialorder %v653, 1.0
        %vm742 = vcmp.ge.f32.partialorder %v658, 1.0
        %vm743 = vcmp.ge.f32.partialorder %v661, 1.0
        %vm744 = vcmp.ge.f32.partialorder %v666, 1.0
        %vm745 = vcmp.ge.f32.partialorder %v669, 1.0
        %vm746 = vcmp.ge.f32.partialorder %v674, 1.0
        %vm747 = vcmp.ge.f32.partialorder %v677, 1.0
        %vm748 = vcmp.ge.f32.partialorder %v682, 1.0
        %vm749 = vcmp.ge.f32.partialorder %v685, 1.0
        %vm750 = vcmp.ge.f32.partialorder %v690, 1.0
        %vm751 = vcmp.ge.f32.partialorder %v693, 1.0
        %vm752 = vcmp.ge.f32.partialorder %v698, 1.0
        %vm753 = vcmp.ge.f32.partialorder %v701, 1.0
        %vm754 = vcmp.ge.f32.partialorder %v706, 1.0
        %vm755 = vcmp.ge.f32.partialorder %v709, 1.0
        %vm756 = vcmp.ge.f32.partialorder %v714, 1.0
        %vm757 = vcmp.ge.f32.partialorder %v717, 1.0
        %vm758 = vcmp.ge.f32.partialorder %v722, 1.0
        %vm759 = vcmp.ge.f32.partialorder %v725, 1.0
        %v760 = vsel %vm728, 1, 0
        %v761 = vsel %vm729, 1, 0
        %v762 = vsel %vm730, 1, 0
        %v763 = vsel %vm731, 1, 0
        %v764 = vsel %vm732, 1, 0
        %v765 = vsel %vm733, 1, 0
        %v766 = vsel %vm734, 1, 0
        %v767 = vsel %vm735, 1, 0
        %v768 = vsel %vm736, 1, 0
        %v769 = vsel %vm737, 1, 0
        %v770 = vsel %vm738, 1, 0
        %v771 = vsel %vm739, 1, 0
        %v772 = vsel %vm740, 1, 0
        %v773 = vsel %vm741, 1, 0
        %v774 = vsel %vm742, 1, 0
        %v775 = vsel %vm743, 1, 0
        %v776 = vsel %vm744, 1, 0
        %v777 = vsel %vm745, 1, 0
        %v778 = vsel %vm746, 1, 0
        %v779 = vsel %vm747, 1, 0
        %v780 = vsel %vm748, 1, 0
        %v781 = vsel %vm749, 1, 0
        %v782 = vsel %vm750, 1, 0
        %v783 = vsel %vm751, 1, 0
        %v784 = vsel %vm752, 1, 0
        %v785 = vsel %vm753, 1, 0
        %v786 = vsel %vm754, 1, 0
        %v787 = vsel %vm755, 1, 0
        %v788 = vsel %vm756, 1, 0
        %v789 = vsel %vm757, 1, 0
        %v790 = vsel %vm758, 1, 0
        %v791 = vsel %vm759, 1, 0
        %v792 = vcvt.s32.f32 %v760
        %v793 = vcvt.s32.f32 %v761
        %v794 = vcvt.s32.f32 %v762
        %v795 = vcvt.s32.f32 %v763
        %v796 = vcvt.s32.f32 %v764
        %v797 = vcvt.s32.f32 %v765
        %v798 = vcvt.s32.f32 %v766
        %v799 = vcvt.s32.f32 %v767
        %v800 = vcvt.s32.f32 %v768
        %v801 = vcvt.s32.f32 %v769
        %v802 = vcvt.s32.f32 %v770
        %v803 = vcvt.s32.f32 %v771
        %v804 = vcvt.s32.f32 %v772
        %v805 = vcvt.s32.f32 %v773
        %v806 = vcvt.s32.f32 %v774
        %v807 = vcvt.s32.f32 %v775
        %v808 = vcvt.s32.f32 %v776
        %v809 = vcvt.s32.f32 %v777
        %v810 = vcvt.s32.f32 %v778
        %v811 = vcvt.s32.f32 %v779
        %v812 = vcvt.s32.f32 %v780
        %v813 = vcvt.s32.f32 %v781
        %v814 = vcvt.s32.f32 %v782
        %v815 = vcvt.s32.f32 %v783
        %v816 = vcvt.s32.f32 %v784
        %v817 = vcvt.s32.f32 %v785
        %v818 = vcvt.s32.f32 %v786
        %v819 = vcvt.s32.f32 %v787
        %v820 = vcvt.s32.f32 %v788
        %v821 = vcvt.s32.f32 %v789
        %v822 = vcvt.s32.f32 %v790
        %v823 = vcvt.s32.f32 %v791
        %v824 = vpack.c.bf16 %v793, %v792
        %v825 = vpack.c.bf16 %v795, %v794
        %v826 = vpack.c.bf16 %v797, %v796
        %v827 = vpack.c.bf16 %v799, %v798
        %v828 = vpack.c.bf16 %v801, %v800
        %v829 = vpack.c.bf16 %v803, %v802
        %v830 = vpack.c.bf16 %v805, %v804
        %v831 = vpack.c.bf16 %v807, %v806
        %v832 = vpack.c.bf16 %v809, %v808
        %v833 = vpack.c.bf16 %v811, %v810
        %v834 = vpack.c.bf16 %v813, %v812
        %v835 = vpack.c.bf16 %v815, %v814
        %v836 = vpack.c.bf16 %v817, %v816
        %v837 = vpack.c.bf16 %v819, %v818
        %v838 = vpack.c.bf16 %v821, %v820
        %v839 = vpack.c.bf16 %v823, %v822
        %vm840 = vcmask 261120
        %841 = vst.msk [vmem:[#allocation2] sm:$0xff] %vm840, 0
        %842 = vst.msk [vmem:[#allocation2 + $0x88] sm:$0xff] %vm840, 0
        %843 = vst.msk [vmem:[#allocation3] sm:$0xff] %vm840, 0
        %844 = vst.msk [vmem:[#allocation3 + $0x88] sm:$0xff] %vm840, 0
        %845 = vst.msk [vmem:[#allocation4] sm:$0xff] %vm840, 0
        %846 = vst.msk [vmem:[#allocation4 + $0x88] sm:$0xff] %vm840, 0
        %847 = vst.msk [vmem:[#allocation2 + $0x8] sm:$0xff] %vm840, %v824
        %848 = vst.msk [vmem:[#allocation2 + $0x10] sm:$0xff] %vm840, %v825
        %849 = vst.msk [vmem:[#allocation2 + $0x18] sm:$0xff] %vm840, %v826
        %850 = vst.msk [vmem:[#allocation2 + $0x20] sm:$0xff] %vm840, %v827
        %851 = vst.msk [vmem:[#allocation2 + $0x28] sm:$0xff] %vm840, %v828
        %852 = vst.msk [vmem:[#allocation2 + $0x30] sm:$0xff] %vm840, %v829
        %853 = vst.msk [vmem:[#allocation2 + $0x38] sm:$0xff] %vm840, %v830
        %854 = vst.msk [vmem:[#allocation2 + $0x40] sm:$0xff] %vm840, %v831
        %855 = vst.msk [vmem:[#allocation2 + $0x48] sm:$0xff] %vm840, %v832
        %856 = vst.msk [vmem:[#allocation2 + $0x50] sm:$0xff] %vm840, %v833
        %857 = vst.msk [vmem:[#allocation2 + $0x58] sm:$0xff] %vm840, %v834
        %858 = vst.msk [vmem:[#allocation2 + $0x60] sm:$0xff] %vm840, %v835
        %859 = vst.msk [vmem:[#allocation2 + $0x68] sm:$0xff] %vm840, %v836
        %860 = vst.msk [vmem:[#allocation2 + $0x70] sm:$0xff] %vm840, %v837
        %861 = vst.msk [vmem:[#allocation2 + $0x78] sm:$0xff] %vm840, %v838
        %862 = vst.msk [vmem:[#allocation2 + $0x80] sm:$0xff] %vm840, %v839
        %v863 = vld [vmem:[#allocation2] sm:$0x80]
        %v864 = vld [vmem:[#allocation2 + $0x8] sm:$0xff]
        %v865 = vld [vmem:[#allocation2 + $0x10] sm:$0xff]
        %v866 = vld [vmem:[#allocation2 + $0x18] sm:$0xff]
        %v867 = vld [vmem:[#allocation2 + $0x20] sm:$0xff]
        %v868 = vld [vmem:[#allocation2 + $0x28] sm:$0xff]
        %v869 = vld [vmem:[#allocation2 + $0x30] sm:$0xff]
        %v870 = vld [vmem:[#allocation2 + $0x38] sm:$0xff]
        %v871 = vld [vmem:[#allocation2 + $0x40] sm:$0xff]
        %v872 = vld [vmem:[#allocation2 + $0x48] sm:$0xff]
        %v873 = vld [vmem:[#allocation2 + $0x50] sm:$0xff]
        %v874 = vld [vmem:[#allocation2 + $0x58] sm:$0xff]
        %v875 = vld [vmem:[#allocation2 + $0x60] sm:$0xff]
        %v876 = vld [vmem:[#allocation2 + $0x68] sm:$0xff]
        %v877 = vld [vmem:[#allocation2 + $0x70] sm:$0xff]
        %v878 = vld [vmem:[#allocation2 + $0x78] sm:$0xff]
        %v879 = vld [vmem:[#allocation2 + $0x80] sm:$0xff]
        %v880 = vld [vmem:[%s7] sm:$0xf]
        %v881 = vld [vmem:[%s7 + $0x4] sm:$0xf]
        %v882 = vld [vmem:[%s7 + $0x8] sm:$0xf]
        %v883 = vld [vmem:[%s7 + $0xc] sm:$0xf]
        %v884 = vld [vmem:[%s7 + $0x10] sm:$0xf]
        %v885 = vld [vmem:[%s7 + $0x14] sm:$0xf]
        %v886 = vld [vmem:[%s7 + $0x18] sm:$0xf]
        %v887 = vld [vmem:[%s7 + $0x1c] sm:$0xf]
        %v888 = vld [vmem:[%s7 + $0x20] sm:$0xf]
        %v889 = vld [vmem:[%s7 + $0x24] sm:$0xf]
        %v890 = vld [vmem:[%s7 + $0x28] sm:$0xf]
        %v891 = vld [vmem:[%s7 + $0x2c] sm:$0xf]
        %v892 = vld [vmem:[%s7 + $0x30] sm:$0xf]
        %v893 = vld [vmem:[%s7 + $0x34] sm:$0xf]
        %v894 = vld [vmem:[%s7 + $0x38] sm:$0xf]
        %v895 = vld [vmem:[%s7 + $0x3c] sm:$0xf]
        %v896 = vld [vmem:[%s7 + $0x40] sm:$0xf]
        %v897 = vld [vmem:[%s7 + $0x44] sm:$0xf]
        %v898 = vld [vmem:[%s7 + $0x48] sm:$0xf]
        %v899 = vld [vmem:[%s7 + $0x4c] sm:$0xf]
        %v900 = vld [vmem:[%s7 + $0x50] sm:$0xf]
        %v901 = vld [vmem:[%s7 + $0x54] sm:$0xf]
        %v902 = vld [vmem:[%s7 + $0x58] sm:$0xf]
        %v903 = vld [vmem:[%s7 + $0x5c] sm:$0xf]
        %v904 = vld [vmem:[%s7 + $0x60] sm:$0xf]
        %v905 = vld [vmem:[%s7 + $0x64] sm:$0xf]
        %v906 = vld [vmem:[%s7 + $0x68] sm:$0xf]
        %v907 = vld [vmem:[%s7 + $0x6c] sm:$0xf]
        %v908 = vld [vmem:[%s7 + $0x70] sm:$0xf]
        %v909 = vld [vmem:[%s7 + $0x74] sm:$0xf]
        %v910 = vld [vmem:[%s7 + $0x78] sm:$0xf]
        %v911 = vld [vmem:[%s7 + $0x7c] sm:$0xf]
        %v944 = vunpack.c.l.b16 %v880
        %v945 = vunpack.c.l.b16 %v881
        %v946 = vunpack.c.l.b16 %v882
        %v947 = vunpack.c.l.b16 %v883
        %v948 = vunpack.c.l.b16 %v884
        %v949 = vunpack.c.l.b16 %v885
        %v950 = vunpack.c.l.b16 %v886
        %v951 = vunpack.c.l.b16 %v887
        %v952 = vunpack.c.l.b16 %v888
        %v953 = vunpack.c.l.b16 %v889
        %v954 = vunpack.c.l.b16 %v890
        %v955 = vunpack.c.l.b16 %v891
        %v956 = vunpack.c.l.b16 %v892
        %v957 = vunpack.c.l.b16 %v893
        %v958 = vunpack.c.l.b16 %v894
        %v959 = vunpack.c.l.b16 %v895
        %v960 = vunpack.c.l.b16 %v896
        %v961 = vunpack.c.l.b16 %v897
        %v962 = vunpack.c.l.b16 %v898
        %v963 = vunpack.c.l.b16 %v899
        %v964 = vunpack.c.l.b16 %v900
        %v965 = vunpack.c.l.b16 %v901
        %v966 = vunpack.c.l.b16 %v902
        %v967 = vunpack.c.l.b16 %v903
        %v968 = vunpack.c.l.b16 %v904
        %v969 = vunpack.c.l.b16 %v905
        %v970 = vunpack.c.l.b16 %v906
        %v971 = vunpack.c.l.b16 %v907
        %v972 = vunpack.c.l.b16 %v908
        %v973 = vunpack.c.l.b16 %v909
        %v974 = vunpack.c.l.b16 %v910
        %v975 = vunpack.c.l.b16 %v911
        %v976 = vpack.c.b16 %v945, %v944
        %v977 = vpack.c.b16 %v947, %v946
        %v978 = vpack.c.b16 %v949, %v948
        %v979 = vpack.c.b16 %v951, %v950
        %v980 = vpack.c.b16 %v953, %v952
        %v981 = vpack.c.b16 %v955, %v954
        %v982 = vpack.c.b16 %v957, %v956
        %v983 = vpack.c.b16 %v959, %v958
        %v984 = vpack.c.b16 %v961, %v960
        %v985 = vpack.c.b16 %v963, %v962
        %v986 = vpack.c.b16 %v965, %v964
        %v987 = vpack.c.b16 %v967, %v966
        %v988 = vpack.c.b16 %v969, %v968
        %v989 = vpack.c.b16 %v971, %v970
        %v990 = vpack.c.b16 %v973, %v972
        %v991 = vpack.c.b16 %v975, %v974
        %vm992 = vsmask.f32 7424
        %v994 = vshll.u32 %v976, 16
        %v996 = vrot.slane %v994, 1
        %v997 = vshrl.u32 %v976, 16
        %v999 = vor.u32 %v997, %v996
        %v1001 = vshll.u32 %v977, 16
        %v1003 = vrot.slane %v1001, 1
        %v1004 = vsel %vm992, %v999, %v1003
        %v1005 = vshrl.u32 %v977, 16
        %v1007 = vor.u32 %v1005, %v1003
        %v1009 = vshll.u32 %v978, 16
        %v1011 = vrot.slane %v1009, 1
        %v1012 = vsel %vm992, %v1007, %v1011
        %v1013 = vshrl.u32 %v978, 16
        %v1015 = vor.u32 %v1013, %v1011
        %v1017 = vshll.u32 %v979, 16
        %v1019 = vrot.slane %v1017, 1
        %v1020 = vsel %vm992, %v1015, %v1019
        %v1021 = vshrl.u32 %v979, 16
        %v1023 = vor.u32 %v1021, %v1019
        %v1025 = vshll.u32 %v980, 16
        %v1027 = vrot.slane %v1025, 1
        %v1028 = vsel %vm992, %v1023, %v1027
        %v1029 = vshrl.u32 %v980, 16
        %v1031 = vor.u32 %v1029, %v1027
        %v1033 = vshll.u32 %v981, 16
        %v1035 = vrot.slane %v1033, 1
        %v1036 = vsel %vm992, %v1031, %v1035
        %v1037 = vshrl.u32 %v981, 16
        %v1039 = vor.u32 %v1037, %v1035
        %v1041 = vshll.u32 %v982, 16
        %v1043 = vrot.slane %v1041, 1
        %v1044 = vsel %vm992, %v1039, %v1043
        %v1045 = vshrl.u32 %v982, 16
        %v1047 = vor.u32 %v1045, %v1043
        %v1049 = vshll.u32 %v983, 16
        %v1051 = vrot.slane %v1049, 1
        %v1052 = vsel %vm992, %v1047, %v1051
        %v1053 = vshrl.u32 %v983, 16
        %v1055 = vor.u32 %v1053, %v1051
        %v1057 = vshll.u32 %v984, 16
        %v1059 = vrot.slane %v1057, 1
        %v1060 = vsel %vm992, %v1055, %v1059
        %v1061 = vshrl.u32 %v984, 16
        %v1063 = vor.u32 %v1061, %v1059
        %v1065 = vshll.u32 %v985, 16
        %v1067 = vrot.slane %v1065, 1
        %v1068 = vsel %vm992, %v1063, %v1067
        %v1069 = vshrl.u32 %v985, 16
        %v1071 = vor.u32 %v1069, %v1067
        %v1073 = vshll.u32 %v986, 16
        %v1075 = vrot.slane %v1073, 1
        %v1076 = vsel %vm992, %v1071, %v1075
        %v1077 = vshrl.u32 %v986, 16
        %v1079 = vor.u32 %v1077, %v1075
        %v1081 = vshll.u32 %v987, 16
        %v1083 = vrot.slane %v1081, 1
        %v1084 = vsel %vm992, %v1079, %v1083
        %v1085 = vshrl.u32 %v987, 16
        %v1087 = vor.u32 %v1085, %v1083
        %v1089 = vshll.u32 %v988, 16
        %v1091 = vrot.slane %v1089, 1
        %v1092 = vsel %vm992, %v1087, %v1091
        %v1093 = vshrl.u32 %v988, 16
        %v1095 = vor.u32 %v1093, %v1091
        %v1097 = vshll.u32 %v989, 16
        %v1099 = vrot.slane %v1097, 1
        %v1100 = vsel %vm992, %v1095, %v1099
        %v1101 = vshrl.u32 %v989, 16
        %v1103 = vor.u32 %v1101, %v1099
        %v1105 = vshll.u32 %v990, 16
        %v1107 = vrot.slane %v1105, 1
        %v1108 = vsel %vm992, %v1103, %v1107
        %v1109 = vshrl.u32 %v990, 16
        %v1111 = vor.u32 %v1109, %v1107
        %v1113 = vshll.u32 %v991, 16
        %v1115 = vrot.slane %v1113, 1
        %v1116 = vsel %vm992, %v1111, %v1115
        %v1117 = vshrl.u32 %v991, 16
        %v1119 = vor.u32 %v1117, %v1115
        %v1137 = vmul.bf16 %v863, %v996
        %v1138 = vmul.bf16 %v864, %v1004
        %v1139 = vmul.bf16 %v865, %v1012
        %v1140 = vmul.bf16 %v866, %v1020
        %v1141 = vmul.bf16 %v867, %v1028
        %v1142 = vmul.bf16 %v868, %v1036
        %v1143 = vmul.bf16 %v869, %v1044
        %v1144 = vmul.bf16 %v870, %v1052
        %v1145 = vmul.bf16 %v871, %v1060
        %v1146 = vmul.bf16 %v872, %v1068
        %v1147 = vmul.bf16 %v873, %v1076
        %v1148 = vmul.bf16 %v874, %v1084
        %v1149 = vmul.bf16 %v875, %v1092
        %v1150 = vmul.bf16 %v876, %v1100
        %v1151 = vmul.bf16 %v877, %v1108
        %v1152 = vmul.bf16 %v878, %v1116
        %v1153 = vmul.bf16 %v879, %v1119
        %vm1154 = vsmask.f32 256
        %v1156 = vshrl.u32 %v1137, 16
        %v1158 = vrot.slane %v1156, 7
        %v1160 = vshrl.u32 %v1138, 16
        %v1162 = vrot.slane %v1160, 7
        %v1163 = vshll.u32 %v1138, 16
        %v1165 = vor.u32 %v1162, %v1163
        %v1166 = vsel %vm1154, %v1158, %v1165
        %v1168 = vshrl.u32 %v1139, 16
        %v1170 = vrot.slane %v1168, 7
        %v1171 = vshll.u32 %v1139, 16
        %v1173 = vor.u32 %v1170, %v1171
        %v1174 = vsel %vm1154, %v1162, %v1173
        %v1176 = vshrl.u32 %v1140, 16
        %v1178 = vrot.slane %v1176, 7
        %v1179 = vshll.u32 %v1140, 16
        %v1181 = vor.u32 %v1178, %v1179
        %v1182 = vsel %vm1154, %v1170, %v1181
        %v1184 = vshrl.u32 %v1141, 16
        %v1186 = vrot.slane %v1184, 7
        %v1187 = vshll.u32 %v1141, 16
        %v1189 = vor.u32 %v1186, %v1187
        %v1190 = vsel %vm1154, %v1178, %v1189
        %v1192 = vshrl.u32 %v1142, 16
        %v1194 = vrot.slane %v1192, 7
        %v1195 = vshll.u32 %v1142, 16
        %v1197 = vor.u32 %v1194, %v1195
        %v1198 = vsel %vm1154, %v1186, %v1197
        %v1200 = vshrl.u32 %v1143, 16
        %v1202 = vrot.slane %v1200, 7
        %v1203 = vshll.u32 %v1143, 16
        %v1205 = vor.u32 %v1202, %v1203
        %v1206 = vsel %vm1154, %v1194, %v1205
        %v1208 = vshrl.u32 %v1144, 16
        %v1210 = vrot.slane %v1208, 7
        %v1211 = vshll.u32 %v1144, 16
        %v1213 = vor.u32 %v1210, %v1211
        %v1214 = vsel %vm1154, %v1202, %v1213
        %v1216 = vshrl.u32 %v1145, 16
        %v1218 = vrot.slane %v1216, 7
        %v1219 = vshll.u32 %v1145, 16
        %v1221 = vor.u32 %v1218, %v1219
        %v1222 = vsel %vm1154, %v1210, %v1221
        %v1224 = vshrl.u32 %v1146, 16
        %v1226 = vrot.slane %v1224, 7
        %v1227 = vshll.u32 %v1146, 16
        %v1229 = vor.u32 %v1226, %v1227
        %v1230 = vsel %vm1154, %v1218, %v1229
        %v1232 = vshrl.u32 %v1147, 16
        %v1234 = vrot.slane %v1232, 7
        %v1235 = vshll.u32 %v1147, 16
        %v1237 = vor.u32 %v1234, %v1235
        %v1238 = vsel %vm1154, %v1226, %v1237
        %v1240 = vshrl.u32 %v1148, 16
        %v1242 = vrot.slane %v1240, 7
        %v1243 = vshll.u32 %v1148, 16
        %v1245 = vor.u32 %v1242, %v1243
        %v1246 = vsel %vm1154, %v1234, %v1245
        %v1248 = vshrl.u32 %v1149, 16
        %v1250 = vrot.slane %v1248, 7
        %v1251 = vshll.u32 %v1149, 16
        %v1253 = vor.u32 %v1250, %v1251
        %v1254 = vsel %vm1154, %v1242, %v1253
        %v1256 = vshrl.u32 %v1150, 16
        %v1258 = vrot.slane %v1256, 7
        %v1259 = vshll.u32 %v1150, 16
        %v1261 = vor.u32 %v1258, %v1259
        %v1262 = vsel %vm1154, %v1250, %v1261
        %v1264 = vshrl.u32 %v1151, 16
        %v1266 = vrot.slane %v1264, 7
        %v1267 = vshll.u32 %v1151, 16
        %v1269 = vor.u32 %v1266, %v1267
        %v1270 = vsel %vm1154, %v1258, %v1269
        %v1272 = vshrl.u32 %v1152, 16
        %v1274 = vrot.slane %v1272, 7
        %v1275 = vshll.u32 %v1152, 16
        %v1277 = vor.u32 %v1274, %v1275
        %v1278 = vsel %vm1154, %v1266, %v1277
        %v1280 = vshrl.u32 %v1153, 16
        %v1282 = vrot.slane %v1280, 7
        %v1283 = vshll.u32 %v1153, 16
        %v1285 = vor.u32 %v1282, %v1283
        %v1286 = vsel %vm1154, %v1274, %v1285
        %1303 = vst.msk [vmem:[#allocation3 + $0x8] sm:$0xff] %vm840, %v1166
        %1304 = vst.msk [vmem:[#allocation3 + $0x10] sm:$0xff] %vm840, %v1174
        %1305 = vst.msk [vmem:[#allocation3 + $0x18] sm:$0xff] %vm840, %v1182
        %1306 = vst.msk [vmem:[#allocation3 + $0x20] sm:$0xff] %vm840, %v1190
        %1307 = vst.msk [vmem:[#allocation3 + $0x28] sm:$0xff] %vm840, %v1198
        %1308 = vst.msk [vmem:[#allocation3 + $0x30] sm:$0xff] %vm840, %v1206
        %1309 = vst.msk [vmem:[#allocation3 + $0x38] sm:$0xff] %vm840, %v1214
        %1310 = vst.msk [vmem:[#allocation3 + $0x40] sm:$0xff] %vm840, %v1222
        %1311 = vst.msk [vmem:[#allocation3 + $0x48] sm:$0xff] %vm840, %v1230
        %1312 = vst.msk [vmem:[#allocation3 + $0x50] sm:$0xff] %vm840, %v1238
        %1313 = vst.msk [vmem:[#allocation3 + $0x58] sm:$0xff] %vm840, %v1246
        %1314 = vst.msk [vmem:[#allocation3 + $0x60] sm:$0xff] %vm840, %v1254
        %1315 = vst.msk [vmem:[#allocation3 + $0x68] sm:$0xff] %vm840, %v1262
        %1316 = vst.msk [vmem:[#allocation3 + $0x70] sm:$0xff] %vm840, %v1270
        %1317 = vst.msk [vmem:[#allocation3 + $0x78] sm:$0xff] %vm840, %v1278
        %1318 = vst.msk [vmem:[#allocation3 + $0x80] sm:$0xff] %vm840, %v1286
        %v1319 = vld [vmem:[#allocation2 + $0x8] sm:$0xff]
        %v1320 = vld [vmem:[#allocation2 + $0x10] sm:$0xff]
        %v1321 = vld [vmem:[#allocation2 + $0x18] sm:$0xff]
        %v1322 = vld [vmem:[#allocation2 + $0x20] sm:$0xff]
        %v1323 = vld [vmem:[#allocation2 + $0x28] sm:$0xff]
        %v1324 = vld [vmem:[#allocation2 + $0x30] sm:$0xff]
        %v1325 = vld [vmem:[#allocation2 + $0x38] sm:$0xff]
        %v1326 = vld [vmem:[#allocation2 + $0x40] sm:$0xff]
        %v1327 = vld [vmem:[#allocation2 + $0x48] sm:$0xff]
        %v1328 = vld [vmem:[#allocation2 + $0x50] sm:$0xff]
        %v1329 = vld [vmem:[#allocation2 + $0x58] sm:$0xff]
        %v1330 = vld [vmem:[#allocation2 + $0x60] sm:$0xff]
        %v1331 = vld [vmem:[#allocation2 + $0x68] sm:$0xff]
        %v1332 = vld [vmem:[#allocation2 + $0x70] sm:$0xff]
        %v1333 = vld [vmem:[#allocation2 + $0x78] sm:$0xff]
        %v1334 = vld [vmem:[#allocation2 + $0x80] sm:$0xff]
        %v1335 = vld [vmem:[#allocation2 + $0x88] sm:$0x1]
        %v1336 = vld [vmem:[%s8] sm:$0xf]
        %v1337 = vld [vmem:[%s8 + $0x4] sm:$0xf]
        %v1338 = vld [vmem:[%s8 + $0x8] sm:$0xf]
        %v1339 = vld [vmem:[%s8 + $0xc] sm:$0xf]
        %v1340 = vld [vmem:[%s8 + $0x10] sm:$0xf]
        %v1341 = vld [vmem:[%s8 + $0x14] sm:$0xf]
        %v1342 = vld [vmem:[%s8 + $0x18] sm:$0xf]
        %v1343 = vld [vmem:[%s8 + $0x1c] sm:$0xf]
        %v1344 = vld [vmem:[%s8 + $0x20] sm:$0xf]
        %v1345 = vld [vmem:[%s8 + $0x24] sm:$0xf]
        %v1346 = vld [vmem:[%s8 + $0x28] sm:$0xf]
        %v1347 = vld [vmem:[%s8 + $0x2c] sm:$0xf]
        %v1348 = vld [vmem:[%s8 + $0x30] sm:$0xf]
        %v1349 = vld [vmem:[%s8 + $0x34] sm:$0xf]
        %v1350 = vld [vmem:[%s8 + $0x38] sm:$0xf]
        %v1351 = vld [vmem:[%s8 + $0x3c] sm:$0xf]
        %v1352 = vld [vmem:[%s8 + $0x40] sm:$0xf]
        %v1353 = vld [vmem:[%s8 + $0x44] sm:$0xf]
        %v1354 = vld [vmem:[%s8 + $0x48] sm:$0xf]
        %v1355 = vld [vmem:[%s8 + $0x4c] sm:$0xf]
        %v1356 = vld [vmem:[%s8 + $0x50] sm:$0xf]
        %v1357 = vld [vmem:[%s8 + $0x54] sm:$0xf]
        %v1358 = vld [vmem:[%s8 + $0x58] sm:$0xf]
        %v1359 = vld [vmem:[%s8 + $0x5c] sm:$0xf]
        %v1360 = vld [vmem:[%s8 + $0x60] sm:$0xf]
        %v1361 = vld [vmem:[%s8 + $0x64] sm:$0xf]
        %v1362 = vld [vmem:[%s8 + $0x68] sm:$0xf]
        %v1363 = vld [vmem:[%s8 + $0x6c] sm:$0xf]
        %v1364 = vld [vmem:[%s8 + $0x70] sm:$0xf]
        %v1365 = vld [vmem:[%s8 + $0x74] sm:$0xf]
        %v1366 = vld [vmem:[%s8 + $0x78] sm:$0xf]
        %v1367 = vld [vmem:[%s8 + $0x7c] sm:$0xf]
        %v1400 = vunpack.c.l.b16 %v1336
        %v1401 = vunpack.c.l.b16 %v1337
        %v1402 = vunpack.c.l.b16 %v1338
        %v1403 = vunpack.c.l.b16 %v1339
        %v1404 = vunpack.c.l.b16 %v1340
        %v1405 = vunpack.c.l.b16 %v1341
        %v1406 = vunpack.c.l.b16 %v1342
        %v1407 = vunpack.c.l.b16 %v1343
        %v1408 = vunpack.c.l.b16 %v1344
        %v1409 = vunpack.c.l.b16 %v1345
        %v1410 = vunpack.c.l.b16 %v1346
        %v1411 = vunpack.c.l.b16 %v1347
        %v1412 = vunpack.c.l.b16 %v1348
        %v1413 = vunpack.c.l.b16 %v1349
        %v1414 = vunpack.c.l.b16 %v1350
        %v1415 = vunpack.c.l.b16 %v1351
        %v1416 = vunpack.c.l.b16 %v1352
        %v1417 = vunpack.c.l.b16 %v1353
        %v1418 = vunpack.c.l.b16 %v1354
        %v1419 = vunpack.c.l.b16 %v1355
        %v1420 = vunpack.c.l.b16 %v1356
        %v1421 = vunpack.c.l.b16 %v1357
        %v1422 = vunpack.c.l.b16 %v1358
        %v1423 = vunpack.c.l.b16 %v1359
        %v1424 = vunpack.c.l.b16 %v1360
        %v1425 = vunpack.c.l.b16 %v1361
        %v1426 = vunpack.c.l.b16 %v1362
        %v1427 = vunpack.c.l.b16 %v1363
        %v1428 = vunpack.c.l.b16 %v1364
        %v1429 = vunpack.c.l.b16 %v1365
        %v1430 = vunpack.c.l.b16 %v1366
        %v1431 = vunpack.c.l.b16 %v1367
        %v1432 = vpack.c.b16 %v1401, %v1400
        %v1433 = vpack.c.b16 %v1403, %v1402
        %v1434 = vpack.c.b16 %v1405, %v1404
        %v1435 = vpack.c.b16 %v1407, %v1406
        %v1436 = vpack.c.b16 %v1409, %v1408
        %v1437 = vpack.c.b16 %v1411, %v1410
        %v1438 = vpack.c.b16 %v1413, %v1412
        %v1439 = vpack.c.b16 %v1415, %v1414
        %v1440 = vpack.c.b16 %v1417, %v1416
        %v1441 = vpack.c.b16 %v1419, %v1418
        %v1442 = vpack.c.b16 %v1421, %v1420
        %v1443 = vpack.c.b16 %v1423, %v1422
        %v1444 = vpack.c.b16 %v1425, %v1424
        %v1445 = vpack.c.b16 %v1427, %v1426
        %v1446 = vpack.c.b16 %v1429, %v1428
        %v1447 = vpack.c.b16 %v1431, %v1430
        %v1449 = vshrl.u32 %v1432, 16
        %v1451 = vrot.slane %v1449, 7
        %v1452 = vshll.u32 %v1432, 16
        %v1454 = vor.u32 %v1451, %v1452
        %v1456 = vshrl.u32 %v1433, 16
        %v1458 = vrot.slane %v1456, 7
        %v1459 = vshll.u32 %v1433, 16
        %v1461 = vor.u32 %v1458, %v1459
        %v1462 = vsel %vm1154, %v1451, %v1461
        %v1464 = vshrl.u32 %v1434, 16
        %v1466 = vrot.slane %v1464, 7
        %v1467 = vshll.u32 %v1434, 16
        %v1469 = vor.u32 %v1466, %v1467
        %v1470 = vsel %vm1154, %v1458, %v1469
        %v1472 = vshrl.u32 %v1435, 16
        %v1474 = vrot.slane %v1472, 7
        %v1475 = vshll.u32 %v1435, 16
        %v1477 = vor.u32 %v1474, %v1475
        %v1478 = vsel %vm1154, %v1466, %v1477
        %v1480 = vshrl.u32 %v1436, 16
        %v1482 = vrot.slane %v1480, 7
        %v1483 = vshll.u32 %v1436, 16
        %v1485 = vor.u32 %v1482, %v1483
        %v1486 = vsel %vm1154, %v1474, %v1485
        %v1488 = vshrl.u32 %v1437, 16
        %v1490 = vrot.slane %v1488, 7
        %v1491 = vshll.u32 %v1437, 16
        %v1493 = vor.u32 %v1490, %v1491
        %v1494 = vsel %vm1154, %v1482, %v1493
        %v1496 = vshrl.u32 %v1438, 16
        %v1498 = vrot.slane %v1496, 7
        %v1499 = vshll.u32 %v1438, 16
        %v1501 = vor.u32 %v1498, %v1499
        %v1502 = vsel %vm1154, %v1490, %v1501
        %v1504 = vshrl.u32 %v1439, 16
        %v1506 = vrot.slane %v1504, 7
        %v1507 = vshll.u32 %v1439, 16
        %v1509 = vor.u32 %v1506, %v1507
        %v1510 = vsel %vm1154, %v1498, %v1509
        %v1512 = vshrl.u32 %v1440, 16
        %v1514 = vrot.slane %v1512, 7
        %v1515 = vshll.u32 %v1440, 16
        %v1517 = vor.u32 %v1514, %v1515
        %v1518 = vsel %vm1154, %v1506, %v1517
        %v1520 = vshrl.u32 %v1441, 16
        %v1522 = vrot.slane %v1520, 7
        %v1523 = vshll.u32 %v1441, 16
        %v1525 = vor.u32 %v1522, %v1523
        %v1526 = vsel %vm1154, %v1514, %v1525
        %v1528 = vshrl.u32 %v1442, 16
        %v1530 = vrot.slane %v1528, 7
        %v1531 = vshll.u32 %v1442, 16
        %v1533 = vor.u32 %v1530, %v1531
        %v1534 = vsel %vm1154, %v1522, %v1533
        %v1536 = vshrl.u32 %v1443, 16
        %v1538 = vrot.slane %v1536, 7
        %v1539 = vshll.u32 %v1443, 16
        %v1541 = vor.u32 %v1538, %v1539
        %v1542 = vsel %vm1154, %v1530, %v1541
        %v1544 = vshrl.u32 %v1444, 16
        %v1546 = vrot.slane %v1544, 7
        %v1547 = vshll.u32 %v1444, 16
        %v1549 = vor.u32 %v1546, %v1547
        %v1550 = vsel %vm1154, %v1538, %v1549
        %v1552 = vshrl.u32 %v1445, 16
        %v1554 = vrot.slane %v1552, 7
        %v1555 = vshll.u32 %v1445, 16
        %v1557 = vor.u32 %v1554, %v1555
        %v1558 = vsel %vm1154, %v1546, %v1557
        %v1560 = vshrl.u32 %v1446, 16
        %v1562 = vrot.slane %v1560, 7
        %v1563 = vshll.u32 %v1446, 16
        %v1565 = vor.u32 %v1562, %v1563
        %v1566 = vsel %vm1154, %v1554, %v1565
        %v1568 = vshrl.u32 %v1447, 16
        %v1570 = vrot.slane %v1568, 7
        %v1571 = vshll.u32 %v1447, 16
        %v1573 = vor.u32 %v1570, %v1571
        %v1574 = vsel %vm1154, %v1562, %v1573
        %v1592 = vmul.bf16 %v1319, %v1454
        %v1593 = vmul.bf16 %v1320, %v1462
        %v1594 = vmul.bf16 %v1321, %v1470
        %v1595 = vmul.bf16 %v1322, %v1478
        %v1596 = vmul.bf16 %v1323, %v1486
        %v1597 = vmul.bf16 %v1324, %v1494
        %v1598 = vmul.bf16 %v1325, %v1502
        %v1599 = vmul.bf16 %v1326, %v1510
        %v1600 = vmul.bf16 %v1327, %v1518
        %v1601 = vmul.bf16 %v1328, %v1526
        %v1602 = vmul.bf16 %v1329, %v1534
        %v1603 = vmul.bf16 %v1330, %v1542
        %v1604 = vmul.bf16 %v1331, %v1550
        %v1605 = vmul.bf16 %v1332, %v1558
        %v1606 = vmul.bf16 %v1333, %v1566
        %v1607 = vmul.bf16 %v1334, %v1574
        %v1608 = vmul.bf16 %v1335, %v1570
        %v1610 = vshrl.u32 %v1592, 16
        %v1612 = vshll.u32 %v1592, 16
        %v1614 = vrot.slane %v1612, 1
        %v1615 = vor.u32 %v1610, %v1614
        %v1617 = vshll.u32 %v1593, 16
        %v1619 = vrot.slane %v1617, 1
        %v1620 = vsel %vm992, %v1615, %v1619
        %v1621 = vshrl.u32 %v1593, 16
        %v1623 = vor.u32 %v1621, %v1619
        %v1625 = vshll.u32 %v1594, 16
        %v1627 = vrot.slane %v1625, 1
        %v1628 = vsel %vm992, %v1623, %v1627
        %v1629 = vshrl.u32 %v1594, 16
        %v1631 = vor.u32 %v1629, %v1627
        %v1633 = vshll.u32 %v1595, 16
        %v1635 = vrot.slane %v1633, 1
        %v1636 = vsel %vm992, %v1631, %v1635
        %v1637 = vshrl.u32 %v1595, 16
        %v1639 = vor.u32 %v1637, %v1635
        %v1641 = vshll.u32 %v1596, 16
        %v1643 = vrot.slane %v1641, 1
        %v1644 = vsel %vm992, %v1639, %v1643
        %v1645 = vshrl.u32 %v1596, 16
        %v1647 = vor.u32 %v1645, %v1643
        %v1649 = vshll.u32 %v1597, 16
        %v1651 = vrot.slane %v1649, 1
        %v1652 = vsel %vm992, %v1647, %v1651
        %v1653 = vshrl.u32 %v1597, 16
        %v1655 = vor.u32 %v1653, %v1651
        %v1657 = vshll.u32 %v1598, 16
        %v1659 = vrot.slane %v1657, 1
        %v1660 = vsel %vm992, %v1655, %v1659
        %v1661 = vshrl.u32 %v1598, 16
        %v1663 = vor.u32 %v1661, %v1659
        %v1665 = vshll.u32 %v1599, 16
        %v1667 = vrot.slane %v1665, 1
        %v1668 = vsel %vm992, %v1663, %v1667
        %v1669 = vshrl.u32 %v1599, 16
        %v1671 = vor.u32 %v1669, %v1667
        %v1673 = vshll.u32 %v1600, 16
        %v1675 = vrot.slane %v1673, 1
        %v1676 = vsel %vm992, %v1671, %v1675
        %v1677 = vshrl.u32 %v1600, 16
        %v1679 = vor.u32 %v1677, %v1675
        %v1681 = vshll.u32 %v1601, 16
        %v1683 = vrot.slane %v1681, 1
        %v1684 = vsel %vm992, %v1679, %v1683
        %v1685 = vshrl.u32 %v1601, 16
        %v1687 = vor.u32 %v1685, %v1683
        %v1689 = vshll.u32 %v1602, 16
        %v1691 = vrot.slane %v1689, 1
        %v1692 = vsel %vm992, %v1687, %v1691
        %v1693 = vshrl.u32 %v1602, 16
        %v1695 = vor.u32 %v1693, %v1691
        %v1697 = vshll.u32 %v1603, 16
        %v1699 = vrot.slane %v1697, 1
        %v1700 = vsel %vm992, %v1695, %v1699
        %v1701 = vshrl.u32 %v1603, 16
        %v1703 = vor.u32 %v1701, %v1699
        %v1705 = vshll.u32 %v1604, 16
        %v1707 = vrot.slane %v1705, 1
        %v1708 = vsel %vm992, %v1703, %v1707
        %v1709 = vshrl.u32 %v1604, 16
        %v1711 = vor.u32 %v1709, %v1707
        %v1713 = vshll.u32 %v1605, 16
        %v1715 = vrot.slane %v1713, 1
        %v1716 = vsel %vm992, %v1711, %v1715
        %v1717 = vshrl.u32 %v1605, 16
        %v1719 = vor.u32 %v1717, %v1715
        %v1721 = vshll.u32 %v1606, 16
        %v1723 = vrot.slane %v1721, 1
        %v1724 = vsel %vm992, %v1719, %v1723
        %v1725 = vshrl.u32 %v1606, 16
        %v1727 = vor.u32 %v1725, %v1723
        %v1729 = vshll.u32 %v1607, 16
        %v1731 = vrot.slane %v1729, 1
        %v1732 = vsel %vm992, %v1727, %v1731
        %v1733 = vshrl.u32 %v1607, 16
        %v1735 = vor.u32 %v1733, %v1731
        %v1737 = vshll.u32 %v1608, 16
        %v1739 = vrot.slane %v1737, 1
        %v1740 = vsel %vm992, %v1735, %v1739
        %1757 = vst.msk [vmem:[#allocation4 + $0x8] sm:$0xff] %vm840, %v1620
        %1758 = vst.msk [vmem:[#allocation4 + $0x10] sm:$0xff] %vm840, %v1628
        %1759 = vst.msk [vmem:[#allocation4 + $0x18] sm:$0xff] %vm840, %v1636
        %1760 = vst.msk [vmem:[#allocation4 + $0x20] sm:$0xff] %vm840, %v1644
        %1761 = vst.msk [vmem:[#allocation4 + $0x28] sm:$0xff] %vm840, %v1652
        %1762 = vst.msk [vmem:[#allocation4 + $0x30] sm:$0xff] %vm840, %v1660
        %1763 = vst.msk [vmem:[#allocation4 + $0x38] sm:$0xff] %vm840, %v1668
        %1764 = vst.msk [vmem:[#allocation4 + $0x40] sm:$0xff] %vm840, %v1676
        %1765 = vst.msk [vmem:[#allocation4 + $0x48] sm:$0xff] %vm840, %v1684
        %1766 = vst.msk [vmem:[#allocation4 + $0x50] sm:$0xff] %vm840, %v1692
        %1767 = vst.msk [vmem:[#allocation4 + $0x58] sm:$0xff] %vm840, %v1700
        %1768 = vst.msk [vmem:[#allocation4 + $0x60] sm:$0xff] %vm840, %v1708
        %1769 = vst.msk [vmem:[#allocation4 + $0x68] sm:$0xff] %vm840, %v1716
        %1770 = vst.msk [vmem:[#allocation4 + $0x70] sm:$0xff] %vm840, %v1724
        %1771 = vst.msk [vmem:[#allocation4 + $0x78] sm:$0xff] %vm840, %v1732
        %1772 = vst.msk [vmem:[#allocation4 + $0x80] sm:$0xff] %vm840, %v1740
        %v1773 = vld [vmem:[%s4] sm:$0x1]
        %v1775 = vlaneseq
        %v1776 = vshrl.u32 %v1775, 7
        %v1777 = vsub.s32 0, %v1776
        %v1778 = vrot.slane %v1773, %v1777
        %v1780 = vld [vmem:[#allocation3] sm:$0xff]
        %v1781 = vld [vmem:[#allocation3 + $0x8] sm:$0xff]
        %v1782 = vld [vmem:[#allocation3 + $0x10] sm:$0xff]
        %v1783 = vld [vmem:[#allocation3 + $0x18] sm:$0xff]
        %v1784 = vld [vmem:[#allocation3 + $0x20] sm:$0xff]
        %v1785 = vld [vmem:[#allocation3 + $0x28] sm:$0xff]
        %v1786 = vld [vmem:[#allocation3 + $0x30] sm:$0xff]
        %v1787 = vld [vmem:[#allocation3 + $0x38] sm:$0xff]
        %v1788 = vld [vmem:[#allocation3 + $0x40] sm:$0xff]
        %v1789 = vld [vmem:[#allocation3 + $0x48] sm:$0xff]
        %v1790 = vld [vmem:[#allocation3 + $0x50] sm:$0xff]
        %v1791 = vld [vmem:[#allocation3 + $0x58] sm:$0xff]
        %v1792 = vld [vmem:[#allocation3 + $0x60] sm:$0xff]
        %v1793 = vld [vmem:[#allocation3 + $0x68] sm:$0xff]
        %v1794 = vld [vmem:[#allocation3 + $0x70] sm:$0xff]
        %v1795 = vld [vmem:[#allocation3 + $0x78] sm:$0xff]
        %v1796 = vld [vmem:[%s3] sm:$0xf]
        %v1797 = vld [vmem:[%s3 + $0x4] sm:$0xf]
        %v1798 = vld [vmem:[%s3 + $0x8] sm:$0xf]
        %v1799 = vld [vmem:[%s3 + $0xc] sm:$0xf]
        %v1804 = vunpack.c.l.b16 %v1796
        %v1805 = vunpack.c.l.b16 %v1797
        %v1806 = vunpack.c.l.b16 %v1798
        %v1807 = vunpack.c.l.b16 %v1799
        %v1808 = vpack.c.b16 %v1805, %v1804
        %v1809 = vpack.c.b16 %v1807, %v1806
        %v1813 = vsel %vm840, %v1780, 0
        %v1816 = vsel %vm840, %v1781, 0
        %v1819 = vsel %vm840, %v1782, 0
        %v1822 = vsel %vm840, %v1783, 0
        %v1825 = vsel %vm840, %v1784, 0
        %v1828 = vsel %vm840, %v1785, 0
        %v1831 = vsel %vm840, %v1786, 0
        %v1834 = vsel %vm840, %v1787, 0
        %v1837 = vsel %vm840, %v1788, 0
        %v1840 = vsel %vm840, %v1789, 0
        %v1843 = vsel %vm840, %v1790, 0
        %v1846 = vsel %vm840, %v1791, 0
        %v1849 = vsel %vm840, %v1792, 0
        %v1852 = vsel %vm840, %v1793, 0
        %v1855 = vsel %vm840, %v1794, 0
        %v1858 = vsel %vm840, %v1795, 0
        %1860 = vmatprep.subr.bf16.mxu0 0
        %1861 = vmatpush1.bf16.msra.mxu0 %v1808
        %1862 = vmatprep.subr.bf16.mxu0 0
        %1863 = vmatpush1.bf16.msra.mxu0 %v1809
        %1864 = vmatprep.subr.bf16.mxu0 0
        %1865 = vmatpush1.bf16.msra.mxu0 0
        %1866 = vmatprep.subr.bf16.mxu0 0
        %1867 = vmatpush1.bf16.msra.mxu0 0
        %1868 = vmatprep.subr.bf16.mxu0 0
        %1869 = vmatpush1.bf16.msra.mxu0 0
        %1870 = vmatprep.subr.bf16.mxu0 0
        %1871 = vmatpush1.bf16.msra.mxu0 0
        %1872 = vmatprep.subr.bf16.mxu0 0
        %1873 = vmatpush1.bf16.msra.mxu0 0
        %1874 = vmatprep.subr.bf16.mxu0 0
        %1875 = vmatpush1.bf16.msra.mxu0 0
        %1876 = vmatprep.subr.bf16.mxu0 0
        %1877 = vmatpush1.bf16.msra.mxu0 0
        %1878 = vmatprep.subr.bf16.mxu0 0
        %1879 = vmatpush1.bf16.msra.mxu0 0
        %1880 = vmatprep.subr.bf16.mxu0 0
        %1881 = vmatpush1.bf16.msra.mxu0 0
        %1882 = vmatprep.subr.bf16.mxu0 0
        %1883 = vmatpush1.bf16.msra.mxu0 0
        %1884 = vmatprep.subr.bf16.mxu0 0
        %1885 = vmatpush1.bf16.msra.mxu0 0
        %1886 = vmatprep.subr.bf16.mxu0 0
        %1887 = vmatpush1.bf16.msra.mxu0 0
        %1888 = vmatprep.subr.bf16.mxu0 0
        %1889 = vmatpush1.bf16.msra.mxu0 0
        %1890 = vmatprep.subr.bf16.mxu0 0
        %1891 = vmatpush1.bf16.msra.mxu0 0
        %1892 = vmatprep.mubr.bf16.mxu0 0
        %1893 = vmatmul.mubr.bf16.gmra.mrb[0].mxu0 %v1813
        %v1894 = vpop.f32.mrb[0].mxu0
        %v1895 = vadd.f32 0.0, %v1894
        %v1896 = vpop.f32.mrb[0].mxu0
        %v1897 = vpop.f32.mrb[0].mxu0
        %v1898 = vadd.f32 0.0, %v1897
        %v1899 = vpop.f32.mrb[0].mxu0
        %1900 = vmatprep.mubr.bf16.mxu0 0
        %1901 = vmatmul.mubr.bf16.gmra.mrb[0].mxu0 %v1816
        %v1902 = vpop.f32.mrb[0].mxu0
        %v1903 = vadd.f32 0.0, %v1902
        %v1904 = vpop.f32.mrb[0].mxu0
        %v1905 = vpop.f32.mrb[0].mxu0
        %v1906 = vadd.f32 0.0, %v1905
        %v1907 = vpop.f32.mrb[0].mxu0
        %1908 = vmatprep.mubr.bf16.mxu0 0
        %1909 = vmatmul.mubr.bf16.gmra.mrb[0].mxu0 %v1819
        %v1910 = vpop.f32.mrb[0].mxu0
        %v1911 = vadd.f32 0.0, %v1910
        %v1912 = vpop.f32.mrb[0].mxu0
        %v1913 = vpop.f32.mrb[0].mxu0
        %v1914 = vadd.f32 0.0, %v1913
        %v1915 = vpop.f32.mrb[0].mxu0
        %1916 = vmatprep.mubr.bf16.mxu0 0
        %1917 = vmatmul.mubr.bf16.gmra.mrb[0].mxu0 %v1822
        %v1918 = vpop.f32.mrb[0].mxu0
        %v1919 = vadd.f32 0.0, %v1918
        %v1920 = vpop.f32.mrb[0].mxu0
        %v1921 = vpop.f32.mrb[0].mxu0
        %v1922 = vadd.f32 0.0, %v1921
        %v1923 = vpop.f32.mrb[0].mxu0
        %1924 = vmatprep.mubr.bf16.mxu0 0
        %1925 = vmatmul.mubr.bf16.gmra.mrb[0].mxu0 %v1825
        %v1926 = vpop.f32.mrb[0].mxu0
        %v1927 = vadd.f32 0.0, %v1926
        %v1928 = vpop.f32.mrb[0].mxu0
        %v1929 = vpop.f32.mrb[0].mxu0
        %v1930 = vadd.f32 0.0, %v1929
        %v1931 = vpop.f32.mrb[0].mxu0
        %1932 = vmatprep.mubr.bf16.mxu0 0
        %1933 = vmatmul.mubr.bf16.gmra.mrb[0].mxu0 %v1828
        %v1934 = vpop.f32.mrb[0].mxu0
        %v1935 = vadd.f32 0.0, %v1934
        %v1936 = vpop.f32.mrb[0].mxu0
        %v1937 = vpop.f32.mrb[0].mxu0
        %v1938 = vadd.f32 0.0, %v1937
        %v1939 = vpop.f32.mrb[0].mxu0
        %1940 = vmatprep.mubr.bf16.mxu0 0
        %1941 = vmatmul.mubr.bf16.gmra.mrb[0].mxu0 %v1831
        %v1942 = vpop.f32.mrb[0].mxu0
        %v1943 = vadd.f32 0.0, %v1942
        %v1944 = vpop.f32.mrb[0].mxu0
        %v1945 = vpop.f32.mrb[0].mxu0
        %v1946 = vadd.f32 0.0, %v1945
        %v1947 = vpop.f32.mrb[0].mxu0
        %1948 = vmatprep.mubr.bf16.mxu0 0
        %1949 = vmatmul.mubr.bf16.gmra.mrb[0].mxu0 %v1834
        %v1950 = vpop.f32.mrb[0].mxu0
        %v1951 = vadd.f32 0.0, %v1950
        %v1952 = vpop.f32.mrb[0].mxu0
        %v1953 = vpop.f32.mrb[0].mxu0
        %v1954 = vadd.f32 0.0, %v1953
        %v1955 = vpop.f32.mrb[0].mxu0
        %1956 = vmatprep.mubr.bf16.mxu0 0
        %1957 = vmatmul.mubr.bf16.gmra.mrb[0].mxu0 %v1837
        %v1958 = vpop.f32.mrb[0].mxu0
        %v1959 = vadd.f32 0.0, %v1958
        %v1960 = vpop.f32.mrb[0].mxu0
        %v1961 = vpop.f32.mrb[0].mxu0
        %v1962 = vadd.f32 0.0, %v1961
        %v1963 = vpop.f32.mrb[0].mxu0
        %1964 = vmatprep.mubr.bf16.mxu0 0
        %1965 = vmatmul.mubr.bf16.gmra.mrb[0].mxu0 %v1840
        %v1966 = vpop.f32.mrb[0].mxu0
        %v1967 = vadd.f32 0.0, %v1966
        %v1968 = vpop.f32.mrb[0].mxu0
        %v1969 = vpop.f32.mrb[0].mxu0
        %v1970 = vadd.f32 0.0, %v1969
        %v1971 = vpop.f32.mrb[0].mxu0
        %1972 = vmatprep.mubr.bf16.mxu0 0
        %1973 = vmatmul.mubr.bf16.gmra.mrb[0].mxu0 %v1843
        %v1974 = vpop.f32.mrb[0].mxu0
        %v1975 = vadd.f32 0.0, %v1974
        %v1976 = vpop.f32.mrb[0].mxu0
        %v1977 = vpop.f32.mrb[0].mxu0
        %v1978 = vadd.f32 0.0, %v1977
        %v1979 = vpop.f32.mrb[0].mxu0
        %1980 = vmatprep.mubr.bf16.mxu0 0
        %1981 = vmatmul.mubr.bf16.gmra.mrb[0].mxu0 %v1846
        %v1982 = vpop.f32.mrb[0].mxu0
        %v1983 = vadd.f32 0.0, %v1982
        %v1984 = vpop.f32.mrb[0].mxu0
        %v1985 = vpop.f32.mrb[0].mxu0
        %v1986 = vadd.f32 0.0, %v1985
        %v1987 = vpop.f32.mrb[0].mxu0
        %1988 = vmatprep.mubr.bf16.mxu0 0
        %1989 = vmatmul.mubr.bf16.gmra.mrb[0].mxu0 %v1849
        %v1990 = vpop.f32.mrb[0].mxu0
        %v1991 = vadd.f32 0.0, %v1990
        %v1992 = vpop.f32.mrb[0].mxu0
        %v1993 = vpop.f32.mrb[0].mxu0
        %v1994 = vadd.f32 0.0, %v1993
        %v1995 = vpop.f32.mrb[0].mxu0
        %1996 = vmatprep.mubr.bf16.mxu0 0
        %1997 = vmatmul.mubr.bf16.gmra.mrb[0].mxu0 %v1852
        %v1998 = vpop.f32.mrb[0].mxu0
        %v1999 = vadd.f32 0.0, %v1998
        %v2000 = vpop.f32.mrb[0].mxu0
        %v2001 = vpop.f32.mrb[0].mxu0
        %v2002 = vadd.f32 0.0, %v2001
        %v2003 = vpop.f32.mrb[0].mxu0
        %2004 = vmatprep.mubr.bf16.mxu0 0
        %2005 = vmatmul.mubr.bf16.gmra.mrb[0].mxu0 %v1855
        %v2006 = vpop.f32.mrb[0].mxu0
        %v2007 = vadd.f32 0.0, %v2006
        %v2008 = vpop.f32.mrb[0].mxu0
        %v2009 = vpop.f32.mrb[0].mxu0
        %v2010 = vadd.f32 0.0, %v2009
        %v2011 = vpop.f32.mrb[0].mxu0
        %2012 = vmatprep.mubr.bf16.mxu0 0
        %2013 = vmatmul.mubr.bf16.gmra.mrb[0].mxu0 %v1858
        %v2014 = vpop.f32.mrb[0].mxu0
        %v2015 = vadd.f32 0.0, %v2014
        %v2016 = vpop.f32.mrb[0].mxu0
        %v2017 = vpop.f32.mrb[0].mxu0
        %v2018 = vadd.f32 0.0, %v2017
        %v2019 = vpop.f32.mrb[0].mxu0
        %2020 = vdwg.mxu0
        %v2021 = vadd.f32 %v1778, %v1895
        %v2022 = vadd.f32 %v1778, %v1898
        %v2023 = vadd.f32 %v1778, %v1903
        %v2024 = vadd.f32 %v1778, %v1906
        %v2025 = vadd.f32 %v1778, %v1911
        %v2026 = vadd.f32 %v1778, %v1914
        %v2027 = vadd.f32 %v1778, %v1919
        %v2028 = vadd.f32 %v1778, %v1922
        %v2029 = vadd.f32 %v1778, %v1927
        %v2030 = vadd.f32 %v1778, %v1930
        %v2031 = vadd.f32 %v1778, %v1935
        %v2032 = vadd.f32 %v1778, %v1938
        %v2033 = vadd.f32 %v1778, %v1943
        %v2034 = vadd.f32 %v1778, %v1946
        %v2035 = vadd.f32 %v1778, %v1951
        %v2036 = vadd.f32 %v1778, %v1954
        %v2037 = vadd.f32 %v1778, %v1959
        %v2038 = vadd.f32 %v1778, %v1962
        %v2039 = vadd.f32 %v1778, %v1967
        %v2040 = vadd.f32 %v1778, %v1970
        %v2041 = vadd.f32 %v1778, %v1975
        %v2042 = vadd.f32 %v1778, %v1978
        %v2043 = vadd.f32 %v1778, %v1983
        %v2044 = vadd.f32 %v1778, %v1986
        %v2045 = vadd.f32 %v1778, %v1991
        %v2046 = vadd.f32 %v1778, %v1994
        %v2047 = vadd.f32 %v1778, %v1999
        %v2048 = vadd.f32 %v1778, %v2002
        %v2049 = vadd.f32 %v1778, %v2007
        %v2050 = vadd.f32 %v1778, %v2010
        %v2051 = vadd.f32 %v1778, %v2015
        %v2052 = vadd.f32 %v1778, %v2018
        %v2053 = vld [vmem:[#allocation2] sm:$0xff]
        %v2054 = vld [vmem:[#allocation2 + $0x8] sm:$0xff]
        %v2055 = vld [vmem:[#allocation2 + $0x10] sm:$0xff]
        %v2056 = vld [vmem:[#allocation2 + $0x18] sm:$0xff]
        %v2057 = vld [vmem:[#allocation2 + $0x20] sm:$0xff]
        %v2058 = vld [vmem:[#allocation2 + $0x28] sm:$0xff]
        %v2059 = vld [vmem:[#allocation2 + $0x30] sm:$0xff]
        %v2060 = vld [vmem:[#allocation2 + $0x38] sm:$0xff]
        %v2061 = vld [vmem:[#allocation2 + $0x40] sm:$0xff]
        %v2062 = vld [vmem:[#allocation2 + $0x48] sm:$0xff]
        %v2063 = vld [vmem:[#allocation2 + $0x50] sm:$0xff]
        %v2064 = vld [vmem:[#allocation2 + $0x58] sm:$0xff]
        %v2065 = vld [vmem:[#allocation2 + $0x60] sm:$0xff]
        %v2066 = vld [vmem:[#allocation2 + $0x68] sm:$0xff]
        %v2067 = vld [vmem:[#allocation2 + $0x70] sm:$0xff]
        %v2068 = vld [vmem:[#allocation2 + $0x78] sm:$0xff]
        %s2069 = scalar_lea.vmem %s3, 16
        %v2070 = vld [vmem:[%s2069] sm:$0xf]
        %v2071 = vld [vmem:[%s2069 + $0x4] sm:$0xf]
        %v2072 = vld [vmem:[%s2069 + $0x8] sm:$0xf]
        %v2073 = vld [vmem:[%s2069 + $0xc] sm:$0xf]
        %v2078 = vunpack.c.l.b16 %v2070
        %v2079 = vunpack.c.l.b16 %v2071
        %v2080 = vunpack.c.l.b16 %v2072
        %v2081 = vunpack.c.l.b16 %v2073
        %v2082 = vpack.c.b16 %v2079, %v2078
        %v2083 = vpack.c.b16 %v2081, %v2080
        %v2087 = vsel %vm840, %v2053, 0
        %v2090 = vsel %vm840, %v2054, 0
        %v2093 = vsel %vm840, %v2055, 0
        %v2096 = vsel %vm840, %v2056, 0
        %v2099 = vsel %vm840, %v2057, 0
        %v2102 = vsel %vm840, %v2058, 0
        %v2105 = vsel %vm840, %v2059, 0
        %v2108 = vsel %vm840, %v2060, 0
        %v2111 = vsel %vm840, %v2061, 0
        %v2114 = vsel %vm840, %v2062, 0
        %v2117 = vsel %vm840, %v2063, 0
        %v2120 = vsel %vm840, %v2064, 0
        %v2123 = vsel %vm840, %v2065, 0
        %v2126 = vsel %vm840, %v2066, 0
        %v2129 = vsel %vm840, %v2067, 0
        %v2132 = vsel %vm840, %v2068, 0
        %2134 = vmatprep.subr.bf16.mxu0 0
        %2135 = vmatpush1.bf16.msra.mxu0 %v2082
        %2136 = vmatprep.subr.bf16.mxu0 0
        %2137 = vmatpush1.bf16.msra.mxu0 %v2083
        %2138 = vmatprep.subr.bf16.mxu0 0
        %2139 = vmatpush1.bf16.msra.mxu0 0
        %2140 = vmatprep.subr.bf16.mxu0 0
        %2141 = vmatpush1.bf16.msra.mxu0 0
        %2142 = vmatprep.subr.bf16.mxu0 0
        %2143 = vmatpush1.bf16.msra.mxu0 0
        %2144 = vmatprep.subr.bf16.mxu0 0
        %2145 = vmatpush1.bf16.msra.mxu0 0
        %2146 = vmatprep.subr.bf16.mxu0 0
        %2147 = vmatpush1.bf16.msra.mxu0 0
        %2148 = vmatprep.subr.bf16.mxu0 0
        %2149 = vmatpush1.bf16.msra.mxu0 0
        %2150 = vmatprep.subr.bf16.mxu0 0
        %2151 = vmatpush1.bf16.msra.mxu0 0
        %2152 = vmatprep.subr.bf16.mxu0 0
        %2153 = vmatpush1.bf16.msra.mxu0 0
        %2154 = vmatprep.subr.bf16.mxu0 0
        %2155 = vmatpush1.bf16.msra.mxu0 0
        %2156 = vmatprep.subr.bf16.mxu0 0
        %2157 = vmatpush1.bf16.msra.mxu0 0
        %2158 = vmatprep.subr.bf16.mxu0 0
        %2159 = vmatpush1.bf16.msra.mxu0 0
        %2160 = vmatprep.subr.bf16.mxu0 0
        %2161 = vmatpush1.bf16.msra.mxu0 0
        %2162 = vmatprep.subr.bf16.mxu0 0
        %2163 = vmatpush1.bf16.msra.mxu0 0
        %2164 = vmatprep.subr.bf16.mxu0 0
        %2165 = vmatpush1.bf16.msra.mxu0 0
        %2166 = vmatprep.mubr.bf16.mxu0 0
        %2167 = vmatmul.mubr.bf16.gmra.mrb[0].mxu0 %v2087
        %v2168 = vpop.f32.mrb[0].mxu0
        %v2169 = vadd.f32 0.0, %v2168
        %v2170 = vpop.f32.mrb[0].mxu0
        %v2171 = vpop.f32.mrb[0].mxu0
        %v2172 = vadd.f32 0.0, %v2171
        %v2173 = vpop.f32.mrb[0].mxu0
        %2174 = vmatprep.mubr.bf16.mxu0 0
        %2175 = vmatmul.mubr.bf16.gmra.mrb[0].mxu0 %v2090
        %v2176 = vpop.f32.mrb[0].mxu0
        %v2177 = vadd.f32 0.0, %v2176
        %v2178 = vpop.f32.mrb[0].mxu0
        %v2179 = vpop.f32.mrb[0].mxu0
        %v2180 = vadd.f32 0.0, %v2179
        %v2181 = vpop.f32.mrb[0].mxu0
        %2182 = vmatprep.mubr.bf16.mxu0 0
        %2183 = vmatmul.mubr.bf16.gmra.mrb[0].mxu0 %v2093
        %v2184 = vpop.f32.mrb[0].mxu0
        %v2185 = vadd.f32 0.0, %v2184
        %v2186 = vpop.f32.mrb[0].mxu0
        %v2187 = vpop.f32.mrb[0].mxu0
        %v2188 = vadd.f32 0.0, %v2187
        %v2189 = vpop.f32.mrb[0].mxu0
        %2190 = vmatprep.mubr.bf16.mxu0 0
        %2191 = vmatmul.mubr.bf16.gmra.mrb[0].mxu0 %v2096
        %v2192 = vpop.f32.mrb[0].mxu0
        %v2193 = vadd.f32 0.0, %v2192
        %v2194 = vpop.f32.mrb[0].mxu0
        %v2195 = vpop.f32.mrb[0].mxu0
        %v2196 = vadd.f32 0.0, %v2195
        %v2197 = vpop.f32.mrb[0].mxu0
        %2198 = vmatprep.mubr.bf16.mxu0 0
        %2199 = vmatmul.mubr.bf16.gmra.mrb[0].mxu0 %v2099
        %v2200 = vpop.f32.mrb[0].mxu0
        %v2201 = vadd.f32 0.0, %v2200
        %v2202 = vpop.f32.mrb[0].mxu0
        %v2203 = vpop.f32.mrb[0].mxu0
        %v2204 = vadd.f32 0.0, %v2203
        %v2205 = vpop.f32.mrb[0].mxu0
        %2206 = vmatprep.mubr.bf16.mxu0 0
        %2207 = vmatmul.mubr.bf16.gmra.mrb[0].mxu0 %v2102
        %v2208 = vpop.f32.mrb[0].mxu0
        %v2209 = vadd.f32 0.0, %v2208
        %v2210 = vpop.f32.mrb[0].mxu0
        %v2211 = vpop.f32.mrb[0].mxu0
        %v2212 = vadd.f32 0.0, %v2211
        %v2213 = vpop.f32.mrb[0].mxu0
        %2214 = vmatprep.mubr.bf16.mxu0 0
        %2215 = vmatmul.mubr.bf16.gmra.mrb[0].mxu0 %v2105
        %v2216 = vpop.f32.mrb[0].mxu0
        %v2217 = vadd.f32 0.0, %v2216
        %v2218 = vpop.f32.mrb[0].mxu0
        %v2219 = vpop.f32.mrb[0].mxu0
        %v2220 = vadd.f32 0.0, %v2219
        %v2221 = vpop.f32.mrb[0].mxu0
        %2222 = vmatprep.mubr.bf16.mxu0 0
        %2223 = vmatmul.mubr.bf16.gmra.mrb[0].mxu0 %v2108
        %v2224 = vpop.f32.mrb[0].mxu0
        %v2225 = vadd.f32 0.0, %v2224
        %v2226 = vpop.f32.mrb[0].mxu0
        %v2227 = vpop.f32.mrb[0].mxu0
        %v2228 = vadd.f32 0.0, %v2227
        %v2229 = vpop.f32.mrb[0].mxu0
        %2230 = vmatprep.mubr.bf16.mxu0 0
        %2231 = vmatmul.mubr.bf16.gmra.mrb[0].mxu0 %v2111
        %v2232 = vpop.f32.mrb[0].mxu0
        %v2233 = vadd.f32 0.0, %v2232
        %v2234 = vpop.f32.mrb[0].mxu0
        %v2235 = vpop.f32.mrb[0].mxu0
        %v2236 = vadd.f32 0.0, %v2235
        %v2237 = vpop.f32.mrb[0].mxu0
        %2238 = vmatprep.mubr.bf16.mxu0 0
        %2239 = vmatmul.mubr.bf16.gmra.mrb[0].mxu0 %v2114
        %v2240 = vpop.f32.mrb[0].mxu0
        %v2241 = vadd.f32 0.0, %v2240
        %v2242 = vpop.f32.mrb[0].mxu0
        %v2243 = vpop.f32.mrb[0].mxu0
        %v2244 = vadd.f32 0.0, %v2243
        %v2245 = vpop.f32.mrb[0].mxu0
        %2246 = vmatprep.mubr.bf16.mxu0 0
        %2247 = vmatmul.mubr.bf16.gmra.mrb[0].mxu0 %v2117
        %v2248 = vpop.f32.mrb[0].mxu0
        %v2249 = vadd.f32 0.0, %v2248
        %v2250 = vpop.f32.mrb[0].mxu0
        %v2251 = vpop.f32.mrb[0].mxu0
        %v2252 = vadd.f32 0.0, %v2251
        %v2253 = vpop.f32.mrb[0].mxu0
        %2254 = vmatprep.mubr.bf16.mxu0 0
        %2255 = vmatmul.mubr.bf16.gmra.mrb[0].mxu0 %v2120
        %v2256 = vpop.f32.mrb[0].mxu0
        %v2257 = vadd.f32 0.0, %v2256
        %v2258 = vpop.f32.mrb[0].mxu0
        %v2259 = vpop.f32.mrb[0].mxu0
        %v2260 = vadd.f32 0.0, %v2259
        %v2261 = vpop.f32.mrb[0].mxu0
        %2262 = vmatprep.mubr.bf16.mxu0 0
        %2263 = vmatmul.mubr.bf16.gmra.mrb[0].mxu0 %v2123
        %v2264 = vpop.f32.mrb[0].mxu0
        %v2265 = vadd.f32 0.0, %v2264
        %v2266 = vpop.f32.mrb[0].mxu0
        %v2267 = vpop.f32.mrb[0].mxu0
        %v2268 = vadd.f32 0.0, %v2267
        %v2269 = vpop.f32.mrb[0].mxu0
        %2270 = vmatprep.mubr.bf16.mxu0 0
        %2271 = vmatmul.mubr.bf16.gmra.mrb[0].mxu0 %v2126
        %v2272 = vpop.f32.mrb[0].mxu0
        %v2273 = vadd.f32 0.0, %v2272
        %v2274 = vpop.f32.mrb[0].mxu0
        %v2275 = vpop.f32.mrb[0].mxu0
        %v2276 = vadd.f32 0.0, %v2275
        %v2277 = vpop.f32.mrb[0].mxu0
        %2278 = vmatprep.mubr.bf16.mxu0 0
        %2279 = vmatmul.mubr.bf16.gmra.mrb[0].mxu0 %v2129
        %v2280 = vpop.f32.mrb[0].mxu0
        %v2281 = vadd.f32 0.0, %v2280
        %v2282 = vpop.f32.mrb[0].mxu0
        %v2283 = vpop.f32.mrb[0].mxu0
        %v2284 = vadd.f32 0.0, %v2283
        %v2285 = vpop.f32.mrb[0].mxu0
        %2286 = vmatprep.mubr.bf16.mxu0 0
        %2287 = vmatmul.mubr.bf16.gmra.mrb[0].mxu0 %v2132
        %v2288 = vpop.f32.mrb[0].mxu0
        %v2289 = vadd.f32 0.0, %v2288
        %v2290 = vpop.f32.mrb[0].mxu0
        %v2291 = vpop.f32.mrb[0].mxu0
        %v2292 = vadd.f32 0.0, %v2291
        %v2293 = vpop.f32.mrb[0].mxu0
        %2294 = vdwg.mxu0
        %v2295 = vadd.f32 %v2021, %v2169
        %v2296 = vadd.f32 %v2022, %v2172
        %v2297 = vadd.f32 %v2023, %v2177
        %v2298 = vadd.f32 %v2024, %v2180
        %v2299 = vadd.f32 %v2025, %v2185
        %v2300 = vadd.f32 %v2026, %v2188
        %v2301 = vadd.f32 %v2027, %v2193
        %v2302 = vadd.f32 %v2028, %v2196
        %v2303 = vadd.f32 %v2029, %v2201
        %v2304 = vadd.f32 %v2030, %v2204
        %v2305 = vadd.f32 %v2031, %v2209
        %v2306 = vadd.f32 %v2032, %v2212
        %v2307 = vadd.f32 %v2033, %v2217
        %v2308 = vadd.f32 %v2034, %v2220
        %v2309 = vadd.f32 %v2035, %v2225
        %v2310 = vadd.f32 %v2036, %v2228
        %v2311 = vadd.f32 %v2037, %v2233
        %v2312 = vadd.f32 %v2038, %v2236
        %v2313 = vadd.f32 %v2039, %v2241
        %v2314 = vadd.f32 %v2040, %v2244
        %v2315 = vadd.f32 %v2041, %v2249
        %v2316 = vadd.f32 %v2042, %v2252
        %v2317 = vadd.f32 %v2043, %v2257
        %v2318 = vadd.f32 %v2044, %v2260
        %v2319 = vadd.f32 %v2045, %v2265
        %v2320 = vadd.f32 %v2046, %v2268
        %v2321 = vadd.f32 %v2047, %v2273
        %v2322 = vadd.f32 %v2048, %v2276
        %v2323 = vadd.f32 %v2049, %v2281
        %v2324 = vadd.f32 %v2050, %v2284
        %v2325 = vadd.f32 %v2051, %v2289
        %v2326 = vadd.f32 %v2052, %v2292
        %v2327 = vld [vmem:[#allocation4] sm:$0xff]
        %v2328 = vld [vmem:[#allocation4 + $0x8] sm:$0xff]
        %v2329 = vld [vmem:[#allocation4 + $0x10] sm:$0xff]
        %v2330 = vld [vmem:[#allocation4 + $0x18] sm:$0xff]
        %v2331 = vld [vmem:[#allocation4 + $0x20] sm:$0xff]
        %v2332 = vld [vmem:[#allocation4 + $0x28] sm:$0xff]
        %v2333 = vld [vmem:[#allocation4 + $0x30] sm:$0xff]
        %v2334 = vld [vmem:[#allocation4 + $0x38] sm:$0xff]
        %v2335 = vld [vmem:[#allocation4 + $0x40] sm:$0xff]
        %v2336 = vld [vmem:[#allocation4 + $0x48] sm:$0xff]
        %v2337 = vld [vmem:[#allocation4 + $0x50] sm:$0xff]
        %v2338 = vld [vmem:[#allocation4 + $0x58] sm:$0xff]
        %v2339 = vld [vmem:[#allocation4 + $0x60] sm:$0xff]
        %v2340 = vld [vmem:[#allocation4 + $0x68] sm:$0xff]
        %v2341 = vld [vmem:[#allocation4 + $0x70] sm:$0xff]
        %v2342 = vld [vmem:[#allocation4 + $0x78] sm:$0xff]
        %s2343 = scalar_lea.vmem %s3, 32
        %v2344 = vld [vmem:[%s2343] sm:$0xf]
        %v2345 = vld [vmem:[%s2343 + $0x4] sm:$0xf]
        %v2346 = vld [vmem:[%s2343 + $0x8] sm:$0xf]
        %v2347 = vld [vmem:[%s2343 + $0xc] sm:$0xf]
        %v2352 = vunpack.c.l.b16 %v2344
        %v2353 = vunpack.c.l.b16 %v2345
        %v2354 = vunpack.c.l.b16 %v2346
        %v2355 = vunpack.c.l.b16 %v2347
        %v2356 = vpack.c.b16 %v2353, %v2352
        %v2357 = vpack.c.b16 %v2355, %v2354
        %v2361 = vsel %vm840, %v2327, 0
        %v2364 = vsel %vm840, %v2328, 0
        %v2367 = vsel %vm840, %v2329, 0
        %v2370 = vsel %vm840, %v2330, 0
        %v2373 = vsel %vm840, %v2331, 0
        %v2376 = vsel %vm840, %v2332, 0
        %v2379 = vsel %vm840, %v2333, 0
        %v2382 = vsel %vm840, %v2334, 0
        %v2385 = vsel %vm840, %v2335, 0
        %v2388 = vsel %vm840, %v2336, 0
        %v2391 = vsel %vm840, %v2337, 0
        %v2394 = vsel %vm840, %v2338, 0
        %v2397 = vsel %vm840, %v2339, 0
        %v2400 = vsel %vm840, %v2340, 0
        %v2403 = vsel %vm840, %v2341, 0
        %v2406 = vsel %vm840, %v2342, 0
        %2408 = vmatprep.subr.bf16.mxu0 0
        %2409 = vmatpush1.bf16.msra.mxu0 %v2356
        %2410 = vmatprep.subr.bf16.mxu0 0
        %2411 = vmatpush1.bf16.msra.mxu0 %v2357
        %2412 = vmatprep.subr.bf16.mxu0 0
        %2413 = vmatpush1.bf16.msra.mxu0 0
        %2414 = vmatprep.subr.bf16.mxu0 0
        %2415 = vmatpush1.bf16.msra.mxu0 0
        %2416 = vmatprep.subr.bf16.mxu0 0
        %2417 = vmatpush1.bf16.msra.mxu0 0
        %2418 = vmatprep.subr.bf16.mxu0 0
        %2419 = vmatpush1.bf16.msra.mxu0 0
        %2420 = vmatprep.subr.bf16.mxu0 0
        %2421 = vmatpush1.bf16.msra.mxu0 0
        %2422 = vmatprep.subr.bf16.mxu0 0
        %2423 = vmatpush1.bf16.msra.mxu0 0
        %2424 = vmatprep.subr.bf16.mxu0 0
        %2425 = vmatpush1.bf16.msra.mxu0 0
        %2426 = vmatprep.subr.bf16.mxu0 0
        %2427 = vmatpush1.bf16.msra.mxu0 0
        %2428 = vmatprep.subr.bf16.mxu0 0
        %2429 = vmatpush1.bf16.msra.mxu0 0
        %2430 = vmatprep.subr.bf16.mxu0 0
        %2431 = vmatpush1.bf16.msra.mxu0 0
        %2432 = vmatprep.subr.bf16.mxu0 0
        %2433 = vmatpush1.bf16.msra.mxu0 0
        %2434 = vmatprep.subr.bf16.mxu0 0
        %2435 = vmatpush1.bf16.msra.mxu0 0
        %2436 = vmatprep.subr.bf16.mxu0 0
        %2437 = vmatpush1.bf16.msra.mxu0 0
        %2438 = vmatprep.subr.bf16.mxu0 0
        %2439 = vmatpush1.bf16.msra.mxu0 0
        %2440 = vmatprep.mubr.bf16.mxu0 0
        %2441 = vmatmul.mubr.bf16.gmra.mrb[0].mxu0 %v2361
        %v2442 = vpop.f32.mrb[0].mxu0
        %v2443 = vadd.f32 0.0, %v2442
        %v2444 = vpop.f32.mrb[0].mxu0
        %v2445 = vpop.f32.mrb[0].mxu0
        %v2446 = vadd.f32 0.0, %v2445
        %v2447 = vpop.f32.mrb[0].mxu0
        %2448 = vmatprep.mubr.bf16.mxu0 0
        %2449 = vmatmul.mubr.bf16.gmra.mrb[0].mxu0 %v2364
        %v2450 = vpop.f32.mrb[0].mxu0
        %v2451 = vadd.f32 0.0, %v2450
        %v2452 = vpop.f32.mrb[0].mxu0
        %v2453 = vpop.f32.mrb[0].mxu0
        %v2454 = vadd.f32 0.0, %v2453
        %v2455 = vpop.f32.mrb[0].mxu0
        %2456 = vmatprep.mubr.bf16.mxu0 0
        %2457 = vmatmul.mubr.bf16.gmra.mrb[0].mxu0 %v2367
        %v2458 = vpop.f32.mrb[0].mxu0
        %v2459 = vadd.f32 0.0, %v2458
        %v2460 = vpop.f32.mrb[0].mxu0
        %v2461 = vpop.f32.mrb[0].mxu0
        %v2462 = vadd.f32 0.0, %v2461
        %v2463 = vpop.f32.mrb[0].mxu0
        %2464 = vmatprep.mubr.bf16.mxu0 0
        %2465 = vmatmul.mubr.bf16.gmra.mrb[0].mxu0 %v2370
        %v2466 = vpop.f32.mrb[0].mxu0
        %v2467 = vadd.f32 0.0, %v2466
        %v2468 = vpop.f32.mrb[0].mxu0
        %v2469 = vpop.f32.mrb[0].mxu0
        %v2470 = vadd.f32 0.0, %v2469
        %v2471 = vpop.f32.mrb[0].mxu0
        %2472 = vmatprep.mubr.bf16.mxu0 0
        %2473 = vmatmul.mubr.bf16.gmra.mrb[0].mxu0 %v2373
        %v2474 = vpop.f32.mrb[0].mxu0
        %v2475 = vadd.f32 0.0, %v2474
        %v2476 = vpop.f32.mrb[0].mxu0
        %v2477 = vpop.f32.mrb[0].mxu0
        %v2478 = vadd.f32 0.0, %v2477
        %v2479 = vpop.f32.mrb[0].mxu0
        %2480 = vmatprep.mubr.bf16.mxu0 0
        %2481 = vmatmul.mubr.bf16.gmra.mrb[0].mxu0 %v2376
        %v2482 = vpop.f32.mrb[0].mxu0
        %v2483 = vadd.f32 0.0, %v2482
        %v2484 = vpop.f32.mrb[0].mxu0
        %v2485 = vpop.f32.mrb[0].mxu0
        %v2486 = vadd.f32 0.0, %v2485
        %v2487 = vpop.f32.mrb[0].mxu0
        %2488 = vmatprep.mubr.bf16.mxu0 0
        %2489 = vmatmul.mubr.bf16.gmra.mrb[0].mxu0 %v2379
        %v2490 = vpop.f32.mrb[0].mxu0
        %v2491 = vadd.f32 0.0, %v2490
        %v2492 = vpop.f32.mrb[0].mxu0
        %v2493 = vpop.f32.mrb[0].mxu0
        %v2494 = vadd.f32 0.0, %v2493
        %v2495 = vpop.f32.mrb[0].mxu0
        %2496 = vmatprep.mubr.bf16.mxu0 0
        %2497 = vmatmul.mubr.bf16.gmra.mrb[0].mxu0 %v2382
        %v2498 = vpop.f32.mrb[0].mxu0
        %v2499 = vadd.f32 0.0, %v2498
        %v2500 = vpop.f32.mrb[0].mxu0
        %v2501 = vpop.f32.mrb[0].mxu0
        %v2502 = vadd.f32 0.0, %v2501
        %v2503 = vpop.f32.mrb[0].mxu0
        %2504 = vmatprep.mubr.bf16.mxu0 0
        %2505 = vmatmul.mubr.bf16.gmra.mrb[0].mxu0 %v2385
        %v2506 = vpop.f32.mrb[0].mxu0
        %v2507 = vadd.f32 0.0, %v2506
        %v2508 = vpop.f32.mrb[0].mxu0
        %v2509 = vpop.f32.mrb[0].mxu0
        %v2510 = vadd.f32 0.0, %v2509
        %v2511 = vpop.f32.mrb[0].mxu0
        %2512 = vmatprep.mubr.bf16.mxu0 0
        %2513 = vmatmul.mubr.bf16.gmra.mrb[0].mxu0 %v2388
        %v2514 = vpop.f32.mrb[0].mxu0
        %v2515 = vadd.f32 0.0, %v2514
        %v2516 = vpop.f32.mrb[0].mxu0
        %v2517 = vpop.f32.mrb[0].mxu0
        %v2518 = vadd.f32 0.0, %v2517
        %v2519 = vpop.f32.mrb[0].mxu0
        %2520 = vmatprep.mubr.bf16.mxu0 0
        %2521 = vmatmul.mubr.bf16.gmra.mrb[0].mxu0 %v2391
        %v2522 = vpop.f32.mrb[0].mxu0
        %v2523 = vadd.f32 0.0, %v2522
        %v2524 = vpop.f32.mrb[0].mxu0
        %v2525 = vpop.f32.mrb[0].mxu0
        %v2526 = vadd.f32 0.0, %v2525
        %v2527 = vpop.f32.mrb[0].mxu0
        %2528 = vmatprep.mubr.bf16.mxu0 0
        %2529 = vmatmul.mubr.bf16.gmra.mrb[0].mxu0 %v2394
        %v2530 = vpop.f32.mrb[0].mxu0
        %v2531 = vadd.f32 0.0, %v2530
        %v2532 = vpop.f32.mrb[0].mxu0
        %v2533 = vpop.f32.mrb[0].mxu0
        %v2534 = vadd.f32 0.0, %v2533
        %v2535 = vpop.f32.mrb[0].mxu0
        %2536 = vmatprep.mubr.bf16.mxu0 0
        %2537 = vmatmul.mubr.bf16.gmra.mrb[0].mxu0 %v2397
        %v2538 = vpop.f32.mrb[0].mxu0
        %v2539 = vadd.f32 0.0, %v2538
        %v2540 = vpop.f32.mrb[0].mxu0
        %v2541 = vpop.f32.mrb[0].mxu0
        %v2542 = vadd.f32 0.0, %v2541
        %v2543 = vpop.f32.mrb[0].mxu0
        %2544 = vmatprep.mubr.bf16.mxu0 0
        %2545 = vmatmul.mubr.bf16.gmra.mrb[0].mxu0 %v2400
        %v2546 = vpop.f32.mrb[0].mxu0
        %v2547 = vadd.f32 0.0, %v2546
        %v2548 = vpop.f32.mrb[0].mxu0
        %v2549 = vpop.f32.mrb[0].mxu0
        %v2550 = vadd.f32 0.0, %v2549
        %v2551 = vpop.f32.mrb[0].mxu0
        %2552 = vmatprep.mubr.bf16.mxu0 0
        %2553 = vmatmul.mubr.bf16.gmra.mrb[0].mxu0 %v2403
        %v2554 = vpop.f32.mrb[0].mxu0
        %v2555 = vadd.f32 0.0, %v2554
        %v2556 = vpop.f32.mrb[0].mxu0
        %v2557 = vpop.f32.mrb[0].mxu0
        %v2558 = vadd.f32 0.0, %v2557
        %v2559 = vpop.f32.mrb[0].mxu0
        %2560 = vmatprep.mubr.bf16.mxu0 0
        %2561 = vmatmul.mubr.bf16.gmra.mrb[0].mxu0 %v2406
        %v2562 = vpop.f32.mrb[0].mxu0
        %v2563 = vadd.f32 0.0, %v2562
        %v2564 = vpop.f32.mrb[0].mxu0
        %v2565 = vpop.f32.mrb[0].mxu0
        %v2566 = vadd.f32 0.0, %v2565
        %v2567 = vpop.f32.mrb[0].mxu0
        %2568 = vdwg.mxu0
        %v2569 = vadd.f32 %v2295, %v2443
        %v2570 = vadd.f32 %v2296, %v2446
        %v2571 = vadd.f32 %v2297, %v2451
        %v2572 = vadd.f32 %v2298, %v2454
        %v2573 = vadd.f32 %v2299, %v2459
        %v2574 = vadd.f32 %v2300, %v2462
        %v2575 = vadd.f32 %v2301, %v2467
        %v2576 = vadd.f32 %v2302, %v2470
        %v2577 = vadd.f32 %v2303, %v2475
        %v2578 = vadd.f32 %v2304, %v2478
        %v2579 = vadd.f32 %v2305, %v2483
        %v2580 = vadd.f32 %v2306, %v2486
        %v2581 = vadd.f32 %v2307, %v2491
        %v2582 = vadd.f32 %v2308, %v2494
        %v2583 = vadd.f32 %v2309, %v2499
        %v2584 = vadd.f32 %v2310, %v2502
        %v2585 = vadd.f32 %v2311, %v2507
        %v2586 = vadd.f32 %v2312, %v2510
        %v2587 = vadd.f32 %v2313, %v2515
        %v2588 = vadd.f32 %v2314, %v2518
        %v2589 = vadd.f32 %v2315, %v2523
        %v2590 = vadd.f32 %v2316, %v2526
        %v2591 = vadd.f32 %v2317, %v2531
        %v2592 = vadd.f32 %v2318, %v2534
        %v2593 = vadd.f32 %v2319, %v2539
        %v2594 = vadd.f32 %v2320, %v2542
        %v2595 = vadd.f32 %v2321, %v2547
        %v2596 = vadd.f32 %v2322, %v2550
        %v2597 = vadd.f32 %v2323, %v2555
        %v2598 = vadd.f32 %v2324, %v2558
        %v2599 = vadd.f32 %v2325, %v2563
        %v2600 = vadd.f32 %v2326, %v2566
        %v2601 = vld [vmem:[#allocation3 + $0x8] sm:$0xff]
        %v2602 = vld [vmem:[#allocation3 + $0x10] sm:$0xff]
        %v2603 = vld [vmem:[#allocation3 + $0x18] sm:$0xff]
        %v2604 = vld [vmem:[#allocation3 + $0x20] sm:$0xff]
        %v2605 = vld [vmem:[#allocation3 + $0x28] sm:$0xff]
        %v2606 = vld [vmem:[#allocation3 + $0x30] sm:$0xff]
        %v2607 = vld [vmem:[#allocation3 + $0x38] sm:$0xff]
        %v2608 = vld [vmem:[#allocation3 + $0x40] sm:$0xff]
        %v2609 = vld [vmem:[#allocation3 + $0x48] sm:$0xff]
        %v2610 = vld [vmem:[#allocation3 + $0x50] sm:$0xff]
        %v2611 = vld [vmem:[#allocation3 + $0x58] sm:$0xff]
        %v2612 = vld [vmem:[#allocation3 + $0x60] sm:$0xff]
        %v2613 = vld [vmem:[#allocation3 + $0x68] sm:$0xff]
        %v2614 = vld [vmem:[#allocation3 + $0x70] sm:$0xff]
        %v2615 = vld [vmem:[#allocation3 + $0x78] sm:$0xff]
        %v2616 = vld [vmem:[#allocation3 + $0x80] sm:$0xff]
        %s2617 = scalar_lea.vmem %s3, 48
        %v2618 = vld [vmem:[%s2617] sm:$0xf]
        %v2619 = vld [vmem:[%s2617 + $0x4] sm:$0xf]
        %v2620 = vld [vmem:[%s2617 + $0x8] sm:$0xf]
        %v2621 = vld [vmem:[%s2617 + $0xc] sm:$0xf]
        %v2626 = vunpack.c.l.b16 %v2618
        %v2627 = vunpack.c.l.b16 %v2619
        %v2628 = vunpack.c.l.b16 %v2620
        %v2629 = vunpack.c.l.b16 %v2621
        %v2630 = vpack.c.b16 %v2627, %v2626
        %v2631 = vpack.c.b16 %v2629, %v2628
        %v2635 = vsel %vm840, %v2601, 0
        %v2638 = vsel %vm840, %v2602, 0
        %v2641 = vsel %vm840, %v2603, 0
        %v2644 = vsel %vm840, %v2604, 0
        %v2647 = vsel %vm840, %v2605, 0
        %v2650 = vsel %vm840, %v2606, 0
        %v2653 = vsel %vm840, %v2607, 0
        %v2656 = vsel %vm840, %v2608, 0
        %v2659 = vsel %vm840, %v2609, 0
        %v2662 = vsel %vm840, %v2610, 0
        %v2665 = vsel %vm840, %v2611, 0
        %v2668 = vsel %vm840, %v2612, 0
        %v2671 = vsel %vm840, %v2613, 0
        %v2674 = vsel %vm840, %v2614, 0
        %v2677 = vsel %vm840, %v2615, 0
        %v2680 = vsel %vm840, %v2616, 0
        %2682 = vmatprep.subr.bf16.mxu0 0
        %2683 = vmatpush1.bf16.msra.mxu0 %v2630
        %2684 = vmatprep.subr.bf16.mxu0 0
        %2685 = vmatpush1.bf16.msra.mxu0 %v2631
        %2686 = vmatprep.subr.bf16.mxu0 0
        %2687 = vmatpush1.bf16.msra.mxu0 0
        %2688 = vmatprep.subr.bf16.mxu0 0
        %2689 = vmatpush1.bf16.msra.mxu0 0
        %2690 = vmatprep.subr.bf16.mxu0 0
        %2691 = vmatpush1.bf16.msra.mxu0 0
        %2692 = vmatprep.subr.bf16.mxu0 0
        %2693 = vmatpush1.bf16.msra.mxu0 0
        %2694 = vmatprep.subr.bf16.mxu0 0
        %2695 = vmatpush1.bf16.msra.mxu0 0
        %2696 = vmatprep.subr.bf16.mxu0 0
        %2697 = vmatpush1.bf16.msra.mxu0 0
        %2698 = vmatprep.subr.bf16.mxu0 0
        %2699 = vmatpush1.bf16.msra.mxu0 0
        %2700 = vmatprep.subr.bf16.mxu0 0
        %2701 = vmatpush1.bf16.msra.mxu0 0
        %2702 = vmatprep.subr.bf16.mxu0 0
        %2703 = vmatpush1.bf16.msra.mxu0 0
        %2704 = vmatprep.subr.bf16.mxu0 0
        %2705 = vmatpush1.bf16.msra.mxu0 0
        %2706 = vmatprep.subr.bf16.mxu0 0
        %2707 = vmatpush1.bf16.msra.mxu0 0
        %2708 = vmatprep.subr.bf16.mxu0 0
        %2709 = vmatpush1.bf16.msra.mxu0 0
        %2710 = vmatprep.subr.bf16.mxu0 0
        %2711 = vmatpush1.bf16.msra.mxu0 0
        %2712 = vmatprep.subr.bf16.mxu0 0
        %2713 = vmatpush1.bf16.msra.mxu0 0
        %2714 = vmatprep.mubr.bf16.mxu0 0
        %2715 = vmatmul.mubr.bf16.gmra.mrb[0].mxu0 %v2635
        %v2716 = vpop.f32.mrb[0].mxu0
        %v2717 = vadd.f32 0.0, %v2716
        %v2718 = vpop.f32.mrb[0].mxu0
        %v2719 = vpop.f32.mrb[0].mxu0
        %v2720 = vadd.f32 0.0, %v2719
        %v2721 = vpop.f32.mrb[0].mxu0
        %2722 = vmatprep.mubr.bf16.mxu0 0
        %2723 = vmatmul.mubr.bf16.gmra.mrb[0].mxu0 %v2638
        %v2724 = vpop.f32.mrb[0].mxu0
        %v2725 = vadd.f32 0.0, %v2724
        %v2726 = vpop.f32.mrb[0].mxu0
        %v2727 = vpop.f32.mrb[0].mxu0
        %v2728 = vadd.f32 0.0, %v2727
        %v2729 = vpop.f32.mrb[0].mxu0
        %2730 = vmatprep.mubr.bf16.mxu0 0
        %2731 = vmatmul.mubr.bf16.gmra.mrb[0].mxu0 %v2641
        %v2732 = vpop.f32.mrb[0].mxu0
        %v2733 = vadd.f32 0.0, %v2732
        %v2734 = vpop.f32.mrb[0].mxu0
        %v2735 = vpop.f32.mrb[0].mxu0
        %v2736 = vadd.f32 0.0, %v2735
        %v2737 = vpop.f32.mrb[0].mxu0
        %2738 = vmatprep.mubr.bf16.mxu0 0
        %2739 = vmatmul.mubr.bf16.gmra.mrb[0].mxu0 %v2644
        %v2740 = vpop.f32.mrb[0].mxu0
        %v2741 = vadd.f32 0.0, %v2740
        %v2742 = vpop.f32.mrb[0].mxu0
        %v2743 = vpop.f32.mrb[0].mxu0
        %v2744 = vadd.f32 0.0, %v2743
        %v2745 = vpop.f32.mrb[0].mxu0
        %2746 = vmatprep.mubr.bf16.mxu0 0
        %2747 = vmatmul.mubr.bf16.gmra.mrb[0].mxu0 %v2647
        %v2748 = vpop.f32.mrb[0].mxu0
        %v2749 = vadd.f32 0.0, %v2748
        %v2750 = vpop.f32.mrb[0].mxu0
        %v2751 = vpop.f32.mrb[0].mxu0
        %v2752 = vadd.f32 0.0, %v2751
        %v2753 = vpop.f32.mrb[0].mxu0
        %2754 = vmatprep.mubr.bf16.mxu0 0
        %2755 = vmatmul.mubr.bf16.gmra.mrb[0].mxu0 %v2650
        %v2756 = vpop.f32.mrb[0].mxu0
        %v2757 = vadd.f32 0.0, %v2756
        %v2758 = vpop.f32.mrb[0].mxu0
        %v2759 = vpop.f32.mrb[0].mxu0
        %v2760 = vadd.f32 0.0, %v2759
        %v2761 = vpop.f32.mrb[0].mxu0
        %2762 = vmatprep.mubr.bf16.mxu0 0
        %2763 = vmatmul.mubr.bf16.gmra.mrb[0].mxu0 %v2653
        %v2764 = vpop.f32.mrb[0].mxu0
        %v2765 = vadd.f32 0.0, %v2764
        %v2766 = vpop.f32.mrb[0].mxu0
        %v2767 = vpop.f32.mrb[0].mxu0
        %v2768 = vadd.f32 0.0, %v2767
        %v2769 = vpop.f32.mrb[0].mxu0
        %2770 = vmatprep.mubr.bf16.mxu0 0
        %2771 = vmatmul.mubr.bf16.gmra.mrb[0].mxu0 %v2656
        %v2772 = vpop.f32.mrb[0].mxu0
        %v2773 = vadd.f32 0.0, %v2772
        %v2774 = vpop.f32.mrb[0].mxu0
        %v2775 = vpop.f32.mrb[0].mxu0
        %v2776 = vadd.f32 0.0, %v2775
        %v2777 = vpop.f32.mrb[0].mxu0
        %2778 = vmatprep.mubr.bf16.mxu0 0
        %2779 = vmatmul.mubr.bf16.gmra.mrb[0].mxu0 %v2659
        %v2780 = vpop.f32.mrb[0].mxu0
        %v2781 = vadd.f32 0.0, %v2780
        %v2782 = vpop.f32.mrb[0].mxu0
        %v2783 = vpop.f32.mrb[0].mxu0
        %v2784 = vadd.f32 0.0, %v2783
        %v2785 = vpop.f32.mrb[0].mxu0
        %2786 = vmatprep.mubr.bf16.mxu0 0
        %2787 = vmatmul.mubr.bf16.gmra.mrb[0].mxu0 %v2662
        %v2788 = vpop.f32.mrb[0].mxu0
        %v2789 = vadd.f32 0.0, %v2788
        %v2790 = vpop.f32.mrb[0].mxu0
        %v2791 = vpop.f32.mrb[0].mxu0
        %v2792 = vadd.f32 0.0, %v2791
        %v2793 = vpop.f32.mrb[0].mxu0
        %2794 = vmatprep.mubr.bf16.mxu0 0
        %2795 = vmatmul.mubr.bf16.gmra.mrb[0].mxu0 %v2665
        %v2796 = vpop.f32.mrb[0].mxu0
        %v2797 = vadd.f32 0.0, %v2796
        %v2798 = vpop.f32.mrb[0].mxu0
        %v2799 = vpop.f32.mrb[0].mxu0
        %v2800 = vadd.f32 0.0, %v2799
        %v2801 = vpop.f32.mrb[0].mxu0
        %2802 = vmatprep.mubr.bf16.mxu0 0
        %2803 = vmatmul.mubr.bf16.gmra.mrb[0].mxu0 %v2668
        %v2804 = vpop.f32.mrb[0].mxu0
        %v2805 = vadd.f32 0.0, %v2804
        %v2806 = vpop.f32.mrb[0].mxu0
        %v2807 = vpop.f32.mrb[0].mxu0
        %v2808 = vadd.f32 0.0, %v2807
        %v2809 = vpop.f32.mrb[0].mxu0
        %2810 = vmatprep.mubr.bf16.mxu0 0
        %2811 = vmatmul.mubr.bf16.gmra.mrb[0].mxu0 %v2671
        %v2812 = vpop.f32.mrb[0].mxu0
        %v2813 = vadd.f32 0.0, %v2812
        %v2814 = vpop.f32.mrb[0].mxu0
        %v2815 = vpop.f32.mrb[0].mxu0
        %v2816 = vadd.f32 0.0, %v2815
        %v2817 = vpop.f32.mrb[0].mxu0
        %2818 = vmatprep.mubr.bf16.mxu0 0
        %2819 = vmatmul.mubr.bf16.gmra.mrb[0].mxu0 %v2674
        %v2820 = vpop.f32.mrb[0].mxu0
        %v2821 = vadd.f32 0.0, %v2820
        %v2822 = vpop.f32.mrb[0].mxu0
        %v2823 = vpop.f32.mrb[0].mxu0
        %v2824 = vadd.f32 0.0, %v2823
        %v2825 = vpop.f32.mrb[0].mxu0
        %2826 = vmatprep.mubr.bf16.mxu0 0
        %2827 = vmatmul.mubr.bf16.gmra.mrb[0].mxu0 %v2677
        %v2828 = vpop.f32.mrb[0].mxu0
        %v2829 = vadd.f32 0.0, %v2828
        %v2830 = vpop.f32.mrb[0].mxu0
        %v2831 = vpop.f32.mrb[0].mxu0
        %v2832 = vadd.f32 0.0, %v2831
        %v2833 = vpop.f32.mrb[0].mxu0
        %2834 = vmatprep.mubr.bf16.mxu0 0
        %2835 = vmatmul.mubr.bf16.gmra.mrb[0].mxu0 %v2680
        %v2836 = vpop.f32.mrb[0].mxu0
        %v2837 = vadd.f32 0.0, %v2836
        %v2838 = vpop.f32.mrb[0].mxu0
        %v2839 = vpop.f32.mrb[0].mxu0
        %v2840 = vadd.f32 0.0, %v2839
        %v2841 = vpop.f32.mrb[0].mxu0
        %2842 = vdwg.mxu0
        %v2843 = vadd.f32 %v2569, %v2717
        %v2844 = vadd.f32 %v2570, %v2720
        %v2845 = vadd.f32 %v2571, %v2725
        %v2846 = vadd.f32 %v2572, %v2728
        %v2847 = vadd.f32 %v2573, %v2733
        %v2848 = vadd.f32 %v2574, %v2736
        %v2849 = vadd.f32 %v2575, %v2741
        %v2850 = vadd.f32 %v2576, %v2744
        %v2851 = vadd.f32 %v2577, %v2749
        %v2852 = vadd.f32 %v2578, %v2752
        %v2853 = vadd.f32 %v2579, %v2757
        %v2854 = vadd.f32 %v2580, %v2760
        %v2855 = vadd.f32 %v2581, %v2765
        %v2856 = vadd.f32 %v2582, %v2768
        %v2857 = vadd.f32 %v2583, %v2773
        %v2858 = vadd.f32 %v2584, %v2776
        %v2859 = vadd.f32 %v2585, %v2781
        %v2860 = vadd.f32 %v2586, %v2784
        %v2861 = vadd.f32 %v2587, %v2789
        %v2862 = vadd.f32 %v2588, %v2792
        %v2863 = vadd.f32 %v2589, %v2797
        %v2864 = vadd.f32 %v2590, %v2800
        %v2865 = vadd.f32 %v2591, %v2805
        %v2866 = vadd.f32 %v2592, %v2808
        %v2867 = vadd.f32 %v2593, %v2813
        %v2868 = vadd.f32 %v2594, %v2816
        %v2869 = vadd.f32 %v2595, %v2821
        %v2870 = vadd.f32 %v2596, %v2824
        %v2871 = vadd.f32 %v2597, %v2829
        %v2872 = vadd.f32 %v2598, %v2832
        %v2873 = vadd.f32 %v2599, %v2837
        %v2874 = vadd.f32 %v2600, %v2840
        %v2875 = vld [vmem:[#allocation2 + $0x8] sm:$0xff]
        %v2876 = vld [vmem:[#allocation2 + $0x10] sm:$0xff]
        %v2877 = vld [vmem:[#allocation2 + $0x18] sm:$0xff]
        %v2878 = vld [vmem:[#allocation2 + $0x20] sm:$0xff]
        %v2879 = vld [vmem:[#allocation2 + $0x28] sm:$0xff]
        %v2880 = vld [vmem:[#allocation2 + $0x30] sm:$0xff]
        %v2881 = vld [vmem:[#allocation2 + $0x38] sm:$0xff]
        %v2882 = vld [vmem:[#allocation2 + $0x40] sm:$0xff]
        %v2883 = vld [vmem:[#allocation2 + $0x48] sm:$0xff]
        %v2884 = vld [vmem:[#allocation2 + $0x50] sm:$0xff]
        %v2885 = vld [vmem:[#allocation2 + $0x58] sm:$0xff]
        %v2886 = vld [vmem:[#allocation2 + $0x60] sm:$0xff]
        %v2887 = vld [vmem:[#allocation2 + $0x68] sm:$0xff]
        %v2888 = vld [vmem:[#allocation2 + $0x70] sm:$0xff]
        %v2889 = vld [vmem:[#allocation2 + $0x78] sm:$0xff]
        %v2890 = vld [vmem:[#allocation2 + $0x80] sm:$0xff]
        %s2891 = scalar_lea.vmem %s3, 64
        %v2892 = vld [vmem:[%s2891] sm:$0xf]
        %v2893 = vld [vmem:[%s2891 + $0x4] sm:$0xf]
        %v2894 = vld [vmem:[%s2891 + $0x8] sm:$0xf]
        %v2895 = vld [vmem:[%s2891 + $0xc] sm:$0xf]
        %v2900 = vunpack.c.l.b16 %v2892
        %v2901 = vunpack.c.l.b16 %v2893
        %v2902 = vunpack.c.l.b16 %v2894
        %v2903 = vunpack.c.l.b16 %v2895
        %v2904 = vpack.c.b16 %v2901, %v2900
        %v2905 = vpack.c.b16 %v2903, %v2902
        %v2909 = vsel %vm840, %v2875, 0
        %v2912 = vsel %vm840, %v2876, 0
        %v2915 = vsel %vm840, %v2877, 0
        %v2918 = vsel %vm840, %v2878, 0
        %v2921 = vsel %vm840, %v2879, 0
        %v2924 = vsel %vm840, %v2880, 0
        %v2927 = vsel %vm840, %v2881, 0
        %v2930 = vsel %vm840, %v2882, 0
        %v2933 = vsel %vm840, %v2883, 0
        %v2936 = vsel %vm840, %v2884, 0
        %v2939 = vsel %vm840, %v2885, 0
        %v2942 = vsel %vm840, %v2886, 0
        %v2945 = vsel %vm840, %v2887, 0
        %v2948 = vsel %vm840, %v2888, 0
        %v2951 = vsel %vm840, %v2889, 0
        %v2954 = vsel %vm840, %v2890, 0
        %2956 = vmatprep.subr.bf16.mxu0 0
        %2957 = vmatpush1.bf16.msra.mxu0 %v2904
        %2958 = vmatprep.subr.bf16.mxu0 0
        %2959 = vmatpush1.bf16.msra.mxu0 %v2905
        %2960 = vmatprep.subr.bf16.mxu0 0
        %2961 = vmatpush1.bf16.msra.mxu0 0
        %2962 = vmatprep.subr.bf16.mxu0 0
        %2963 = vmatpush1.bf16.msra.mxu0 0
        %2964 = vmatprep.subr.bf16.mxu0 0
        %2965 = vmatpush1.bf16.msra.mxu0 0
        %2966 = vmatprep.subr.bf16.mxu0 0
        %2967 = vmatpush1.bf16.msra.mxu0 0
        %2968 = vmatprep.subr.bf16.mxu0 0
        %2969 = vmatpush1.bf16.msra.mxu0 0
        %2970 = vmatprep.subr.bf16.mxu0 0
        %2971 = vmatpush1.bf16.msra.mxu0 0
        %2972 = vmatprep.subr.bf16.mxu0 0
        %2973 = vmatpush1.bf16.msra.mxu0 0
        %2974 = vmatprep.subr.bf16.mxu0 0
        %2975 = vmatpush1.bf16.msra.mxu0 0
        %2976 = vmatprep.subr.bf16.mxu0 0
        %2977 = vmatpush1.bf16.msra.mxu0 0
        %2978 = vmatprep.subr.bf16.mxu0 0
        %2979 = vmatpush1.bf16.msra.mxu0 0
        %2980 = vmatprep.subr.bf16.mxu0 0
        %2981 = vmatpush1.bf16.msra.mxu0 0
        %2982 = vmatprep.subr.bf16.mxu0 0
        %2983 = vmatpush1.bf16.msra.mxu0 0
        %2984 = vmatprep.subr.bf16.mxu0 0
        %2985 = vmatpush1.bf16.msra.mxu0 0
        %2986 = vmatprep.subr.bf16.mxu0 0
        %2987 = vmatpush1.bf16.msra.mxu0 0
        %2988 = vmatprep.mubr.bf16.mxu0 0
        %2989 = vmatmul.mubr.bf16.gmra.mrb[0].mxu0 %v2909
        %v2990 = vpop.f32.mrb[0].mxu0
        %v2991 = vadd.f32 0.0, %v2990
        %v2992 = vpop.f32.mrb[0].mxu0
        %v2993 = vpop.f32.mrb[0].mxu0
        %v2994 = vadd.f32 0.0, %v2993
        %v2995 = vpop.f32.mrb[0].mxu0
        %2996 = vmatprep.mubr.bf16.mxu0 0
        %2997 = vmatmul.mubr.bf16.gmra.mrb[0].mxu0 %v2912
        %v2998 = vpop.f32.mrb[0].mxu0
        %v2999 = vadd.f32 0.0, %v2998
        %v3000 = vpop.f32.mrb[0].mxu0
        %v3001 = vpop.f32.mrb[0].mxu0
        %v3002 = vadd.f32 0.0, %v3001
        %v3003 = vpop.f32.mrb[0].mxu0
        %3004 = vmatprep.mubr.bf16.mxu0 0
        %3005 = vmatmul.mubr.bf16.gmra.mrb[0].mxu0 %v2915
        %v3006 = vpop.f32.mrb[0].mxu0
        %v3007 = vadd.f32 0.0, %v3006
        %v3008 = vpop.f32.mrb[0].mxu0
        %v3009 = vpop.f32.mrb[0].mxu0
        %v3010 = vadd.f32 0.0, %v3009
        %v3011 = vpop.f32.mrb[0].mxu0
        %3012 = vmatprep.mubr.bf16.mxu0 0
        %3013 = vmatmul.mubr.bf16.gmra.mrb[0].mxu0 %v2918
        %v3014 = vpop.f32.mrb[0].mxu0
        %v3015 = vadd.f32 0.0, %v3014
        %v3016 = vpop.f32.mrb[0].mxu0
        %v3017 = vpop.f32.mrb[0].mxu0
        %v3018 = vadd.f32 0.0, %v3017
        %v3019 = vpop.f32.mrb[0].mxu0
        %3020 = vmatprep.mubr.bf16.mxu0 0
        %3021 = vmatmul.mubr.bf16.gmra.mrb[0].mxu0 %v2921
        %v3022 = vpop.f32.mrb[0].mxu0
        %v3023 = vadd.f32 0.0, %v3022
        %v3024 = vpop.f32.mrb[0].mxu0
        %v3025 = vpop.f32.mrb[0].mxu0
        %v3026 = vadd.f32 0.0, %v3025
        %v3027 = vpop.f32.mrb[0].mxu0
        %3028 = vmatprep.mubr.bf16.mxu0 0
        %3029 = vmatmul.mubr.bf16.gmra.mrb[0].mxu0 %v2924
        %v3030 = vpop.f32.mrb[0].mxu0
        %v3031 = vadd.f32 0.0, %v3030
        %v3032 = vpop.f32.mrb[0].mxu0
        %v3033 = vpop.f32.mrb[0].mxu0
        %v3034 = vadd.f32 0.0, %v3033
        %v3035 = vpop.f32.mrb[0].mxu0
        %3036 = vmatprep.mubr.bf16.mxu0 0
        %3037 = vmatmul.mubr.bf16.gmra.mrb[0].mxu0 %v2927
        %v3038 = vpop.f32.mrb[0].mxu0
        %v3039 = vadd.f32 0.0, %v3038
        %v3040 = vpop.f32.mrb[0].mxu0
        %v3041 = vpop.f32.mrb[0].mxu0
        %v3042 = vadd.f32 0.0, %v3041
        %v3043 = vpop.f32.mrb[0].mxu0
        %3044 = vmatprep.mubr.bf16.mxu0 0
        %3045 = vmatmul.mubr.bf16.gmra.mrb[0].mxu0 %v2930
        %v3046 = vpop.f32.mrb[0].mxu0
        %v3047 = vadd.f32 0.0, %v3046
        %v3048 = vpop.f32.mrb[0].mxu0
        %v3049 = vpop.f32.mrb[0].mxu0
        %v3050 = vadd.f32 0.0, %v3049
        %v3051 = vpop.f32.mrb[0].mxu0
        %3052 = vmatprep.mubr.bf16.mxu0 0
        %3053 = vmatmul.mubr.bf16.gmra.mrb[0].mxu0 %v2933
        %v3054 = vpop.f32.mrb[0].mxu0
        %v3055 = vadd.f32 0.0, %v3054
        %v3056 = vpop.f32.mrb[0].mxu0
        %v3057 = vpop.f32.mrb[0].mxu0
        %v3058 = vadd.f32 0.0, %v3057
        %v3059 = vpop.f32.mrb[0].mxu0
        %3060 = vmatprep.mubr.bf16.mxu0 0
        %3061 = vmatmul.mubr.bf16.gmra.mrb[0].mxu0 %v2936
        %v3062 = vpop.f32.mrb[0].mxu0
        %v3063 = vadd.f32 0.0, %v3062
        %v3064 = vpop.f32.mrb[0].mxu0
        %v3065 = vpop.f32.mrb[0].mxu0
        %v3066 = vadd.f32 0.0, %v3065
        %v3067 = vpop.f32.mrb[0].mxu0
        %3068 = vmatprep.mubr.bf16.mxu0 0
        %3069 = vmatmul.mubr.bf16.gmra.mrb[0].mxu0 %v2939
        %v3070 = vpop.f32.mrb[0].mxu0
        %v3071 = vadd.f32 0.0, %v3070
        %v3072 = vpop.f32.mrb[0].mxu0
        %v3073 = vpop.f32.mrb[0].mxu0
        %v3074 = vadd.f32 0.0, %v3073
        %v3075 = vpop.f32.mrb[0].mxu0
        %3076 = vmatprep.mubr.bf16.mxu0 0
        %3077 = vmatmul.mubr.bf16.gmra.mrb[0].mxu0 %v2942
        %v3078 = vpop.f32.mrb[0].mxu0
        %v3079 = vadd.f32 0.0, %v3078
        %v3080 = vpop.f32.mrb[0].mxu0
        %v3081 = vpop.f32.mrb[0].mxu0
        %v3082 = vadd.f32 0.0, %v3081
        %v3083 = vpop.f32.mrb[0].mxu0
        %3084 = vmatprep.mubr.bf16.mxu0 0
        %3085 = vmatmul.mubr.bf16.gmra.mrb[0].mxu0 %v2945
        %v3086 = vpop.f32.mrb[0].mxu0
        %v3087 = vadd.f32 0.0, %v3086
        %v3088 = vpop.f32.mrb[0].mxu0
        %v3089 = vpop.f32.mrb[0].mxu0
        %v3090 = vadd.f32 0.0, %v3089
        %v3091 = vpop.f32.mrb[0].mxu0
        %3092 = vmatprep.mubr.bf16.mxu0 0
        %3093 = vmatmul.mubr.bf16.gmra.mrb[0].mxu0 %v2948
        %v3094 = vpop.f32.mrb[0].mxu0
        %v3095 = vadd.f32 0.0, %v3094
        %v3096 = vpop.f32.mrb[0].mxu0
        %v3097 = vpop.f32.mrb[0].mxu0
        %v3098 = vadd.f32 0.0, %v3097
        %v3099 = vpop.f32.mrb[0].mxu0
        %3100 = vmatprep.mubr.bf16.mxu0 0
        %3101 = vmatmul.mubr.bf16.gmra.mrb[0].mxu0 %v2951
        %v3102 = vpop.f32.mrb[0].mxu0
        %v3103 = vadd.f32 0.0, %v3102
        %v3104 = vpop.f32.mrb[0].mxu0
        %v3105 = vpop.f32.mrb[0].mxu0
        %v3106 = vadd.f32 0.0, %v3105
        %v3107 = vpop.f32.mrb[0].mxu0
        %3108 = vmatprep.mubr.bf16.mxu0 0
        %3109 = vmatmul.mubr.bf16.gmra.mrb[0].mxu0 %v2954
        %v3110 = vpop.f32.mrb[0].mxu0
        %v3111 = vadd.f32 0.0, %v3110
        %v3112 = vpop.f32.mrb[0].mxu0
        %v3113 = vpop.f32.mrb[0].mxu0
        %v3114 = vadd.f32 0.0, %v3113
        %v3115 = vpop.f32.mrb[0].mxu0
        %3116 = vdwg.mxu0
        %v3117 = vadd.f32 %v2843, %v2991
        %v3118 = vadd.f32 %v2844, %v2994
        %v3119 = vadd.f32 %v2845, %v2999
        %v3120 = vadd.f32 %v2846, %v3002
        %v3121 = vadd.f32 %v2847, %v3007
        %v3122 = vadd.f32 %v2848, %v3010
        %v3123 = vadd.f32 %v2849, %v3015
        %v3124 = vadd.f32 %v2850, %v3018
        %v3125 = vadd.f32 %v2851, %v3023
        %v3126 = vadd.f32 %v2852, %v3026
        %v3127 = vadd.f32 %v2853, %v3031
        %v3128 = vadd.f32 %v2854, %v3034
        %v3129 = vadd.f32 %v2855, %v3039
        %v3130 = vadd.f32 %v2856, %v3042
        %v3131 = vadd.f32 %v2857, %v3047
        %v3132 = vadd.f32 %v2858, %v3050
        %v3133 = vadd.f32 %v2859, %v3055
        %v3134 = vadd.f32 %v2860, %v3058
        %v3135 = vadd.f32 %v2861, %v3063
        %v3136 = vadd.f32 %v2862, %v3066
        %v3137 = vadd.f32 %v2863, %v3071
        %v3138 = vadd.f32 %v2864, %v3074
        %v3139 = vadd.f32 %v2865, %v3079
        %v3140 = vadd.f32 %v2866, %v3082
        %v3141 = vadd.f32 %v2867, %v3087
        %v3142 = vadd.f32 %v2868, %v3090
        %v3143 = vadd.f32 %v2869, %v3095
        %v3144 = vadd.f32 %v2870, %v3098
        %v3145 = vadd.f32 %v2871, %v3103
        %v3146 = vadd.f32 %v2872, %v3106
        %v3147 = vadd.f32 %v2873, %v3111
        %v3148 = vadd.f32 %v2874, %v3114
        %v3149 = vld [vmem:[#allocation4 + $0x8] sm:$0xff]
        %v3150 = vld [vmem:[#allocation4 + $0x10] sm:$0xff]
        %v3151 = vld [vmem:[#allocation4 + $0x18] sm:$0xff]
        %v3152 = vld [vmem:[#allocation4 + $0x20] sm:$0xff]
        %v3153 = vld [vmem:[#allocation4 + $0x28] sm:$0xff]
        %v3154 = vld [vmem:[#allocation4 + $0x30] sm:$0xff]
        %v3155 = vld [vmem:[#allocation4 + $0x38] sm:$0xff]
        %v3156 = vld [vmem:[#allocation4 + $0x40] sm:$0xff]
        %v3157 = vld [vmem:[#allocation4 + $0x48] sm:$0xff]
        %v3158 = vld [vmem:[#allocation4 + $0x50] sm:$0xff]
        %v3159 = vld [vmem:[#allocation4 + $0x58] sm:$0xff]
        %v3160 = vld [vmem:[#allocation4 + $0x60] sm:$0xff]
        %v3161 = vld [vmem:[#allocation4 + $0x68] sm:$0xff]
        %v3162 = vld [vmem:[#allocation4 + $0x70] sm:$0xff]
        %v3163 = vld [vmem:[#allocation4 + $0x78] sm:$0xff]
        %v3164 = vld [vmem:[#allocation4 + $0x80] sm:$0xff]
        %s3165 = scalar_lea.vmem %s3, 80
        %v3166 = vld [vmem:[%s3165] sm:$0xf]
        %v3167 = vld [vmem:[%s3165 + $0x4] sm:$0xf]
        %v3168 = vld [vmem:[%s3165 + $0x8] sm:$0xf]
        %v3169 = vld [vmem:[%s3165 + $0xc] sm:$0xf]
        %v3174 = vunpack.c.l.b16 %v3166
        %v3175 = vunpack.c.l.b16 %v3167
        %v3176 = vunpack.c.l.b16 %v3168
        %v3177 = vunpack.c.l.b16 %v3169
        %v3178 = vpack.c.b16 %v3175, %v3174
        %v3179 = vpack.c.b16 %v3177, %v3176
        %v3183 = vsel %vm840, %v3149, 0
        %v3186 = vsel %vm840, %v3150, 0
        %v3189 = vsel %vm840, %v3151, 0
        %v3192 = vsel %vm840, %v3152, 0
        %v3195 = vsel %vm840, %v3153, 0
        %v3198 = vsel %vm840, %v3154, 0
        %v3201 = vsel %vm840, %v3155, 0
        %v3204 = vsel %vm840, %v3156, 0
        %v3207 = vsel %vm840, %v3157, 0
        %v3210 = vsel %vm840, %v3158, 0
        %v3213 = vsel %vm840, %v3159, 0
        %v3216 = vsel %vm840, %v3160, 0
        %v3219 = vsel %vm840, %v3161, 0
        %v3222 = vsel %vm840, %v3162, 0
        %v3225 = vsel %vm840, %v3163, 0
        %v3228 = vsel %vm840, %v3164, 0
        %3230 = vmatprep.subr.bf16.mxu0 0
        %3231 = vmatpush1.bf16.msra.mxu0 %v3178
        %3232 = vmatprep.subr.bf16.mxu0 0
        %3233 = vmatpush1.bf16.msra.mxu0 %v3179
        %3234 = vmatprep.subr.bf16.mxu0 0
        %3235 = vmatpush1.bf16.msra.mxu0 0
        %3236 = vmatprep.subr.bf16.mxu0 0
        %3237 = vmatpush1.bf16.msra.mxu0 0
        %3238 = vmatprep.subr.bf16.mxu0 0
        %3239 = vmatpush1.bf16.msra.mxu0 0
        %3240 = vmatprep.subr.bf16.mxu0 0
        %3241 = vmatpush1.bf16.msra.mxu0 0
        %3242 = vmatprep.subr.bf16.mxu0 0
        %3243 = vmatpush1.bf16.msra.mxu0 0
        %3244 = vmatprep.subr.bf16.mxu0 0
        %3245 = vmatpush1.bf16.msra.mxu0 0
        %3246 = vmatprep.subr.bf16.mxu0 0
        %3247 = vmatpush1.bf16.msra.mxu0 0
        %3248 = vmatprep.subr.bf16.mxu0 0
        %3249 = vmatpush1.bf16.msra.mxu0 0
        %3250 = vmatprep.subr.bf16.mxu0 0
        %3251 = vmatpush1.bf16.msra.mxu0 0
        %3252 = vmatprep.subr.bf16.mxu0 0
        %3253 = vmatpush1.bf16.msra.mxu0 0
        %3254 = vmatprep.subr.bf16.mxu0 0
        %3255 = vmatpush1.bf16.msra.mxu0 0
        %3256 = vmatprep.subr.bf16.mxu0 0
        %3257 = vmatpush1.bf16.msra.mxu0 0
        %3258 = vmatprep.subr.bf16.mxu0 0
        %3259 = vmatpush1.bf16.msra.mxu0 0
        %3260 = vmatprep.subr.bf16.mxu0 0
        %3261 = vmatpush1.bf16.msra.mxu0 0
        %3262 = vmatprep.mubr.bf16.mxu0 0
        %3263 = vmatmul.mubr.bf16.gmra.mrb[0].mxu0 %v3183
        %v3264 = vpop.f32.mrb[0].mxu0
        %v3265 = vadd.f32 0.0, %v3264
        %v3266 = vpop.f32.mrb[0].mxu0
        %v3267 = vpop.f32.mrb[0].mxu0
        %v3268 = vadd.f32 0.0, %v3267
        %v3269 = vpop.f32.mrb[0].mxu0
        %3270 = vmatprep.mubr.bf16.mxu0 0
        %3271 = vmatmul.mubr.bf16.gmra.mrb[0].mxu0 %v3186
        %v3272 = vpop.f32.mrb[0].mxu0
        %v3273 = vadd.f32 0.0, %v3272
        %v3274 = vpop.f32.mrb[0].mxu0
        %v3275 = vpop.f32.mrb[0].mxu0
        %v3276 = vadd.f32 0.0, %v3275
        %v3277 = vpop.f32.mrb[0].mxu0
        %3278 = vmatprep.mubr.bf16.mxu0 0
        %3279 = vmatmul.mubr.bf16.gmra.mrb[0].mxu0 %v3189
        %v3280 = vpop.f32.mrb[0].mxu0
        %v3281 = vadd.f32 0.0, %v3280
        %v3282 = vpop.f32.mrb[0].mxu0
        %v3283 = vpop.f32.mrb[0].mxu0
        %v3284 = vadd.f32 0.0, %v3283
        %v3285 = vpop.f32.mrb[0].mxu0
        %3286 = vmatprep.mubr.bf16.mxu0 0
        %3287 = vmatmul.mubr.bf16.gmra.mrb[0].mxu0 %v3192
        %v3288 = vpop.f32.mrb[0].mxu0
        %v3289 = vadd.f32 0.0, %v3288
        %v3290 = vpop.f32.mrb[0].mxu0
        %v3291 = vpop.f32.mrb[0].mxu0
        %v3292 = vadd.f32 0.0, %v3291
        %v3293 = vpop.f32.mrb[0].mxu0
        %3294 = vmatprep.mubr.bf16.mxu0 0
        %3295 = vmatmul.mubr.bf16.gmra.mrb[0].mxu0 %v3195
        %v3296 = vpop.f32.mrb[0].mxu0
        %v3297 = vadd.f32 0.0, %v3296
        %v3298 = vpop.f32.mrb[0].mxu0
        %v3299 = vpop.f32.mrb[0].mxu0
        %v3300 = vadd.f32 0.0, %v3299
        %v3301 = vpop.f32.mrb[0].mxu0
        %3302 = vmatprep.mubr.bf16.mxu0 0
        %3303 = vmatmul.mubr.bf16.gmra.mrb[0].mxu0 %v3198
        %v3304 = vpop.f32.mrb[0].mxu0
        %v3305 = vadd.f32 0.0, %v3304
        %v3306 = vpop.f32.mrb[0].mxu0
        %v3307 = vpop.f32.mrb[0].mxu0
        %v3308 = vadd.f32 0.0, %v3307
        %v3309 = vpop.f32.mrb[0].mxu0
        %3310 = vmatprep.mubr.bf16.mxu0 0
        %3311 = vmatmul.mubr.bf16.gmra.mrb[0].mxu0 %v3201
        %v3312 = vpop.f32.mrb[0].mxu0
        %v3313 = vadd.f32 0.0, %v3312
        %v3314 = vpop.f32.mrb[0].mxu0
        %v3315 = vpop.f32.mrb[0].mxu0
        %v3316 = vadd.f32 0.0, %v3315
        %v3317 = vpop.f32.mrb[0].mxu0
        %3318 = vmatprep.mubr.bf16.mxu0 0
        %3319 = vmatmul.mubr.bf16.gmra.mrb[0].mxu0 %v3204
        %v3320 = vpop.f32.mrb[0].mxu0
        %v3321 = vadd.f32 0.0, %v3320
        %v3322 = vpop.f32.mrb[0].mxu0
        %v3323 = vpop.f32.mrb[0].mxu0
        %v3324 = vadd.f32 0.0, %v3323
        %v3325 = vpop.f32.mrb[0].mxu0
        %3326 = vmatprep.mubr.bf16.mxu0 0
        %3327 = vmatmul.mubr.bf16.gmra.mrb[0].mxu0 %v3207
        %v3328 = vpop.f32.mrb[0].mxu0
        %v3329 = vadd.f32 0.0, %v3328
        %v3330 = vpop.f32.mrb[0].mxu0
        %v3331 = vpop.f32.mrb[0].mxu0
        %v3332 = vadd.f32 0.0, %v3331
        %v3333 = vpop.f32.mrb[0].mxu0
        %3334 = vmatprep.mubr.bf16.mxu0 0
        %3335 = vmatmul.mubr.bf16.gmra.mrb[0].mxu0 %v3210
        %v3336 = vpop.f32.mrb[0].mxu0
        %v3337 = vadd.f32 0.0, %v3336
        %v3338 = vpop.f32.mrb[0].mxu0
        %v3339 = vpop.f32.mrb[0].mxu0
        %v3340 = vadd.f32 0.0, %v3339
        %v3341 = vpop.f32.mrb[0].mxu0
        %3342 = vmatprep.mubr.bf16.mxu0 0
        %3343 = vmatmul.mubr.bf16.gmra.mrb[0].mxu0 %v3213
        %v3344 = vpop.f32.mrb[0].mxu0
        %v3345 = vadd.f32 0.0, %v3344
        %v3346 = vpop.f32.mrb[0].mxu0
        %v3347 = vpop.f32.mrb[0].mxu0
        %v3348 = vadd.f32 0.0, %v3347
        %v3349 = vpop.f32.mrb[0].mxu0
        %3350 = vmatprep.mubr.bf16.mxu0 0
        %3351 = vmatmul.mubr.bf16.gmra.mrb[0].mxu0 %v3216
        %v3352 = vpop.f32.mrb[0].mxu0
        %v3353 = vadd.f32 0.0, %v3352
        %v3354 = vpop.f32.mrb[0].mxu0
        %v3355 = vpop.f32.mrb[0].mxu0
        %v3356 = vadd.f32 0.0, %v3355
        %v3357 = vpop.f32.mrb[0].mxu0
        %3358 = vmatprep.mubr.bf16.mxu0 0
        %3359 = vmatmul.mubr.bf16.gmra.mrb[0].mxu0 %v3219
        %v3360 = vpop.f32.mrb[0].mxu0
        %v3361 = vadd.f32 0.0, %v3360
        %v3362 = vpop.f32.mrb[0].mxu0
        %v3363 = vpop.f32.mrb[0].mxu0
        %v3364 = vadd.f32 0.0, %v3363
        %v3365 = vpop.f32.mrb[0].mxu0
        %3366 = vmatprep.mubr.bf16.mxu0 0
        %3367 = vmatmul.mubr.bf16.gmra.mrb[0].mxu0 %v3222
        %v3368 = vpop.f32.mrb[0].mxu0
        %v3369 = vadd.f32 0.0, %v3368
        %v3370 = vpop.f32.mrb[0].mxu0
        %v3371 = vpop.f32.mrb[0].mxu0
        %v3372 = vadd.f32 0.0, %v3371
        %v3373 = vpop.f32.mrb[0].mxu0
        %3374 = vmatprep.mubr.bf16.mxu0 0
        %3375 = vmatmul.mubr.bf16.gmra.mrb[0].mxu0 %v3225
        %v3376 = vpop.f32.mrb[0].mxu0
        %v3377 = vadd.f32 0.0, %v3376
        %v3378 = vpop.f32.mrb[0].mxu0
        %v3379 = vpop.f32.mrb[0].mxu0
        %v3380 = vadd.f32 0.0, %v3379
        %v3381 = vpop.f32.mrb[0].mxu0
        %3382 = vmatprep.mubr.bf16.mxu0 0
        %3383 = vmatmul.mubr.bf16.gmra.mrb[0].mxu0 %v3228
        %v3384 = vpop.f32.mrb[0].mxu0
        %v3385 = vadd.f32 0.0, %v3384
        %v3386 = vpop.f32.mrb[0].mxu0
        %v3387 = vpop.f32.mrb[0].mxu0
        %v3388 = vadd.f32 0.0, %v3387
        %v3389 = vpop.f32.mrb[0].mxu0
        %3390 = vdwg.mxu0
        %v3391 = vadd.f32 %v3117, %v3265
        %v3392 = vadd.f32 %v3118, %v3268
        %v3393 = vadd.f32 %v3119, %v3273
        %v3394 = vadd.f32 %v3120, %v3276
        %v3395 = vadd.f32 %v3121, %v3281
        %v3396 = vadd.f32 %v3122, %v3284
        %v3397 = vadd.f32 %v3123, %v3289
        %v3398 = vadd.f32 %v3124, %v3292
        %v3399 = vadd.f32 %v3125, %v3297
        %v3400 = vadd.f32 %v3126, %v3300
        %v3401 = vadd.f32 %v3127, %v3305
        %v3402 = vadd.f32 %v3128, %v3308
        %v3403 = vadd.f32 %v3129, %v3313
        %v3404 = vadd.f32 %v3130, %v3316
        %v3405 = vadd.f32 %v3131, %v3321
        %v3406 = vadd.f32 %v3132, %v3324
        %v3407 = vadd.f32 %v3133, %v3329
        %v3408 = vadd.f32 %v3134, %v3332
        %v3409 = vadd.f32 %v3135, %v3337
        %v3410 = vadd.f32 %v3136, %v3340
        %v3411 = vadd.f32 %v3137, %v3345
        %v3412 = vadd.f32 %v3138, %v3348
        %v3413 = vadd.f32 %v3139, %v3353
        %v3414 = vadd.f32 %v3140, %v3356
        %v3415 = vadd.f32 %v3141, %v3361
        %v3416 = vadd.f32 %v3142, %v3364
        %v3417 = vadd.f32 %v3143, %v3369
        %v3418 = vadd.f32 %v3144, %v3372
        %v3419 = vadd.f32 %v3145, %v3377
        %v3420 = vadd.f32 %v3146, %v3380
        %v3421 = vadd.f32 %v3147, %v3385
        %v3422 = vadd.f32 %v3148, %v3388
        %v3423 = vld [vmem:[#allocation3 + $0x10] sm:$0xff]
        %v3424 = vld [vmem:[#allocation3 + $0x18] sm:$0xff]
        %v3425 = vld [vmem:[#allocation3 + $0x20] sm:$0xff]
        %v3426 = vld [vmem:[#allocation3 + $0x28] sm:$0xff]
        %v3427 = vld [vmem:[#allocation3 + $0x30] sm:$0xff]
        %v3428 = vld [vmem:[#allocation3 + $0x38] sm:$0xff]
        %v3429 = vld [vmem:[#allocation3 + $0x40] sm:$0xff]
        %v3430 = vld [vmem:[#allocation3 + $0x48] sm:$0xff]
        %v3431 = vld [vmem:[#allocation3 + $0x50] sm:$0xff]
        %v3432 = vld [vmem:[#allocation3 + $0x58] sm:$0xff]
        %v3433 = vld [vmem:[#allocation3 + $0x60] sm:$0xff]
        %v3434 = vld [vmem:[#allocation3 + $0x68] sm:$0xff]
        %v3435 = vld [vmem:[#allocation3 + $0x70] sm:$0xff]
        %v3436 = vld [vmem:[#allocation3 + $0x78] sm:$0xff]
        %v3437 = vld [vmem:[#allocation3 + $0x80] sm:$0xff]
        %v3438 = vld [vmem:[#allocation3 + $0x88] sm:$0xff]
        %s3439 = scalar_lea.vmem %s3, 96
        %v3440 = vld [vmem:[%s3439] sm:$0xf]
        %v3441 = vld [vmem:[%s3439 + $0x4] sm:$0xf]
        %v3442 = vld [vmem:[%s3439 + $0x8] sm:$0xf]
        %v3443 = vld [vmem:[%s3439 + $0xc] sm:$0xf]
        %v3448 = vunpack.c.l.b16 %v3440
        %v3449 = vunpack.c.l.b16 %v3441
        %v3450 = vunpack.c.l.b16 %v3442
        %v3451 = vunpack.c.l.b16 %v3443
        %v3452 = vpack.c.b16 %v3449, %v3448
        %v3453 = vpack.c.b16 %v3451, %v3450
        %v3457 = vsel %vm840, %v3423, 0
        %v3460 = vsel %vm840, %v3424, 0
        %v3463 = vsel %vm840, %v3425, 0
        %v3466 = vsel %vm840, %v3426, 0
        %v3469 = vsel %vm840, %v3427, 0
        %v3472 = vsel %vm840, %v3428, 0
        %v3475 = vsel %vm840, %v3429, 0
        %v3478 = vsel %vm840, %v3430, 0
        %v3481 = vsel %vm840, %v3431, 0
        %v3484 = vsel %vm840, %v3432, 0
        %v3487 = vsel %vm840, %v3433, 0
        %v3490 = vsel %vm840, %v3434, 0
        %v3493 = vsel %vm840, %v3435, 0
        %v3496 = vsel %vm840, %v3436, 0
        %v3499 = vsel %vm840, %v3437, 0
        %v3502 = vsel %vm840, %v3438, 0
        %3504 = vmatprep.subr.bf16.mxu0 0
        %3505 = vmatpush1.bf16.msra.mxu0 %v3452
        %3506 = vmatprep.subr.bf16.mxu0 0
        %3507 = vmatpush1.bf16.msra.mxu0 %v3453
        %3508 = vmatprep.subr.bf16.mxu0 0
        %3509 = vmatpush1.bf16.msra.mxu0 0
        %3510 = vmatprep.subr.bf16.mxu0 0
        %3511 = vmatpush1.bf16.msra.mxu0 0
        %3512 = vmatprep.subr.bf16.mxu0 0
        %3513 = vmatpush1.bf16.msra.mxu0 0
        %3514 = vmatprep.subr.bf16.mxu0 0
        %3515 = vmatpush1.bf16.msra.mxu0 0
        %3516 = vmatprep.subr.bf16.mxu0 0
        %3517 = vmatpush1.bf16.msra.mxu0 0
        %3518 = vmatprep.subr.bf16.mxu0 0
        %3519 = vmatpush1.bf16.msra.mxu0 0
        %3520 = vmatprep.subr.bf16.mxu0 0
        %3521 = vmatpush1.bf16.msra.mxu0 0
        %3522 = vmatprep.subr.bf16.mxu0 0
        %3523 = vmatpush1.bf16.msra.mxu0 0
        %3524 = vmatprep.subr.bf16.mxu0 0
        %3525 = vmatpush1.bf16.msra.mxu0 0
        %3526 = vmatprep.subr.bf16.mxu0 0
        %3527 = vmatpush1.bf16.msra.mxu0 0
        %3528 = vmatprep.subr.bf16.mxu0 0
        %3529 = vmatpush1.bf16.msra.mxu0 0
        %3530 = vmatprep.subr.bf16.mxu0 0
        %3531 = vmatpush1.bf16.msra.mxu0 0
        %3532 = vmatprep.subr.bf16.mxu0 0
        %3533 = vmatpush1.bf16.msra.mxu0 0
        %3534 = vmatprep.subr.bf16.mxu0 0
        %3535 = vmatpush1.bf16.msra.mxu0 0
        %3536 = vmatprep.mubr.bf16.mxu0 0
        %3537 = vmatmul.mubr.bf16.gmra.mrb[0].mxu0 %v3457
        %v3538 = vpop.f32.mrb[0].mxu0
        %v3539 = vadd.f32 0.0, %v3538
        %v3540 = vpop.f32.mrb[0].mxu0
        %v3541 = vpop.f32.mrb[0].mxu0
        %v3542 = vadd.f32 0.0, %v3541
        %v3543 = vpop.f32.mrb[0].mxu0
        %3544 = vmatprep.mubr.bf16.mxu0 0
        %3545 = vmatmul.mubr.bf16.gmra.mrb[0].mxu0 %v3460
        %v3546 = vpop.f32.mrb[0].mxu0
        %v3547 = vadd.f32 0.0, %v3546
        %v3548 = vpop.f32.mrb[0].mxu0
        %v3549 = vpop.f32.mrb[0].mxu0
        %v3550 = vadd.f32 0.0, %v3549
        %v3551 = vpop.f32.mrb[0].mxu0
        %3552 = vmatprep.mubr.bf16.mxu0 0
        %3553 = vmatmul.mubr.bf16.gmra.mrb[0].mxu0 %v3463
        %v3554 = vpop.f32.mrb[0].mxu0
        %v3555 = vadd.f32 0.0, %v3554
        %v3556 = vpop.f32.mrb[0].mxu0
        %v3557 = vpop.f32.mrb[0].mxu0
        %v3558 = vadd.f32 0.0, %v3557
        %v3559 = vpop.f32.mrb[0].mxu0
        %3560 = vmatprep.mubr.bf16.mxu0 0
        %3561 = vmatmul.mubr.bf16.gmra.mrb[0].mxu0 %v3466
        %v3562 = vpop.f32.mrb[0].mxu0
        %v3563 = vadd.f32 0.0, %v3562
        %v3564 = vpop.f32.mrb[0].mxu0
        %v3565 = vpop.f32.mrb[0].mxu0
        %v3566 = vadd.f32 0.0, %v3565
        %v3567 = vpop.f32.mrb[0].mxu0
        %3568 = vmatprep.mubr.bf16.mxu0 0
        %3569 = vmatmul.mubr.bf16.gmra.mrb[0].mxu0 %v3469
        %v3570 = vpop.f32.mrb[0].mxu0
        %v3571 = vadd.f32 0.0, %v3570
        %v3572 = vpop.f32.mrb[0].mxu0
        %v3573 = vpop.f32.mrb[0].mxu0
        %v3574 = vadd.f32 0.0, %v3573
        %v3575 = vpop.f32.mrb[0].mxu0
        %3576 = vmatprep.mubr.bf16.mxu0 0
        %3577 = vmatmul.mubr.bf16.gmra.mrb[0].mxu0 %v3472
        %v3578 = vpop.f32.mrb[0].mxu0
        %v3579 = vadd.f32 0.0, %v3578
        %v3580 = vpop.f32.mrb[0].mxu0
        %v3581 = vpop.f32.mrb[0].mxu0
        %v3582 = vadd.f32 0.0, %v3581
        %v3583 = vpop.f32.mrb[0].mxu0
        %3584 = vmatprep.mubr.bf16.mxu0 0
        %3585 = vmatmul.mubr.bf16.gmra.mrb[0].mxu0 %v3475
        %v3586 = vpop.f32.mrb[0].mxu0
        %v3587 = vadd.f32 0.0, %v3586
        %v3588 = vpop.f32.mrb[0].mxu0
        %v3589 = vpop.f32.mrb[0].mxu0
        %v3590 = vadd.f32 0.0, %v3589
        %v3591 = vpop.f32.mrb[0].mxu0
        %3592 = vmatprep.mubr.bf16.mxu0 0
        %3593 = vmatmul.mubr.bf16.gmra.mrb[0].mxu0 %v3478
        %v3594 = vpop.f32.mrb[0].mxu0
        %v3595 = vadd.f32 0.0, %v3594
        %v3596 = vpop.f32.mrb[0].mxu0
        %v3597 = vpop.f32.mrb[0].mxu0
        %v3598 = vadd.f32 0.0, %v3597
        %v3599 = vpop.f32.mrb[0].mxu0
        %3600 = vmatprep.mubr.bf16.mxu0 0
        %3601 = vmatmul.mubr.bf16.gmra.mrb[0].mxu0 %v3481
        %v3602 = vpop.f32.mrb[0].mxu0
        %v3603 = vadd.f32 0.0, %v3602
        %v3604 = vpop.f32.mrb[0].mxu0
        %v3605 = vpop.f32.mrb[0].mxu0
        %v3606 = vadd.f32 0.0, %v3605
        %v3607 = vpop.f32.mrb[0].mxu0
        %3608 = vmatprep.mubr.bf16.mxu0 0
        %3609 = vmatmul.mubr.bf16.gmra.mrb[0].mxu0 %v3484
        %v3610 = vpop.f32.mrb[0].mxu0
        %v3611 = vadd.f32 0.0, %v3610
        %v3612 = vpop.f32.mrb[0].mxu0
        %v3613 = vpop.f32.mrb[0].mxu0
        %v3614 = vadd.f32 0.0, %v3613
        %v3615 = vpop.f32.mrb[0].mxu0
        %3616 = vmatprep.mubr.bf16.mxu0 0
        %3617 = vmatmul.mubr.bf16.gmra.mrb[0].mxu0 %v3487
        %v3618 = vpop.f32.mrb[0].mxu0
        %v3619 = vadd.f32 0.0, %v3618
        %v3620 = vpop.f32.mrb[0].mxu0
        %v3621 = vpop.f32.mrb[0].mxu0
        %v3622 = vadd.f32 0.0, %v3621
        %v3623 = vpop.f32.mrb[0].mxu0
        %3624 = vmatprep.mubr.bf16.mxu0 0
        %3625 = vmatmul.mubr.bf16.gmra.mrb[0].mxu0 %v3490
        %v3626 = vpop.f32.mrb[0].mxu0
        %v3627 = vadd.f32 0.0, %v3626
        %v3628 = vpop.f32.mrb[0].mxu0
        %v3629 = vpop.f32.mrb[0].mxu0
        %v3630 = vadd.f32 0.0, %v3629
        %v3631 = vpop.f32.mrb[0].mxu0
        %3632 = vmatprep.mubr.bf16.mxu0 0
        %3633 = vmatmul.mubr.bf16.gmra.mrb[0].mxu0 %v3493
        %v3634 = vpop.f32.mrb[0].mxu0
        %v3635 = vadd.f32 0.0, %v3634
        %v3636 = vpop.f32.mrb[0].mxu0
        %v3637 = vpop.f32.mrb[0].mxu0
        %v3638 = vadd.f32 0.0, %v3637
        %v3639 = vpop.f32.mrb[0].mxu0
        %3640 = vmatprep.mubr.bf16.mxu0 0
        %3641 = vmatmul.mubr.bf16.gmra.mrb[0].mxu0 %v3496
        %v3642 = vpop.f32.mrb[0].mxu0
        %v3643 = vadd.f32 0.0, %v3642
        %v3644 = vpop.f32.mrb[0].mxu0
        %v3645 = vpop.f32.mrb[0].mxu0
        %v3646 = vadd.f32 0.0, %v3645
        %v3647 = vpop.f32.mrb[0].mxu0
        %3648 = vmatprep.mubr.bf16.mxu0 0
        %3649 = vmatmul.mubr.bf16.gmra.mrb[0].mxu0 %v3499
        %v3650 = vpop.f32.mrb[0].mxu0
        %v3651 = vadd.f32 0.0, %v3650
        %v3652 = vpop.f32.mrb[0].mxu0
        %v3653 = vpop.f32.mrb[0].mxu0
        %v3654 = vadd.f32 0.0, %v3653
        %v3655 = vpop.f32.mrb[0].mxu0
        %3656 = vmatprep.mubr.bf16.mxu0 0
        %3657 = vmatmul.mubr.bf16.gmra.mrb[0].mxu0 %v3502
        %v3658 = vpop.f32.mrb[0].mxu0
        %v3659 = vadd.f32 0.0, %v3658
        %v3660 = vpop.f32.mrb[0].mxu0
        %v3661 = vpop.f32.mrb[0].mxu0
        %v3662 = vadd.f32 0.0, %v3661
        %v3663 = vpop.f32.mrb[0].mxu0
        %3664 = vdwg.mxu0
        %v3665 = vadd.f32 %v3391, %v3539
        %v3666 = vadd.f32 %v3392, %v3542
        %v3667 = vadd.f32 %v3393, %v3547
        %v3668 = vadd.f32 %v3394, %v3550
        %v3669 = vadd.f32 %v3395, %v3555
        %v3670 = vadd.f32 %v3396, %v3558
        %v3671 = vadd.f32 %v3397, %v3563
        %v3672 = vadd.f32 %v3398, %v3566
        %v3673 = vadd.f32 %v3399, %v3571
        %v3674 = vadd.f32 %v3400, %v3574
        %v3675 = vadd.f32 %v3401, %v3579
        %v3676 = vadd.f32 %v3402, %v3582
        %v3677 = vadd.f32 %v3403, %v3587
        %v3678 = vadd.f32 %v3404, %v3590
        %v3679 = vadd.f32 %v3405, %v3595
        %v3680 = vadd.f32 %v3406, %v3598
        %v3681 = vadd.f32 %v3407, %v3603
        %v3682 = vadd.f32 %v3408, %v3606
        %v3683 = vadd.f32 %v3409, %v3611
        %v3684 = vadd.f32 %v3410, %v3614
        %v3685 = vadd.f32 %v3411, %v3619
        %v3686 = vadd.f32 %v3412, %v3622
        %v3687 = vadd.f32 %v3413, %v3627
        %v3688 = vadd.f32 %v3414, %v3630
        %v3689 = vadd.f32 %v3415, %v3635
        %v3690 = vadd.f32 %v3416, %v3638
        %v3691 = vadd.f32 %v3417, %v3643
        %v3692 = vadd.f32 %v3418, %v3646
        %v3693 = vadd.f32 %v3419, %v3651
        %v3694 = vadd.f32 %v3420, %v3654
        %v3695 = vadd.f32 %v3421, %v3659
        %v3696 = vadd.f32 %v3422, %v3662
        %v3697 = vld [vmem:[#allocation2 + $0x10] sm:$0xff]
        %v3698 = vld [vmem:[#allocation2 + $0x18] sm:$0xff]
        %v3699 = vld [vmem:[#allocation2 + $0x20] sm:$0xff]
        %v3700 = vld [vmem:[#allocation2 + $0x28] sm:$0xff]
        %v3701 = vld [vmem:[#allocation2 + $0x30] sm:$0xff]
        %v3702 = vld [vmem:[#allocation2 + $0x38] sm:$0xff]
        %v3703 = vld [vmem:[#allocation2 + $0x40] sm:$0xff]
        %v3704 = vld [vmem:[#allocation2 + $0x48] sm:$0xff]
        %v3705 = vld [vmem:[#allocation2 + $0x50] sm:$0xff]
        %v3706 = vld [vmem:[#allocation2 + $0x58] sm:$0xff]
        %v3707 = vld [vmem:[#allocation2 + $0x60] sm:$0xff]
        %v3708 = vld [vmem:[#allocation2 + $0x68] sm:$0xff]
        %v3709 = vld [vmem:[#allocation2 + $0x70] sm:$0xff]
        %v3710 = vld [vmem:[#allocation2 + $0x78] sm:$0xff]
        %v3711 = vld [vmem:[#allocation2 + $0x80] sm:$0xff]
        %v3712 = vld [vmem:[#allocation2 + $0x88] sm:$0xff]
        %s3713 = scalar_lea.vmem %s3, 112
        %v3714 = vld [vmem:[%s3713] sm:$0xf]
        %v3715 = vld [vmem:[%s3713 + $0x4] sm:$0xf]
        %v3716 = vld [vmem:[%s3713 + $0x8] sm:$0xf]
        %v3717 = vld [vmem:[%s3713 + $0xc] sm:$0xf]
        %v3722 = vunpack.c.l.b16 %v3714
        %v3723 = vunpack.c.l.b16 %v3715
        %v3724 = vunpack.c.l.b16 %v3716
        %v3725 = vunpack.c.l.b16 %v3717
        %v3726 = vpack.c.b16 %v3723, %v3722
        %v3727 = vpack.c.b16 %v3725, %v3724
        %v3731 = vsel %vm840, %v3697, 0
        %v3734 = vsel %vm840, %v3698, 0
        %v3737 = vsel %vm840, %v3699, 0
        %v3740 = vsel %vm840, %v3700, 0
        %v3743 = vsel %vm840, %v3701, 0
        %v3746 = vsel %vm840, %v3702, 0
        %v3749 = vsel %vm840, %v3703, 0
        %v3752 = vsel %vm840, %v3704, 0
        %v3755 = vsel %vm840, %v3705, 0
        %v3758 = vsel %vm840, %v3706, 0
        %v3761 = vsel %vm840, %v3707, 0
        %v3764 = vsel %vm840, %v3708, 0
        %v3767 = vsel %vm840, %v3709, 0
        %v3770 = vsel %vm840, %v3710, 0
        %v3773 = vsel %vm840, %v3711, 0
        %v3776 = vsel %vm840, %v3712, 0
        %3778 = vmatprep.subr.bf16.mxu0 0
        %3779 = vmatpush1.bf16.msra.mxu0 %v3726
        %3780 = vmatprep.subr.bf16.mxu0 0
        %3781 = vmatpush1.bf16.msra.mxu0 %v3727
        %3782 = vmatprep.subr.bf16.mxu0 0
        %3783 = vmatpush1.bf16.msra.mxu0 0
        %3784 = vmatprep.subr.bf16.mxu0 0
        %3785 = vmatpush1.bf16.msra.mxu0 0
        %3786 = vmatprep.subr.bf16.mxu0 0
        %3787 = vmatpush1.bf16.msra.mxu0 0
        %3788 = vmatprep.subr.bf16.mxu0 0
        %3789 = vmatpush1.bf16.msra.mxu0 0
        %3790 = vmatprep.subr.bf16.mxu0 0
        %3791 = vmatpush1.bf16.msra.mxu0 0
        %3792 = vmatprep.subr.bf16.mxu0 0
        %3793 = vmatpush1.bf16.msra.mxu0 0
        %3794 = vmatprep.subr.bf16.mxu0 0
        %3795 = vmatpush1.bf16.msra.mxu0 0
        %3796 = vmatprep.subr.bf16.mxu0 0
        %3797 = vmatpush1.bf16.msra.mxu0 0
        %3798 = vmatprep.subr.bf16.mxu0 0
        %3799 = vmatpush1.bf16.msra.mxu0 0
        %3800 = vmatprep.subr.bf16.mxu0 0
        %3801 = vmatpush1.bf16.msra.mxu0 0
        %3802 = vmatprep.subr.bf16.mxu0 0
        %3803 = vmatpush1.bf16.msra.mxu0 0
        %3804 = vmatprep.subr.bf16.mxu0 0
        %3805 = vmatpush1.bf16.msra.mxu0 0
        %3806 = vmatprep.subr.bf16.mxu0 0
        %3807 = vmatpush1.bf16.msra.mxu0 0
        %3808 = vmatprep.subr.bf16.mxu0 0
        %3809 = vmatpush1.bf16.msra.mxu0 0
        %3810 = vmatprep.mubr.bf16.mxu0 0
        %3811 = vmatmul.mubr.bf16.gmra.mrb[0].mxu0 %v3731
        %v3812 = vpop.f32.mrb[0].mxu0
        %v3813 = vadd.f32 0.0, %v3812
        %v3814 = vpop.f32.mrb[0].mxu0
        %v3815 = vpop.f32.mrb[0].mxu0
        %v3816 = vadd.f32 0.0, %v3815
        %v3817 = vpop.f32.mrb[0].mxu0
        %3818 = vmatprep.mubr.bf16.mxu0 0
        %3819 = vmatmul.mubr.bf16.gmra.mrb[0].mxu0 %v3734
        %v3820 = vpop.f32.mrb[0].mxu0
        %v3821 = vadd.f32 0.0, %v3820
        %v3822 = vpop.f32.mrb[0].mxu0
        %v3823 = vpop.f32.mrb[0].mxu0
        %v3824 = vadd.f32 0.0, %v3823
        %v3825 = vpop.f32.mrb[0].mxu0
        %3826 = vmatprep.mubr.bf16.mxu0 0
        %3827 = vmatmul.mubr.bf16.gmra.mrb[0].mxu0 %v3737
        %v3828 = vpop.f32.mrb[0].mxu0
        %v3829 = vadd.f32 0.0, %v3828
        %v3830 = vpop.f32.mrb[0].mxu0
        %v3831 = vpop.f32.mrb[0].mxu0
        %v3832 = vadd.f32 0.0, %v3831
        %v3833 = vpop.f32.mrb[0].mxu0
        %3834 = vmatprep.mubr.bf16.mxu0 0
        %3835 = vmatmul.mubr.bf16.gmra.mrb[0].mxu0 %v3740
        %v3836 = vpop.f32.mrb[0].mxu0
        %v3837 = vadd.f32 0.0, %v3836
        %v3838 = vpop.f32.mrb[0].mxu0
        %v3839 = vpop.f32.mrb[0].mxu0
        %v3840 = vadd.f32 0.0, %v3839
        %v3841 = vpop.f32.mrb[0].mxu0
        %3842 = vmatprep.mubr.bf16.mxu0 0
        %3843 = vmatmul.mubr.bf16.gmra.mrb[0].mxu0 %v3743
        %v3844 = vpop.f32.mrb[0].mxu0
        %v3845 = vadd.f32 0.0, %v3844
        %v3846 = vpop.f32.mrb[0].mxu0
        %v3847 = vpop.f32.mrb[0].mxu0
        %v3848 = vadd.f32 0.0, %v3847
        %v3849 = vpop.f32.mrb[0].mxu0
        %3850 = vmatprep.mubr.bf16.mxu0 0
        %3851 = vmatmul.mubr.bf16.gmra.mrb[0].mxu0 %v3746
        %v3852 = vpop.f32.mrb[0].mxu0
        %v3853 = vadd.f32 0.0, %v3852
        %v3854 = vpop.f32.mrb[0].mxu0
        %v3855 = vpop.f32.mrb[0].mxu0
        %v3856 = vadd.f32 0.0, %v3855
        %v3857 = vpop.f32.mrb[0].mxu0
        %3858 = vmatprep.mubr.bf16.mxu0 0
        %3859 = vmatmul.mubr.bf16.gmra.mrb[0].mxu0 %v3749
        %v3860 = vpop.f32.mrb[0].mxu0
        %v3861 = vadd.f32 0.0, %v3860
        %v3862 = vpop.f32.mrb[0].mxu0
        %v3863 = vpop.f32.mrb[0].mxu0
        %v3864 = vadd.f32 0.0, %v3863
        %v3865 = vpop.f32.mrb[0].mxu0
        %3866 = vmatprep.mubr.bf16.mxu0 0
        %3867 = vmatmul.mubr.bf16.gmra.mrb[0].mxu0 %v3752
        %v3868 = vpop.f32.mrb[0].mxu0
        %v3869 = vadd.f32 0.0, %v3868
        %v3870 = vpop.f32.mrb[0].mxu0
        %v3871 = vpop.f32.mrb[0].mxu0
        %v3872 = vadd.f32 0.0, %v3871
        %v3873 = vpop.f32.mrb[0].mxu0
        %3874 = vmatprep.mubr.bf16.mxu0 0
        %3875 = vmatmul.mubr.bf16.gmra.mrb[0].mxu0 %v3755
        %v3876 = vpop.f32.mrb[0].mxu0
        %v3877 = vadd.f32 0.0, %v3876
        %v3878 = vpop.f32.mrb[0].mxu0
        %v3879 = vpop.f32.mrb[0].mxu0
        %v3880 = vadd.f32 0.0, %v3879
        %v3881 = vpop.f32.mrb[0].mxu0
        %3882 = vmatprep.mubr.bf16.mxu0 0
        %3883 = vmatmul.mubr.bf16.gmra.mrb[0].mxu0 %v3758
        %v3884 = vpop.f32.mrb[0].mxu0
        %v3885 = vadd.f32 0.0, %v3884
        %v3886 = vpop.f32.mrb[0].mxu0
        %v3887 = vpop.f32.mrb[0].mxu0
        %v3888 = vadd.f32 0.0, %v3887
        %v3889 = vpop.f32.mrb[0].mxu0
        %3890 = vmatprep.mubr.bf16.mxu0 0
        %3891 = vmatmul.mubr.bf16.gmra.mrb[0].mxu0 %v3761
        %v3892 = vpop.f32.mrb[0].mxu0
        %v3893 = vadd.f32 0.0, %v3892
        %v3894 = vpop.f32.mrb[0].mxu0
        %v3895 = vpop.f32.mrb[0].mxu0
        %v3896 = vadd.f32 0.0, %v3895
        %v3897 = vpop.f32.mrb[0].mxu0
        %3898 = vmatprep.mubr.bf16.mxu0 0
        %3899 = vmatmul.mubr.bf16.gmra.mrb[0].mxu0 %v3764
        %v3900 = vpop.f32.mrb[0].mxu0
        %v3901 = vadd.f32 0.0, %v3900
        %v3902 = vpop.f32.mrb[0].mxu0
        %v3903 = vpop.f32.mrb[0].mxu0
        %v3904 = vadd.f32 0.0, %v3903
        %v3905 = vpop.f32.mrb[0].mxu0
        %3906 = vmatprep.mubr.bf16.mxu0 0
        %3907 = vmatmul.mubr.bf16.gmra.mrb[0].mxu0 %v3767
        %v3908 = vpop.f32.mrb[0].mxu0
        %v3909 = vadd.f32 0.0, %v3908
        %v3910 = vpop.f32.mrb[0].mxu0
        %v3911 = vpop.f32.mrb[0].mxu0
        %v3912 = vadd.f32 0.0, %v3911
        %v3913 = vpop.f32.mrb[0].mxu0
        %3914 = vmatprep.mubr.bf16.mxu0 0
        %3915 = vmatmul.mubr.bf16.gmra.mrb[0].mxu0 %v3770
        %v3916 = vpop.f32.mrb[0].mxu0
        %v3917 = vadd.f32 0.0, %v3916
        %v3918 = vpop.f32.mrb[0].mxu0
        %v3919 = vpop.f32.mrb[0].mxu0
        %v3920 = vadd.f32 0.0, %v3919
        %v3921 = vpop.f32.mrb[0].mxu0
        %3922 = vmatprep.mubr.bf16.mxu0 0
        %3923 = vmatmul.mubr.bf16.gmra.mrb[0].mxu0 %v3773
        %v3924 = vpop.f32.mrb[0].mxu0
        %v3925 = vadd.f32 0.0, %v3924
        %v3926 = vpop.f32.mrb[0].mxu0
        %v3927 = vpop.f32.mrb[0].mxu0
        %v3928 = vadd.f32 0.0, %v3927
        %v3929 = vpop.f32.mrb[0].mxu0
        %3930 = vmatprep.mubr.bf16.mxu0 0
        %3931 = vmatmul.mubr.bf16.gmra.mrb[0].mxu0 %v3776
        %v3932 = vpop.f32.mrb[0].mxu0
        %v3933 = vadd.f32 0.0, %v3932
        %v3934 = vpop.f32.mrb[0].mxu0
        %v3935 = vpop.f32.mrb[0].mxu0
        %v3936 = vadd.f32 0.0, %v3935
        %v3937 = vpop.f32.mrb[0].mxu0
        %3938 = vdwg.mxu0
        %v3939 = vadd.f32 %v3665, %v3813
        %v3940 = vadd.f32 %v3666, %v3816
        %v3941 = vadd.f32 %v3667, %v3821
        %v3942 = vadd.f32 %v3668, %v3824
        %v3943 = vadd.f32 %v3669, %v3829
        %v3944 = vadd.f32 %v3670, %v3832
        %v3945 = vadd.f32 %v3671, %v3837
        %v3946 = vadd.f32 %v3672, %v3840
        %v3947 = vadd.f32 %v3673, %v3845
        %v3948 = vadd.f32 %v3674, %v3848
        %v3949 = vadd.f32 %v3675, %v3853
        %v3950 = vadd.f32 %v3676, %v3856
        %v3951 = vadd.f32 %v3677, %v3861
        %v3952 = vadd.f32 %v3678, %v3864
        %v3953 = vadd.f32 %v3679, %v3869
        %v3954 = vadd.f32 %v3680, %v3872
        %v3955 = vadd.f32 %v3681, %v3877
        %v3956 = vadd.f32 %v3682, %v3880
        %v3957 = vadd.f32 %v3683, %v3885
        %v3958 = vadd.f32 %v3684, %v3888
        %v3959 = vadd.f32 %v3685, %v3893
        %v3960 = vadd.f32 %v3686, %v3896
        %v3961 = vadd.f32 %v3687, %v3901
        %v3962 = vadd.f32 %v3688, %v3904
        %v3963 = vadd.f32 %v3689, %v3909
        %v3964 = vadd.f32 %v3690, %v3912
        %v3965 = vadd.f32 %v3691, %v3917
        %v3966 = vadd.f32 %v3692, %v3920
        %v3967 = vadd.f32 %v3693, %v3925
        %v3968 = vadd.f32 %v3694, %v3928
        %v3969 = vadd.f32 %v3695, %v3933
        %v3970 = vadd.f32 %v3696, %v3936
        %v3971 = vld [vmem:[#allocation4 + $0x10] sm:$0xff]
        %v3972 = vld [vmem:[#allocation4 + $0x18] sm:$0xff]
        %v3973 = vld [vmem:[#allocation4 + $0x20] sm:$0xff]
        %v3974 = vld [vmem:[#allocation4 + $0x28] sm:$0xff]
        %v3975 = vld [vmem:[#allocation4 + $0x30] sm:$0xff]
        %v3976 = vld [vmem:[#allocation4 + $0x38] sm:$0xff]
        %v3977 = vld [vmem:[#allocation4 + $0x40] sm:$0xff]
        %v3978 = vld [vmem:[#allocation4 + $0x48] sm:$0xff]
        %v3979 = vld [vmem:[#allocation4 + $0x50] sm:$0xff]
        %v3980 = vld [vmem:[#allocation4 + $0x58] sm:$0xff]
        %v3981 = vld [vmem:[#allocation4 + $0x60] sm:$0xff]
        %v3982 = vld [vmem:[#allocation4 + $0x68] sm:$0xff]
        %v3983 = vld [vmem:[#allocation4 + $0x70] sm:$0xff]
        %v3984 = vld [vmem:[#allocation4 + $0x78] sm:$0xff]
        %v3985 = vld [vmem:[#allocation4 + $0x80] sm:$0xff]
        %v3986 = vld [vmem:[#allocation4 + $0x88] sm:$0xff]
        %s3987 = scalar_lea.vmem %s3, 128
        %v3988 = vld [vmem:[%s3987] sm:$0xf]
        %v3989 = vld [vmem:[%s3987 + $0x4] sm:$0xf]
        %v3990 = vld [vmem:[%s3987 + $0x8] sm:$0xf]
        %v3991 = vld [vmem:[%s3987 + $0xc] sm:$0xf]
        %v3996 = vunpack.c.l.b16 %v3988
        %v3997 = vunpack.c.l.b16 %v3989
        %v3998 = vunpack.c.l.b16 %v3990
        %v3999 = vunpack.c.l.b16 %v3991
        %v4000 = vpack.c.b16 %v3997, %v3996
        %v4001 = vpack.c.b16 %v3999, %v3998
        %v4005 = vsel %vm840, %v3971, 0
        %v4008 = vsel %vm840, %v3972, 0
        %v4011 = vsel %vm840, %v3973, 0
        %v4014 = vsel %vm840, %v3974, 0
        %v4017 = vsel %vm840, %v3975, 0
        %v4020 = vsel %vm840, %v3976, 0
        %v4023 = vsel %vm840, %v3977, 0
        %v4026 = vsel %vm840, %v3978, 0
        %v4029 = vsel %vm840, %v3979, 0
        %v4032 = vsel %vm840, %v3980, 0
        %v4035 = vsel %vm840, %v3981, 0
        %v4038 = vsel %vm840, %v3982, 0
        %v4041 = vsel %vm840, %v3983, 0
        %v4044 = vsel %vm840, %v3984, 0
        %v4047 = vsel %vm840, %v3985, 0
        %v4050 = vsel %vm840, %v3986, 0
        %4052 = vmatprep.subr.bf16.mxu0 0
        %4053 = vmatpush1.bf16.msra.mxu0 %v4000
        %4054 = vmatprep.subr.bf16.mxu0 0
        %4055 = vmatpush1.bf16.msra.mxu0 %v4001
        %4056 = vmatprep.subr.bf16.mxu0 0
        %4057 = vmatpush1.bf16.msra.mxu0 0
        %4058 = vmatprep.subr.bf16.mxu0 0
        %4059 = vmatpush1.bf16.msra.mxu0 0
        %4060 = vmatprep.subr.bf16.mxu0 0
        %4061 = vmatpush1.bf16.msra.mxu0 0
        %4062 = vmatprep.subr.bf16.mxu0 0
        %4063 = vmatpush1.bf16.msra.mxu0 0
        %4064 = vmatprep.subr.bf16.mxu0 0
        %4065 = vmatpush1.bf16.msra.mxu0 0
        %4066 = vmatprep.subr.bf16.mxu0 0
        %4067 = vmatpush1.bf16.msra.mxu0 0
        %4068 = vmatprep.subr.bf16.mxu0 0
        %4069 = vmatpush1.bf16.msra.mxu0 0
        %4070 = vmatprep.subr.bf16.mxu0 0
        %4071 = vmatpush1.bf16.msra.mxu0 0
        %4072 = vmatprep.subr.bf16.mxu0 0
        %4073 = vmatpush1.bf16.msra.mxu0 0
        %4074 = vmatprep.subr.bf16.mxu0 0
        %4075 = vmatpush1.bf16.msra.mxu0 0
        %4076 = vmatprep.subr.bf16.mxu0 0
        %4077 = vmatpush1.bf16.msra.mxu0 0
        %4078 = vmatprep.subr.bf16.mxu0 0
        %4079 = vmatpush1.bf16.msra.mxu0 0
        %4080 = vmatprep.subr.bf16.mxu0 0
        %4081 = vmatpush1.bf16.msra.mxu0 0
        %4082 = vmatprep.subr.bf16.mxu0 0
        %4083 = vmatpush1.bf16.msra.mxu0 0
        %4084 = vmatprep.mubr.bf16.mxu0 0
        %4085 = vmatmul.mubr.bf16.gmra.mrb[0].mxu0 %v4005
        %v4086 = vpop.f32.mrb[0].mxu0
        %v4087 = vadd.f32 0.0, %v4086
        %v4088 = vpop.f32.mrb[0].mxu0
        %v4089 = vpop.f32.mrb[0].mxu0
        %v4090 = vadd.f32 0.0, %v4089
        %v4091 = vpop.f32.mrb[0].mxu0
        %4092 = vmatprep.mubr.bf16.mxu0 0
        %4093 = vmatmul.mubr.bf16.gmra.mrb[0].mxu0 %v4008
        %v4094 = vpop.f32.mrb[0].mxu0
        %v4095 = vadd.f32 0.0, %v4094
        %v4096 = vpop.f32.mrb[0].mxu0
        %v4097 = vpop.f32.mrb[0].mxu0
        %v4098 = vadd.f32 0.0, %v4097
        %v4099 = vpop.f32.mrb[0].mxu0
        %4100 = vmatprep.mubr.bf16.mxu0 0
        %4101 = vmatmul.mubr.bf16.gmra.mrb[0].mxu0 %v4011
        %v4102 = vpop.f32.mrb[0].mxu0
        %v4103 = vadd.f32 0.0, %v4102
        %v4104 = vpop.f32.mrb[0].mxu0
        %v4105 = vpop.f32.mrb[0].mxu0
        %v4106 = vadd.f32 0.0, %v4105
        %v4107 = vpop.f32.mrb[0].mxu0
        %4108 = vmatprep.mubr.bf16.mxu0 0
        %4109 = vmatmul.mubr.bf16.gmra.mrb[0].mxu0 %v4014
        %v4110 = vpop.f32.mrb[0].mxu0
        %v4111 = vadd.f32 0.0, %v4110
        %v4112 = vpop.f32.mrb[0].mxu0
        %v4113 = vpop.f32.mrb[0].mxu0
        %v4114 = vadd.f32 0.0, %v4113
        %v4115 = vpop.f32.mrb[0].mxu0
        %4116 = vmatprep.mubr.bf16.mxu0 0
        %4117 = vmatmul.mubr.bf16.gmra.mrb[0].mxu0 %v4017
        %v4118 = vpop.f32.mrb[0].mxu0
        %v4119 = vadd.f32 0.0, %v4118
        %v4120 = vpop.f32.mrb[0].mxu0
        %v4121 = vpop.f32.mrb[0].mxu0
        %v4122 = vadd.f32 0.0, %v4121
        %v4123 = vpop.f32.mrb[0].mxu0
        %4124 = vmatprep.mubr.bf16.mxu0 0
        %4125 = vmatmul.mubr.bf16.gmra.mrb[0].mxu0 %v4020
        %v4126 = vpop.f32.mrb[0].mxu0
        %v4127 = vadd.f32 0.0, %v4126
        %v4128 = vpop.f32.mrb[0].mxu0
        %v4129 = vpop.f32.mrb[0].mxu0
        %v4130 = vadd.f32 0.0, %v4129
        %v4131 = vpop.f32.mrb[0].mxu0
        %4132 = vmatprep.mubr.bf16.mxu0 0
        %4133 = vmatmul.mubr.bf16.gmra.mrb[0].mxu0 %v4023
        %v4134 = vpop.f32.mrb[0].mxu0
        %v4135 = vadd.f32 0.0, %v4134
        %v4136 = vpop.f32.mrb[0].mxu0
        %v4137 = vpop.f32.mrb[0].mxu0
        %v4138 = vadd.f32 0.0, %v4137
        %v4139 = vpop.f32.mrb[0].mxu0
        %4140 = vmatprep.mubr.bf16.mxu0 0
        %4141 = vmatmul.mubr.bf16.gmra.mrb[0].mxu0 %v4026
        %v4142 = vpop.f32.mrb[0].mxu0
        %v4143 = vadd.f32 0.0, %v4142
        %v4144 = vpop.f32.mrb[0].mxu0
        %v4145 = vpop.f32.mrb[0].mxu0
        %v4146 = vadd.f32 0.0, %v4145
        %v4147 = vpop.f32.mrb[0].mxu0
        %4148 = vmatprep.mubr.bf16.mxu0 0
        %4149 = vmatmul.mubr.bf16.gmra.mrb[0].mxu0 %v4029
        %v4150 = vpop.f32.mrb[0].mxu0
        %v4151 = vadd.f32 0.0, %v4150
        %v4152 = vpop.f32.mrb[0].mxu0
        %v4153 = vpop.f32.mrb[0].mxu0
        %v4154 = vadd.f32 0.0, %v4153
        %v4155 = vpop.f32.mrb[0].mxu0
        %4156 = vmatprep.mubr.bf16.mxu0 0
        %4157 = vmatmul.mubr.bf16.gmra.mrb[0].mxu0 %v4032
        %v4158 = vpop.f32.mrb[0].mxu0
        %v4159 = vadd.f32 0.0, %v4158
        %v4160 = vpop.f32.mrb[0].mxu0
        %v4161 = vpop.f32.mrb[0].mxu0
        %v4162 = vadd.f32 0.0, %v4161
        %v4163 = vpop.f32.mrb[0].mxu0
        %4164 = vmatprep.mubr.bf16.mxu0 0
        %4165 = vmatmul.mubr.bf16.gmra.mrb[0].mxu0 %v4035
        %v4166 = vpop.f32.mrb[0].mxu0
        %v4167 = vadd.f32 0.0, %v4166
        %v4168 = vpop.f32.mrb[0].mxu0
        %v4169 = vpop.f32.mrb[0].mxu0
        %v4170 = vadd.f32 0.0, %v4169
        %v4171 = vpop.f32.mrb[0].mxu0
        %4172 = vmatprep.mubr.bf16.mxu0 0
        %4173 = vmatmul.mubr.bf16.gmra.mrb[0].mxu0 %v4038
        %v4174 = vpop.f32.mrb[0].mxu0
        %v4175 = vadd.f32 0.0, %v4174
        %v4176 = vpop.f32.mrb[0].mxu0
        %v4177 = vpop.f32.mrb[0].mxu0
        %v4178 = vadd.f32 0.0, %v4177
        %v4179 = vpop.f32.mrb[0].mxu0
        %4180 = vmatprep.mubr.bf16.mxu0 0
        %4181 = vmatmul.mubr.bf16.gmra.mrb[0].mxu0 %v4041
        %v4182 = vpop.f32.mrb[0].mxu0
        %v4183 = vadd.f32 0.0, %v4182
        %v4184 = vpop.f32.mrb[0].mxu0
        %v4185 = vpop.f32.mrb[0].mxu0
        %v4186 = vadd.f32 0.0, %v4185
        %v4187 = vpop.f32.mrb[0].mxu0
        %4188 = vmatprep.mubr.bf16.mxu0 0
        %4189 = vmatmul.mubr.bf16.gmra.mrb[0].mxu0 %v4044
        %v4190 = vpop.f32.mrb[0].mxu0
        %v4191 = vadd.f32 0.0, %v4190
        %v4192 = vpop.f32.mrb[0].mxu0
        %v4193 = vpop.f32.mrb[0].mxu0
        %v4194 = vadd.f32 0.0, %v4193
        %v4195 = vpop.f32.mrb[0].mxu0
        %4196 = vmatprep.mubr.bf16.mxu0 0
        %4197 = vmatmul.mubr.bf16.gmra.mrb[0].mxu0 %v4047
        %v4198 = vpop.f32.mrb[0].mxu0
        %v4199 = vadd.f32 0.0, %v4198
        %v4200 = vpop.f32.mrb[0].mxu0
        %v4201 = vpop.f32.mrb[0].mxu0
        %v4202 = vadd.f32 0.0, %v4201
        %v4203 = vpop.f32.mrb[0].mxu0
        %4204 = vmatprep.mubr.bf16.mxu0 0
        %4205 = vmatmul.mubr.bf16.gmra.mrb[0].mxu0 %v4050
        %v4206 = vpop.f32.mrb[0].mxu0
        %v4207 = vadd.f32 0.0, %v4206
        %v4208 = vpop.f32.mrb[0].mxu0
        %v4209 = vpop.f32.mrb[0].mxu0
        %v4210 = vadd.f32 0.0, %v4209
        %v4211 = vpop.f32.mrb[0].mxu0
        %4212 = vdwg.mxu0
        %v4213 = vadd.f32 %v3939, %v4087
        %v4214 = vadd.f32 %v3940, %v4090
        %v4215 = vadd.f32 %v3941, %v4095
        %v4216 = vadd.f32 %v3942, %v4098
        %v4217 = vadd.f32 %v3943, %v4103
        %v4218 = vadd.f32 %v3944, %v4106
        %v4219 = vadd.f32 %v3945, %v4111
        %v4220 = vadd.f32 %v3946, %v4114
        %v4221 = vadd.f32 %v3947, %v4119
        %v4222 = vadd.f32 %v3948, %v4122
        %v4223 = vadd.f32 %v3949, %v4127
        %v4224 = vadd.f32 %v3950, %v4130
        %v4225 = vadd.f32 %v3951, %v4135
        %v4226 = vadd.f32 %v3952, %v4138
        %v4227 = vadd.f32 %v3953, %v4143
        %v4228 = vadd.f32 %v3954, %v4146
        %v4229 = vadd.f32 %v3955, %v4151
        %v4230 = vadd.f32 %v3956, %v4154
        %v4231 = vadd.f32 %v3957, %v4159
        %v4232 = vadd.f32 %v3958, %v4162
        %v4233 = vadd.f32 %v3959, %v4167
        %v4234 = vadd.f32 %v3960, %v4170
        %v4235 = vadd.f32 %v3961, %v4175
        %v4236 = vadd.f32 %v3962, %v4178
        %v4237 = vadd.f32 %v3963, %v4183
        %v4238 = vadd.f32 %v3964, %v4186
        %v4239 = vadd.f32 %v3965, %v4191
        %v4240 = vadd.f32 %v3966, %v4194
        %v4241 = vadd.f32 %v3967, %v4199
        %v4242 = vadd.f32 %v3968, %v4202
        %v4243 = vadd.f32 %v3969, %v4207
        %v4244 = vadd.f32 %v3970, %v4210
        %vm4245 = vcmp.ge.f32.partialorder %v4213, 1.0
        %vm4246 = vcmp.ge.f32.partialorder %v4214, 1.0
        %vm4247 = vcmp.ge.f32.partialorder %v4215, 1.0
        %vm4248 = vcmp.ge.f32.partialorder %v4216, 1.0
        %vm4249 = vcmp.ge.f32.partialorder %v4217, 1.0
        %vm4250 = vcmp.ge.f32.partialorder %v4218, 1.0
        %vm4251 = vcmp.ge.f32.partialorder %v4219, 1.0
        %vm4252 = vcmp.ge.f32.partialorder %v4220, 1.0
        %vm4253 = vcmp.ge.f32.partialorder %v4221, 1.0
        %vm4254 = vcmp.ge.f32.partialorder %v4222, 1.0
        %vm4255 = vcmp.ge.f32.partialorder %v4223, 1.0
        %vm4256 = vcmp.ge.f32.partialorder %v4224, 1.0
        %vm4257 = vcmp.ge.f32.partialorder %v4225, 1.0
        %vm4258 = vcmp.ge.f32.partialorder %v4226, 1.0
        %vm4259 = vcmp.ge.f32.partialorder %v4227, 1.0
        %vm4260 = vcmp.ge.f32.partialorder %v4228, 1.0
        %vm4261 = vcmp.ge.f32.partialorder %v4229, 1.0
        %vm4262 = vcmp.ge.f32.partialorder %v4230, 1.0
        %vm4263 = vcmp.ge.f32.partialorder %v4231, 1.0
        %vm4264 = vcmp.ge.f32.partialorder %v4232, 1.0
        %vm4265 = vcmp.ge.f32.partialorder %v4233, 1.0
        %vm4266 = vcmp.ge.f32.partialorder %v4234, 1.0
        %vm4267 = vcmp.ge.f32.partialorder %v4235, 1.0
        %vm4268 = vcmp.ge.f32.partialorder %v4236, 1.0
        %vm4269 = vcmp.ge.f32.partialorder %v4237, 1.0
        %vm4270 = vcmp.ge.f32.partialorder %v4238, 1.0
        %vm4271 = vcmp.ge.f32.partialorder %v4239, 1.0
        %vm4272 = vcmp.ge.f32.partialorder %v4240, 1.0
        %vm4273 = vcmp.ge.f32.partialorder %v4241, 1.0
        %vm4274 = vcmp.ge.f32.partialorder %v4242, 1.0
        %vm4275 = vcmp.ge.f32.partialorder %v4243, 1.0
        %vm4276 = vcmp.ge.f32.partialorder %v4244, 1.0
        %v4277 = vsel %vm4245, 1, 0
        %v4278 = vsel %vm4246, 1, 0
        %v4279 = vsel %vm4247, 1, 0
        %v4280 = vsel %vm4248, 1, 0
        %v4281 = vsel %vm4249, 1, 0
        %v4282 = vsel %vm4250, 1, 0
        %v4283 = vsel %vm4251, 1, 0
        %v4284 = vsel %vm4252, 1, 0
        %v4285 = vsel %vm4253, 1, 0
        %v4286 = vsel %vm4254, 1, 0
        %v4287 = vsel %vm4255, 1, 0
        %v4288 = vsel %vm4256, 1, 0
        %v4289 = vsel %vm4257, 1, 0
        %v4290 = vsel %vm4258, 1, 0
        %v4291 = vsel %vm4259, 1, 0
        %v4292 = vsel %vm4260, 1, 0
        %v4293 = vsel %vm4261, 1, 0
        %v4294 = vsel %vm4262, 1, 0
        %v4295 = vsel %vm4263, 1, 0
        %v4296 = vsel %vm4264, 1, 0
        %v4297 = vsel %vm4265, 1, 0
        %v4298 = vsel %vm4266, 1, 0
        %v4299 = vsel %vm4267, 1, 0
        %v4300 = vsel %vm4268, 1, 0
        %v4301 = vsel %vm4269, 1, 0
        %v4302 = vsel %vm4270, 1, 0
        %v4303 = vsel %vm4271, 1, 0
        %v4304 = vsel %vm4272, 1, 0
        %v4305 = vsel %vm4273, 1, 0
        %v4306 = vsel %vm4274, 1, 0
        %v4307 = vsel %vm4275, 1, 0
        %v4308 = vsel %vm4276, 1, 0
        %v4309 = vcvt.s32.f32 %v4277
        %v4310 = vcvt.s32.f32 %v4278
        %v4311 = vcvt.s32.f32 %v4279
        %v4312 = vcvt.s32.f32 %v4280
        %v4313 = vcvt.s32.f32 %v4281
        %v4314 = vcvt.s32.f32 %v4282
        %v4315 = vcvt.s32.f32 %v4283
        %v4316 = vcvt.s32.f32 %v4284
        %v4317 = vcvt.s32.f32 %v4285
        %v4318 = vcvt.s32.f32 %v4286
        %v4319 = vcvt.s32.f32 %v4287
        %v4320 = vcvt.s32.f32 %v4288
        %v4321 = vcvt.s32.f32 %v4289
        %v4322 = vcvt.s32.f32 %v4290
        %v4323 = vcvt.s32.f32 %v4291
        %v4324 = vcvt.s32.f32 %v4292
        %v4325 = vcvt.s32.f32 %v4293
        %v4326 = vcvt.s32.f32 %v4294
        %v4327 = vcvt.s32.f32 %v4295
        %v4328 = vcvt.s32.f32 %v4296
        %v4329 = vcvt.s32.f32 %v4297
        %v4330 = vcvt.s32.f32 %v4298
        %v4331 = vcvt.s32.f32 %v4299
        %v4332 = vcvt.s32.f32 %v4300
        %v4333 = vcvt.s32.f32 %v4301
        %v4334 = vcvt.s32.f32 %v4302
        %v4335 = vcvt.s32.f32 %v4303
        %v4336 = vcvt.s32.f32 %v4304
        %v4337 = vcvt.s32.f32 %v4305
        %v4338 = vcvt.s32.f32 %v4306
        %v4339 = vcvt.s32.f32 %v4307
        %v4340 = vcvt.s32.f32 %v4308
        %v4341 = vpack.c.bf16 %v4310, %v4309
        %v4342 = vpack.c.bf16 %v4312, %v4311
        %v4343 = vpack.c.bf16 %v4314, %v4313
        %v4344 = vpack.c.bf16 %v4316, %v4315
        %v4345 = vpack.c.bf16 %v4318, %v4317
        %v4346 = vpack.c.bf16 %v4320, %v4319
        %v4347 = vpack.c.bf16 %v4322, %v4321
        %v4348 = vpack.c.bf16 %v4324, %v4323
        %v4349 = vpack.c.bf16 %v4326, %v4325
        %v4350 = vpack.c.bf16 %v4328, %v4327
        %v4351 = vpack.c.bf16 %v4330, %v4329
        %v4352 = vpack.c.bf16 %v4332, %v4331
        %v4353 = vpack.c.bf16 %v4334, %v4333
        %v4354 = vpack.c.bf16 %v4336, %v4335
        %v4355 = vpack.c.bf16 %v4338, %v4337
        %v4356 = vpack.c.bf16 %v4340, %v4339
        %v4357 = vld [vmem:[%s5] sm:$0xf]
        %v4358 = vld [vmem:[%s5 + $0x4] sm:$0xf]
        %v4359 = vld [vmem:[%s5 + $0x8] sm:$0xf]
        %v4360 = vld [vmem:[%s5 + $0xc] sm:$0xf]
        %v4361 = vld [vmem:[%s6] sm:$0x1]
        %v4363 = vlaneseq
        %v4364 = vshrl.u32 %v4363, 7
        %v4365 = vsub.s32 0, %v4364
        %v4366 = vrot.slane %v4361, %v4365
        %v4372 = vunpack.c.l.b16 %v4357
        %v4373 = vunpack.c.l.b16 %v4358
        %v4374 = vunpack.c.l.b16 %v4359
        %v4375 = vunpack.c.l.b16 %v4360
        %v4376 = vpack.c.b16 %v4373, %v4372
        %v4377 = vpack.c.b16 %v4375, %v4374
        %v4381 = vsel %vm840, %v4341, 0
        %v4384 = vsel %vm840, %v4342, 0
        %v4387 = vsel %vm840, %v4343, 0
        %v4390 = vsel %vm840, %v4344, 0
        %v4393 = vsel %vm840, %v4345, 0
        %v4396 = vsel %vm840, %v4346, 0
        %v4399 = vsel %vm840, %v4347, 0
        %v4402 = vsel %vm840, %v4348, 0
        %v4405 = vsel %vm840, %v4349, 0
        %v4408 = vsel %vm840, %v4350, 0
        %v4411 = vsel %vm840, %v4351, 0
        %v4414 = vsel %vm840, %v4352, 0
        %v4417 = vsel %vm840, %v4353, 0
        %v4420 = vsel %vm840, %v4354, 0
        %v4423 = vsel %vm840, %v4355, 0
        %v4426 = vsel %vm840, %v4356, 0
        %4428 = vmatprep.subr.bf16.mxu0 0
        %4429 = vmatpush1.bf16.msra.mxu0 %v4376
        %4430 = vmatprep.subr.bf16.mxu0 0
        %4431 = vmatpush1.bf16.msra.mxu0 %v4377
        %4432 = vmatprep.subr.bf16.mxu0 0
        %4433 = vmatpush1.bf16.msra.mxu0 0
        %4434 = vmatprep.subr.bf16.mxu0 0
        %4435 = vmatpush1.bf16.msra.mxu0 0
        %4436 = vmatprep.subr.bf16.mxu0 0
        %4437 = vmatpush1.bf16.msra.mxu0 0
        %4438 = vmatprep.subr.bf16.mxu0 0
        %4439 = vmatpush1.bf16.msra.mxu0 0
        %4440 = vmatprep.subr.bf16.mxu0 0
        %4441 = vmatpush1.bf16.msra.mxu0 0
        %4442 = vmatprep.subr.bf16.mxu0 0
        %4443 = vmatpush1.bf16.msra.mxu0 0
        %4444 = vmatprep.subr.bf16.mxu0 0
        %4445 = vmatpush1.bf16.msra.mxu0 0
        %4446 = vmatprep.subr.bf16.mxu0 0
        %4447 = vmatpush1.bf16.msra.mxu0 0
        %4448 = vmatprep.subr.bf16.mxu0 0
        %4449 = vmatpush1.bf16.msra.mxu0 0
        %4450 = vmatprep.subr.bf16.mxu0 0
        %4451 = vmatpush1.bf16.msra.mxu0 0
        %4452 = vmatprep.subr.bf16.mxu0 0
        %4453 = vmatpush1.bf16.msra.mxu0 0
        %4454 = vmatprep.subr.bf16.mxu0 0
        %4455 = vmatpush1.bf16.msra.mxu0 0
        %4456 = vmatprep.subr.bf16.mxu0 0
        %4457 = vmatpush1.bf16.msra.mxu0 0
        %4458 = vmatprep.subr.bf16.mxu0 0
        %4459 = vmatpush1.bf16.msra.mxu0 0
        %4460 = vmatprep.mubr.bf16.mxu0 0
        %4461 = vmatmul.mubr.bf16.gmra.mrb[0].mxu0 %v4381
        %v4462 = vpop.f32.mrb[0].mxu0
        %v4463 = vadd.f32 %v4366, %v4462
        %v4464 = vpop.f32.mrb[0].mxu0
        %v4465 = vpop.f32.mrb[0].mxu0
        %v4466 = vadd.f32 %v4366, %v4465
        %v4467 = vpop.f32.mrb[0].mxu0
        %4468 = vmatprep.mubr.bf16.mxu0 0
        %4469 = vmatmul.mubr.bf16.gmra.mrb[0].mxu0 %v4384
        %v4470 = vpop.f32.mrb[0].mxu0
        %v4471 = vadd.f32 %v4366, %v4470
        %v4472 = vpop.f32.mrb[0].mxu0
        %v4473 = vpop.f32.mrb[0].mxu0
        %v4474 = vadd.f32 %v4366, %v4473
        %v4475 = vpop.f32.mrb[0].mxu0
        %4476 = vmatprep.mubr.bf16.mxu0 0
        %4477 = vmatmul.mubr.bf16.gmra.mrb[0].mxu0 %v4387
        %v4478 = vpop.f32.mrb[0].mxu0
        %v4479 = vadd.f32 %v4366, %v4478
        %v4480 = vpop.f32.mrb[0].mxu0
        %v4481 = vpop.f32.mrb[0].mxu0
        %v4482 = vadd.f32 %v4366, %v4481
        %v4483 = vpop.f32.mrb[0].mxu0
        %4484 = vmatprep.mubr.bf16.mxu0 0
        %4485 = vmatmul.mubr.bf16.gmra.mrb[0].mxu0 %v4390
        %v4486 = vpop.f32.mrb[0].mxu0
        %v4487 = vadd.f32 %v4366, %v4486
        %v4488 = vpop.f32.mrb[0].mxu0
        %v4489 = vpop.f32.mrb[0].mxu0
        %v4490 = vadd.f32 %v4366, %v4489
        %v4491 = vpop.f32.mrb[0].mxu0
        %4492 = vmatprep.mubr.bf16.mxu0 0
        %4493 = vmatmul.mubr.bf16.gmra.mrb[0].mxu0 %v4393
        %v4494 = vpop.f32.mrb[0].mxu0
        %v4495 = vadd.f32 %v4366, %v4494
        %v4496 = vpop.f32.mrb[0].mxu0
        %v4497 = vpop.f32.mrb[0].mxu0
        %v4498 = vadd.f32 %v4366, %v4497
        %v4499 = vpop.f32.mrb[0].mxu0
        %4500 = vmatprep.mubr.bf16.mxu0 0
        %4501 = vmatmul.mubr.bf16.gmra.mrb[0].mxu0 %v4396
        %v4502 = vpop.f32.mrb[0].mxu0
        %v4503 = vadd.f32 %v4366, %v4502
        %v4504 = vpop.f32.mrb[0].mxu0
        %v4505 = vpop.f32.mrb[0].mxu0
        %v4506 = vadd.f32 %v4366, %v4505
        %v4507 = vpop.f32.mrb[0].mxu0
        %4508 = vmatprep.mubr.bf16.mxu0 0
        %4509 = vmatmul.mubr.bf16.gmra.mrb[0].mxu0 %v4399
        %v4510 = vpop.f32.mrb[0].mxu0
        %v4511 = vadd.f32 %v4366, %v4510
        %v4512 = vpop.f32.mrb[0].mxu0
        %v4513 = vpop.f32.mrb[0].mxu0
        %v4514 = vadd.f32 %v4366, %v4513
        %v4515 = vpop.f32.mrb[0].mxu0
        %4516 = vmatprep.mubr.bf16.mxu0 0
        %4517 = vmatmul.mubr.bf16.gmra.mrb[0].mxu0 %v4402
        %v4518 = vpop.f32.mrb[0].mxu0
        %v4519 = vadd.f32 %v4366, %v4518
        %v4520 = vpop.f32.mrb[0].mxu0
        %v4521 = vpop.f32.mrb[0].mxu0
        %v4522 = vadd.f32 %v4366, %v4521
        %v4523 = vpop.f32.mrb[0].mxu0
        %4524 = vmatprep.mubr.bf16.mxu0 0
        %4525 = vmatmul.mubr.bf16.gmra.mrb[0].mxu0 %v4405
        %v4526 = vpop.f32.mrb[0].mxu0
        %v4527 = vadd.f32 %v4366, %v4526
        %v4528 = vpop.f32.mrb[0].mxu0
        %v4529 = vpop.f32.mrb[0].mxu0
        %v4530 = vadd.f32 %v4366, %v4529
        %v4531 = vpop.f32.mrb[0].mxu0
        %4532 = vmatprep.mubr.bf16.mxu0 0
        %4533 = vmatmul.mubr.bf16.gmra.mrb[0].mxu0 %v4408
        %v4534 = vpop.f32.mrb[0].mxu0
        %v4535 = vadd.f32 %v4366, %v4534
        %v4536 = vpop.f32.mrb[0].mxu0
        %v4537 = vpop.f32.mrb[0].mxu0
        %v4538 = vadd.f32 %v4366, %v4537
        %v4539 = vpop.f32.mrb[0].mxu0
        %4540 = vmatprep.mubr.bf16.mxu0 0
        %4541 = vmatmul.mubr.bf16.gmra.mrb[0].mxu0 %v4411
        %v4542 = vpop.f32.mrb[0].mxu0
        %v4543 = vadd.f32 %v4366, %v4542
        %v4544 = vpop.f32.mrb[0].mxu0
        %v4545 = vpop.f32.mrb[0].mxu0
        %v4546 = vadd.f32 %v4366, %v4545
        %v4547 = vpop.f32.mrb[0].mxu0
        %4548 = vmatprep.mubr.bf16.mxu0 0
        %4549 = vmatmul.mubr.bf16.gmra.mrb[0].mxu0 %v4414
        %v4550 = vpop.f32.mrb[0].mxu0
        %v4551 = vadd.f32 %v4366, %v4550
        %v4552 = vpop.f32.mrb[0].mxu0
        %v4553 = vpop.f32.mrb[0].mxu0
        %v4554 = vadd.f32 %v4366, %v4553
        %v4555 = vpop.f32.mrb[0].mxu0
        %4556 = vmatprep.mubr.bf16.mxu0 0
        %4557 = vmatmul.mubr.bf16.gmra.mrb[0].mxu0 %v4417
        %v4558 = vpop.f32.mrb[0].mxu0
        %v4559 = vadd.f32 %v4366, %v4558
        %v4560 = vpop.f32.mrb[0].mxu0
        %v4561 = vpop.f32.mrb[0].mxu0
        %v4562 = vadd.f32 %v4366, %v4561
        %v4563 = vpop.f32.mrb[0].mxu0
        %4564 = vmatprep.mubr.bf16.mxu0 0
        %4565 = vmatmul.mubr.bf16.gmra.mrb[0].mxu0 %v4420
        %v4566 = vpop.f32.mrb[0].mxu0
        %v4567 = vadd.f32 %v4366, %v4566
        %v4568 = vpop.f32.mrb[0].mxu0
        %v4569 = vpop.f32.mrb[0].mxu0
        %v4570 = vadd.f32 %v4366, %v4569
        %v4571 = vpop.f32.mrb[0].mxu0
        %4572 = vmatprep.mubr.bf16.mxu0 0
        %4573 = vmatmul.mubr.bf16.gmra.mrb[0].mxu0 %v4423
        %v4574 = vpop.f32.mrb[0].mxu0
        %v4575 = vadd.f32 %v4366, %v4574
        %v4576 = vpop.f32.mrb[0].mxu0
        %v4577 = vpop.f32.mrb[0].mxu0
        %v4578 = vadd.f32 %v4366, %v4577
        %v4579 = vpop.f32.mrb[0].mxu0
        %4580 = vmatprep.mubr.bf16.mxu0 0
        %4581 = vmatmul.mubr.bf16.gmra.mrb[0].mxu0 %v4426
        %v4582 = vpop.f32.mrb[0].mxu0
        %v4583 = vadd.f32 %v4366, %v4582
        %v4584 = vpop.f32.mrb[0].mxu0
        %v4585 = vpop.f32.mrb[0].mxu0
        %v4586 = vadd.f32 %v4366, %v4585
        %v4587 = vpop.f32.mrb[0].mxu0
        %4588 = vdwg.mxu0
        %v4589 = vmul.f32 %v4463, 0.5
        %v4590 = vmul.f32 %v4466, 0.5
        %v4591 = vmul.f32 %v4471, 0.5
        %v4592 = vmul.f32 %v4474, 0.5
        %v4593 = vmul.f32 %v4479, 0.5
        %v4594 = vmul.f32 %v4482, 0.5
        %v4595 = vmul.f32 %v4487, 0.5
        %v4596 = vmul.f32 %v4490, 0.5
        %v4597 = vmul.f32 %v4495, 0.5
        %v4598 = vmul.f32 %v4498, 0.5
        %v4599 = vmul.f32 %v4503, 0.5
        %v4600 = vmul.f32 %v4506, 0.5
        %v4601 = vmul.f32 %v4511, 0.5
        %v4602 = vmul.f32 %v4514, 0.5
        %v4603 = vmul.f32 %v4519, 0.5
        %v4604 = vmul.f32 %v4522, 0.5
        %v4605 = vmul.f32 %v4527, 0.5
        %v4606 = vmul.f32 %v4530, 0.5
        %v4607 = vmul.f32 %v4535, 0.5
        %v4608 = vmul.f32 %v4538, 0.5
        %v4609 = vmul.f32 %v4543, 0.5
        %v4610 = vmul.f32 %v4546, 0.5
        %v4611 = vmul.f32 %v4551, 0.5
        %v4612 = vmul.f32 %v4554, 0.5
        %v4613 = vmul.f32 %v4559, 0.5
        %v4614 = vmul.f32 %v4562, 0.5
        %v4615 = vmul.f32 %v4567, 0.5
        %v4616 = vmul.f32 %v4570, 0.5
        %v4617 = vmul.f32 %v4575, 0.5
        %v4618 = vmul.f32 %v4578, 0.5
        %v4619 = vmul.f32 %v4583, 0.5
        %v4620 = vmul.f32 %v4586, 0.5
        %v4621 = vld [vmem:[%s316] sm:$0xff]
        %v4622 = vld [vmem:[%s316 + $0x8] sm:$0xff]
        %v4623 = vld [vmem:[%s316 + $0x10] sm:$0xff]
        %v4624 = vld [vmem:[%s316 + $0x18] sm:$0xff]
        %v4625 = vld [vmem:[%s316 + $0x20] sm:$0xff]
        %v4626 = vld [vmem:[%s316 + $0x28] sm:$0xff]
        %v4627 = vld [vmem:[%s316 + $0x30] sm:$0xff]
        %v4628 = vld [vmem:[%s316 + $0x38] sm:$0xff]
        %v4629 = vld [vmem:[%s316 + $0x40] sm:$0xff]
        %v4630 = vld [vmem:[%s316 + $0x48] sm:$0xff]
        %v4631 = vld [vmem:[%s316 + $0x50] sm:$0xff]
        %v4632 = vld [vmem:[%s316 + $0x58] sm:$0xff]
        %v4633 = vld [vmem:[%s316 + $0x60] sm:$0xff]
        %v4634 = vld [vmem:[%s316 + $0x68] sm:$0xff]
        %v4635 = vld [vmem:[%s316 + $0x70] sm:$0xff]
        %v4636 = vld [vmem:[%s316 + $0x78] sm:$0xff]
        %v4637 = vld [vmem:[%s316 + $0x80] sm:$0xff]
        %v4638 = vld [vmem:[%s316 + $0x88] sm:$0xff]
        %v4639 = vld [vmem:[%s316 + $0x90] sm:$0xff]
        %v4640 = vld [vmem:[%s316 + $0x98] sm:$0xff]
        %v4641 = vld [vmem:[%s316 + $0xa0] sm:$0xff]
        %v4642 = vld [vmem:[%s316 + $0xa8] sm:$0xff]
        %v4643 = vld [vmem:[%s316 + $0xb0] sm:$0xff]
        %v4644 = vld [vmem:[%s316 + $0xb8] sm:$0xff]
        %v4645 = vld [vmem:[%s316 + $0xc0] sm:$0xff]
        %v4646 = vld [vmem:[%s316 + $0xc8] sm:$0xff]
        %v4647 = vld [vmem:[%s316 + $0xd0] sm:$0xff]
        %v4648 = vld [vmem:[%s316 + $0xd8] sm:$0xff]
        %v4649 = vld [vmem:[%s316 + $0xe0] sm:$0xff]
        %v4650 = vld [vmem:[%s316 + $0xe8] sm:$0xff]
        %v4651 = vld [vmem:[%s316 + $0xf0] sm:$0xff]
        %v4652 = vld [vmem:[%s316 + $0xf8] sm:$0xff]
        %v4653 = vadd.f32 %v4589, %v4621
        %v4654 = vadd.f32 %v4590, %v4622
        %v4655 = vadd.f32 %v4591, %v4623
        %v4656 = vadd.f32 %v4592, %v4624
        %v4657 = vadd.f32 %v4593, %v4625
        %v4658 = vadd.f32 %v4594, %v4626
        %v4659 = vadd.f32 %v4595, %v4627
        %v4660 = vadd.f32 %v4596, %v4628
        %v4661 = vadd.f32 %v4597, %v4629
        %v4662 = vadd.f32 %v4598, %v4630
        %v4663 = vadd.f32 %v4599, %v4631
        %v4664 = vadd.f32 %v4600, %v4632
        %v4665 = vadd.f32 %v4601, %v4633
        %v4666 = vadd.f32 %v4602, %v4634
        %v4667 = vadd.f32 %v4603, %v4635
        %v4668 = vadd.f32 %v4604, %v4636
        %v4669 = vadd.f32 %v4605, %v4637
        %v4670 = vadd.f32 %v4606, %v4638
        %v4671 = vadd.f32 %v4607, %v4639
        %v4672 = vadd.f32 %v4608, %v4640
        %v4673 = vadd.f32 %v4609, %v4641
        %v4674 = vadd.f32 %v4610, %v4642
        %v4675 = vadd.f32 %v4611, %v4643
        %v4676 = vadd.f32 %v4612, %v4644
        %v4677 = vadd.f32 %v4613, %v4645
        %v4678 = vadd.f32 %v4614, %v4646
        %v4679 = vadd.f32 %v4615, %v4647
        %v4680 = vadd.f32 %v4616, %v4648
        %v4681 = vadd.f32 %v4617, %v4649
        %v4682 = vadd.f32 %v4618, %v4650
        %v4683 = vadd.f32 %v4619, %v4651
        %v4684 = vadd.f32 %v4620, %v4652
        %4685 = vst [vmem:[%s350] sm:$0xff] %v4653
        %4686 = vst [vmem:[%s350 + $0x8] sm:$0xff] %v4654
        %4687 = vst [vmem:[%s350 + $0x10] sm:$0xff] %v4655
        %4688 = vst [vmem:[%s350 + $0x18] sm:$0xff] %v4656
        %4689 = vst [vmem:[%s350 + $0x20] sm:$0xff] %v4657
        %4690 = vst [vmem:[%s350 + $0x28] sm:$0xff] %v4658
        %4691 = vst [vmem:[%s350 + $0x30] sm:$0xff] %v4659
        %4692 = vst [vmem:[%s350 + $0x38] sm:$0xff] %v4660
        %4693 = vst [vmem:[%s350 + $0x40] sm:$0xff] %v4661
        %4694 = vst [vmem:[%s350 + $0x48] sm:$0xff] %v4662
        %4695 = vst [vmem:[%s350 + $0x50] sm:$0xff] %v4663
        %4696 = vst [vmem:[%s350 + $0x58] sm:$0xff] %v4664
        %4697 = vst [vmem:[%s350 + $0x60] sm:$0xff] %v4665
        %4698 = vst [vmem:[%s350 + $0x68] sm:$0xff] %v4666
        %4699 = vst [vmem:[%s350 + $0x70] sm:$0xff] %v4667
        %4700 = vst [vmem:[%s350 + $0x78] sm:$0xff] %v4668
        %4701 = vst [vmem:[%s350 + $0x80] sm:$0xff] %v4669
        %4702 = vst [vmem:[%s350 + $0x88] sm:$0xff] %v4670
        %4703 = vst [vmem:[%s350 + $0x90] sm:$0xff] %v4671
        %4704 = vst [vmem:[%s350 + $0x98] sm:$0xff] %v4672
        %4705 = vst [vmem:[%s350 + $0xa0] sm:$0xff] %v4673
        %4706 = vst [vmem:[%s350 + $0xa8] sm:$0xff] %v4674
        %4707 = vst [vmem:[%s350 + $0xb0] sm:$0xff] %v4675
        %4708 = vst [vmem:[%s350 + $0xb8] sm:$0xff] %v4676
        %4709 = vst [vmem:[%s350 + $0xc0] sm:$0xff] %v4677
        %4710 = vst [vmem:[%s350 + $0xc8] sm:$0xff] %v4678
        %4711 = vst [vmem:[%s350 + $0xd0] sm:$0xff] %v4679
        %4712 = vst [vmem:[%s350 + $0xd8] sm:$0xff] %v4680
        %4713 = vst [vmem:[%s350 + $0xe0] sm:$0xff] %v4681
        %4714 = vst [vmem:[%s350 + $0xe8] sm:$0xff] %v4682
        %4715 = vst [vmem:[%s350 + $0xf0] sm:$0xff] %v4683
        %4716 = vst [vmem:[%s350 + $0xf8] sm:$0xff] %v4684
        %s4717 = sand.u32 %s228, 1
        %s4718 = scalar_lea.sflag [#allocation7], %s4717
        %s4719 = sand.u32 %s228, 1
        %s4720 = smul.addr %s4719, 256
        %s4721 = scalar_lea.vmem [#allocation8], %s4720
        // Predicated region
        $region61: #{tpu_custom_call.1} parent=55 // pred_check
          %p4722 = pneg %p238
        $region62: #{tpu_custom_call.1} parent=55 // pred_check_branch
          %4724 = sbr.rel (%p4722) target = $region64
        $region63: #{tpu_custom_call.1} parent=55 // pred_region
          %s4726 = ssub.s32 4096, 4096
          %4727 = vsyncadd %s4718, %s4726
          %s4728 = smul.addr %s26, 32
          %s4729 = smul.addr %s4728, 128
          %s4730 = scalar_lea.hbm %s9, %s4729
          %s4731 = sshll.u32 %s4721, 4
          %s4732 = int_to_ptr.vmem [resolvable:$true] %s4731
          %4737 = dma.vmem_to_hbm [thread:$0]  %s4732, 4096, %s4730, %s4718, 128, 128, 8
        $region64: #{tpu_custom_call.1} parent=55 // pred_fallthru
          _
      $region56: #{tpu_custom_call.1} parent=5 // pred_fallthru
        _
      %p4738 = scmp.le.s32.totalorder 2, %s21
      // Predicated region
      $region65: #{tpu_custom_call.1} parent=5 // pred_check
        %p4739 = pneg %p4738
      $region66: #{tpu_custom_call.1} parent=5 // pred_check_branch
        %4741 = sbr.rel (%p4739) target = $region68
      $region67: #{tpu_custom_call.1} parent=5 // pred_region
        %s4742 = ssub.s32 %s21, 2
        // Predicated region
        $region69: #{tpu_custom_call.1} parent=67 // pred_check
          %p4743 = pneg %p244
        $region70: #{tpu_custom_call.1} parent=67 // pred_check_branch
          %4745 = sbr.rel (%p4743) target = $region72
        $region71: #{tpu_custom_call.1} parent=67 // pred_region
          %s4746 = sand.u32 %s229, 1
          %s4747 = scalar_lea.sflag [#allocation7], %s4746
          %s4748 = sand.u32 %s229, 1
          %s4749 = smul.addr %s4748, 256
          %s4750 = scalar_lea.vmem [#allocation8], %s4749
          %4751 = dma.done %s4747, 4096
        $region72: #{tpu_custom_call.1} parent=67 // pred_fallthru
          _
      $region68: #{tpu_custom_call.1} parent=5 // pred_fallthru
        _
    $region6: #{tpu_custom_call.1} parent=1 // loop_footer
      %s25 = sadd.s32 1, %s21
    $region7: #{tpu_custom_call.1} parent=1 // loop_footer_branch
      %20 = sbr.rel target = $region3
    $region8: #{tpu_custom_call.1} parent=1 // loop_exit
      _
    %4752 = vsyncpa [#allocation6], 1
    %s4753 = scalar_lea.sflag [#allocation6], 1
    %4754 = vsyncpa %s4753, 1
    %4755 = vsyncpa [#allocation7], 1
    %s4756 = scalar_lea.sflag [#allocation7], 1
    %4757 = vsyncpa %s4756, 1

</llo_original>
